<compile_context>
chip_gen: v5e
topology: v5e:2x2
jax: 0.10.0
libtpu: 0.0.40
codegen_flags: <defaults>
</compile_context>

<pallas_src>
import functools

import jax
import jax.numpy as jnp
from jax.experimental import pallas as pl
from jax.experimental.pallas import tpu as pltpu


# ----------------------- Pallas kernel -----------------------

def _conv_gemm_kernel(xg_ref, w_ref, b_ref, o_ref, *, ho):
    """Fused grouped-conv GEMM + bias + ReLU for one sample.

    xg_ref: (1, HQ, K)   bf16  stride-grouped, conv-padded input rows
    w_ref : (Q, K, COW)  bf16  width-Toeplitz weight, COW = Cout*Wo
    b_ref : (1, COW)     f32   bias broadcast over Wo
    o_ref : (1, HO, COW) f32   conv output: rows = ho, cols = (cout, wo)
    """
    xg = xg_ref[0]                                   # (HQ, K)
    q_taps = w_ref.shape[0]
    cow = o_ref.shape[2]
    acc = jnp.zeros((ho, cow), jnp.float32)
    for q in range(q_taps):                          # unrolled, Q <= 6
        y = jnp.dot(xg, w_ref[q], preferred_element_type=jnp.float32)  # (HQ, COW)
        acc = acc + y[q:q + ho, :]                   # static row shift by q
    acc = acc + b_ref[...]
    o_ref[0] = jnp.maximum(acc, 0.0)


def _grouped_conv_relu(xg, w3, bias_cw, ho):
    """y[n, ho, :] = relu(sum_q xg[n, ho+q, :] @ w3[q] + bias)."""
    n_batch, hq, k = xg.shape
    q_taps, _, cow = w3.shape
    kernel = functools.partial(_conv_gemm_kernel, ho=ho)
    return pl.pallas_call(
        kernel,
        out_shape=jax.ShapeDtypeStruct((n_batch, ho, cow), jnp.float32),
        grid=(n_batch,),
        in_specs=[
            pl.BlockSpec((1, hq, k), lambda n: (n, 0, 0)),
            pl.BlockSpec((q_taps, k, cow), lambda n: (0, 0, 0)),
            pl.BlockSpec((1, cow), lambda n: (0, 0)),
        ],
        out_specs=pl.BlockSpec((1, ho, cow), lambda n: (n, 0, 0)),
        compiler_params=pltpu.CompilerParams(
            dimension_semantics=("parallel",)),
    )(xg, w3, bias_cw)


# ----------------------- layout glue -----------------------

def conv2d_relu(x_nhcw, weight, bias, *, stride_h, pad,
                compute_dtype=jnp.bfloat16):
    """Conv2d(stride=(stride_h, 1), padding=pad) + ReLU on NHCW input.

    weight: (Cout, Cin, KH, KW) (torch layout).  Returns NHCW (N, Ho, Cout, Wo), f32.
    """
    n, h, c, w = x_nhcw.shape
    cout, cin, kh, kw = weight.shape
    assert cin == c
    hp, wp = h + 2 * pad, w + 2 * pad
    ho = (hp - kh) // stride_h + 1
    wo = wp - kw + 1                        # stride_w == 1 for both convs
    q_taps = -(-kh // stride_h)             # groups of rows each output touches
    hq = max(ho + q_taps - 1, -(-hp // stride_h))

    # Stride-grouped, conv-padded input: (N, HQ, stride_h*C*Wp).  Pure pad+reshape
    # of the raw input -- no im2col expansion, no gather.
    xg = jnp.pad(x_nhcw,
                 ((0, 0), (pad, hq * stride_h - h - pad), (0, 0), (pad, pad)))
    xg = xg.reshape(n, hq, stride_h * c * wp).astype(compute_dtype)

    # Width-Toeplitz weight: W3[q, (r, c, w), (cout, wo)], kh = q*stride_h + r.
    wpad = jnp.pad(weight, ((0, 0), (0, 0), (0, q_taps * stride_h - kh), (0, 0)))
    wq = jnp.transpose(wpad, (2, 1, 3, 0)).reshape(q_taps, stride_h, c, kw, cout)
    ind = (jnp.arange(wp)[None, :, None]
           == jnp.arange(wo)[None, None, :] + jnp.arange(kw)[:, None, None])
    w3 = jnp.einsum('qrckn,kwo->qrcwno', wq, ind.astype(weight.dtype))
    w3 = w3.reshape(q_taps, stride_h * c * wp, cout * wo).astype(compute_dtype)

    bias_cw = jnp.repeat(bias, wo).reshape(1, cout * wo).astype(jnp.float32)

    out = _grouped_conv_relu(xg, w3, bias_cw, ho)     # (N, Ho, Cout*Wo) f32
    return out.reshape(n, ho, cout, wo)               # NHCW


def maxpool2x2_nhcw(x, pad):
    """MaxPool2d(kernel=2, stride=2, padding=pad), floor mode; x is NHCW."""
    if pad:
        x = jnp.pad(x, ((0, 0), (pad, pad), (0, 0), (pad, pad)),
                    constant_values=-jnp.inf)
    n, h, c, w = x.shape
    ho, wo = (h - 2) // 2 + 1, (w - 2) // 2 + 1
    x = x[:, :2 * ho, :, :2 * wo]
    a = x[:, 0::2, :, 0::2]
    b = x[:, 1::2, :, 0::2]
    cc = x[:, 0::2, :, 1::2]
    d = x[:, 1::2, :, 1::2]
    return jnp.maximum(jnp.maximum(a, b), jnp.maximum(cc, d))


def cnn_forward(x, params):
    # x: (N, 1, H, W) NCHW (torch convention) -> NHCW (free: C == 1).
    x_nhcw = jnp.transpose(x, (0, 2, 1, 3))
    h = conv2d_relu(x_nhcw, params["w1"], params["b1"], stride_h=40, pad=1)
    h = maxpool2x2_nhcw(h, pad=1)
    h = conv2d_relu(h, params["w2"], params["b2"], stride_h=4, pad=1)
    h = maxpool2x2_nhcw(h, pad=0)
    # NHCW -> NCHW flatten order to match torch's x.view(N, -1).
    feature = jnp.transpose(h, (0, 2, 1, 3)).reshape(h.shape[0], -1)
    # Tiny (2,400)x(400,6) Linear: plain jnp (a kernel launch costs more than it).
    output = feature @ params["w_out"].T + params["b_out"]
    return feature, output


def init_params(key):
    k = jax.random.split(key, 6)
    s = 0.05
    return {
        "w1": s * jax.random.normal(k[0], (5, 1, 220, 3), jnp.float32),
        "b1": s * jax.random.normal(k[1], (5,), jnp.float32),
        "w2": s * jax.random.normal(k[2], (10, 5, 20, 2), jnp.float32),
        "b2": s * jax.random.normal(k[3], (10,), jnp.float32),
        "w_out": s * jax.random.normal(k[4], (6, 400), jnp.float32),
        "b_out": s * jax.random.normal(k[5], (6,), jnp.float32),
    }


if __name__ == "__main__":
    key = jax.random.PRNGKey(0)
    pkey, xkey = jax.random.split(key)
    params = init_params(pkey)
    # Input size is fixed by the Linear(10*10*4, 6) layer:
    # (2,1,8000,12) -> conv1 (2,5,195,12) -> pool1 (2,5,98,7)
    # -> conv2 (2,10,21,8) -> pool2 (2,10,10,4) -> flatten (2,400) -> out (2,6)
    x = jax.random.normal(xkey, (2, 1, 8000, 12), jnp.float32)

    feature, output = jax.jit(cnn_forward)(x, params)
    jax.block_until_ready((feature, output))
    assert feature.shape == (2, 400) and output.shape == (2, 6)
    assert feature.dtype == jnp.float32 and output.dtype == jnp.float32
    assert bool(jnp.all(jnp.isfinite(feature))) and bool(jnp.all(jnp.isfinite(output)))
    print("KERNEL_OK")
</pallas_src>

<mosaic_0001>
module attributes {stable_mosaic.version = 11 : i64} {
  func.func @_conv_gemm_kernel(%arg0: i32, %arg1: memref<1x201x560xbf16, #tpu.memory_space<vmem>>, %arg2: memref<6x560x60xbf16, #tpu.memory_space<vmem>>, %arg3: memref<1x60xf32, #tpu.memory_space<vmem>>, %arg4: memref<1x195x60xf32, #tpu.memory_space<vmem>>) attributes {dimension_semantics = [#tpu.dimension_semantics<parallel>], iteration_bounds = array<i64: 2>, scalar_prefetch = 0 : i64, scratch_operands = 0 : i64, tpu.core_type = #tpu.core_type<tc>, window_params = [{transform_indices = @transform_0, window_bounds = array<i64: 1, 201, 560>}, {pipeline_mode = #tpu.pipeline_mode<synchronous>, transform_indices = @transform_1, window_bounds = array<i64: 6, 560, 60>}, {pipeline_mode = #tpu.pipeline_mode<synchronous>, transform_indices = @transform_2, window_bounds = array<i64: 1, 60>}, {transform_indices = @transform_3, window_bounds = array<i64: 1, 195, 60>}]} {
    %c0 = arith.constant 0 : index
    %c0_0 = arith.constant 0 : index
    %c0_1 = arith.constant 0 : index
    %0 = vector.load %arg1[%c0, %c0_0, %c0_1] : memref<1x201x560xbf16, #tpu.memory_space<vmem>>, vector<1x201x560xbf16>
    %1 = vector.shape_cast %0 : vector<1x201x560xbf16> to vector<201x560xbf16>
    %cst = arith.constant 0.000000e+00 : f32
    %2 = vector.broadcast %cst : f32 to vector<195x60xf32>
    %c0_2 = arith.constant 0 : index
    %c0_3 = arith.constant 0 : index
    %c0_4 = arith.constant 0 : index
    %3 = vector.load %arg2[%c0_2, %c0_3, %c0_4] : memref<6x560x60xbf16, #tpu.memory_space<vmem>>, vector<1x560x60xbf16>
    %4 = vector.shape_cast %3 : vector<1x560x60xbf16> to vector<560x60xbf16>
    %cst_5 = arith.constant dense<0.000000e+00> : vector<201x60xf32>
    %5 = tpu.matmul %1, %4, %cst_5 {dimension_numbers = #tpu.dot_dimension_numbers<[1], [0], [0], [1], [0, 0, 1, 1], [], []>} : vector<201x560xbf16>, vector<560x60xbf16>, vector<201x60xf32> -> vector<201x60xf32>
    %6 = vector.extract_strided_slice %5 {offsets = [0, 0], sizes = [195, 60], strides = [1, 1]} : vector<201x60xf32> to vector<195x60xf32>
    %7 = arith.addf %2, %6 : vector<195x60xf32>
    %c1 = arith.constant 1 : index
    %c0_6 = arith.constant 0 : index
    %c0_7 = arith.constant 0 : index
    %8 = vector.load %arg2[%c1, %c0_6, %c0_7] : memref<6x560x60xbf16, #tpu.memory_space<vmem>>, vector<1x560x60xbf16>
    %9 = vector.shape_cast %8 : vector<1x560x60xbf16> to vector<560x60xbf16>
    %cst_8 = arith.constant dense<0.000000e+00> : vector<201x60xf32>
    %10 = tpu.matmul %1, %9, %cst_8 {dimension_numbers = #tpu.dot_dimension_numbers<[1], [0], [0], [1], [0, 0, 1, 1], [], []>} : vector<201x560xbf16>, vector<560x60xbf16>, vector<201x60xf32> -> vector<201x60xf32>
    %11 = vector.extract_strided_slice %10 {offsets = [1, 0], sizes = [195, 60], strides = [1, 1]} : vector<201x60xf32> to vector<195x60xf32>
    %12 = arith.addf %7, %11 : vector<195x60xf32>
    %c2 = arith.constant 2 : index
    %c0_9 = arith.constant 0 : index
    %c0_10 = arith.constant 0 : index
    %13 = vector.load %arg2[%c2, %c0_9, %c0_10] : memref<6x560x60xbf16, #tpu.memory_space<vmem>>, vector<1x560x60xbf16>
    %14 = vector.shape_cast %13 : vector<1x560x60xbf16> to vector<560x60xbf16>
    %cst_11 = arith.constant dense<0.000000e+00> : vector<201x60xf32>
    %15 = tpu.matmul %1, %14, %cst_11 {dimension_numbers = #tpu.dot_dimension_numbers<[1], [0], [0], [1], [0, 0, 1, 1], [], []>} : vector<201x560xbf16>, vector<560x60xbf16>, vector<201x60xf32> -> vector<201x60xf32>
    %16 = vector.extract_strided_slice %15 {offsets = [2, 0], sizes = [195, 60], strides = [1, 1]} : vector<201x60xf32> to vector<195x60xf32>
    %17 = arith.addf %12, %16 : vector<195x60xf32>
    %c3 = arith.constant 3 : index
    %c0_12 = arith.constant 0 : index
    %c0_13 = arith.constant 0 : index
    %18 = vector.load %arg2[%c3, %c0_12, %c0_13] : memref<6x560x60xbf16, #tpu.memory_space<vmem>>, vector<1x560x60xbf16>
    %19 = vector.shape_cast %18 : vector<1x560x60xbf16> to vector<560x60xbf16>
    %cst_14 = arith.constant dense<0.000000e+00> : vector<201x60xf32>
    %20 = tpu.matmul %1, %19, %cst_14 {dimension_numbers = #tpu.dot_dimension_numbers<[1], [0], [0], [1], [0, 0, 1, 1], [], []>} : vector<201x560xbf16>, vector<560x60xbf16>, vector<201x60xf32> -> vector<201x60xf32>
    %21 = vector.extract_strided_slice %20 {offsets = [3, 0], sizes = [195, 60], strides = [1, 1]} : vector<201x60xf32> to vector<195x60xf32>
    %22 = arith.addf %17, %21 : vector<195x60xf32>
    %c4 = arith.constant 4 : index
    %c0_15 = arith.constant 0 : index
    %c0_16 = arith.constant 0 : index
    %23 = vector.load %arg2[%c4, %c0_15, %c0_16] : memref<6x560x60xbf16, #tpu.memory_space<vmem>>, vector<1x560x60xbf16>
    %24 = vector.shape_cast %23 : vector<1x560x60xbf16> to vector<560x60xbf16>
    %cst_17 = arith.constant dense<0.000000e+00> : vector<201x60xf32>
    %25 = tpu.matmul %1, %24, %cst_17 {dimension_numbers = #tpu.dot_dimension_numbers<[1], [0], [0], [1], [0, 0, 1, 1], [], []>} : vector<201x560xbf16>, vector<560x60xbf16>, vector<201x60xf32> -> vector<201x60xf32>
    %26 = vector.extract_strided_slice %25 {offsets = [4, 0], sizes = [195, 60], strides = [1, 1]} : vector<201x60xf32> to vector<195x60xf32>
    %27 = arith.addf %22, %26 : vector<195x60xf32>
    %c5 = arith.constant 5 : index
    %c0_18 = arith.constant 0 : index
    %c0_19 = arith.constant 0 : index
    %28 = vector.load %arg2[%c5, %c0_18, %c0_19] : memref<6x560x60xbf16, #tpu.memory_space<vmem>>, vector<1x560x60xbf16>
    %29 = vector.shape_cast %28 : vector<1x560x60xbf16> to vector<560x60xbf16>
    %cst_20 = arith.constant dense<0.000000e+00> : vector<201x60xf32>
    %30 = tpu.matmul %1, %29, %cst_20 {dimension_numbers = #tpu.dot_dimension_numbers<[1], [0], [0], [1], [0, 0, 1, 1], [], []>} : vector<201x560xbf16>, vector<560x60xbf16>, vector<201x60xf32> -> vector<201x60xf32>
    %31 = vector.extract_strided_slice %30 {offsets = [5, 0], sizes = [195, 60], strides = [1, 1]} : vector<201x60xf32> to vector<195x60xf32>
    %32 = arith.addf %27, %31 : vector<195x60xf32>
    %c0_21 = arith.constant 0 : index
    %c0_22 = arith.constant 0 : index
    %33 = vector.load %arg3[%c0_21, %c0_22] : memref<1x60xf32, #tpu.memory_space<vmem>>, vector<1x60xf32>
    %34 = vector.broadcast %33 : vector<1x60xf32> to vector<195x60xf32>
    %35 = arith.addf %32, %34 : vector<195x60xf32>
    %cst_23 = arith.constant 0.000000e+00 : f32
    %36 = vector.broadcast %cst_23 : f32 to vector<195x60xf32>
    %37 = arith.maximumf %35, %36 : vector<195x60xf32>
    %c0_24 = arith.constant 0 : index
    %c0_25 = arith.constant 0 : index
    %c0_26 = arith.constant 0 : index
    %38 = vector.load %arg4[%c0_24, %c0_25, %c0_26] : memref<1x195x60xf32, #tpu.memory_space<vmem>>, vector<1x195x60xf32>
    %39 = vector.shape_cast %38 : vector<1x195x60xf32> to vector<195x60xf32>
    %40 = vector.shape_cast %37 : vector<195x60xf32> to vector<1x195x60xf32>
    tpu.vector_store %arg4[%c0_24, %c0_25, %c0_26], %40 {strides = array<i32>} : memref<1x195x60xf32, #tpu.memory_space<vmem>>, vector<1x195x60xf32>,
    return
  }
  func.func @transform_0(%arg0: i32) -> (i32, i32, i32) {
    %c0_i32 = arith.constant 0 : i32
    %c0_i32_0 = arith.constant 0 : i32
    %c0_i32_1 = arith.constant 0 : i32
    return %arg0, %c0_i32, %c0_i32_0 : i32, i32, i32
  }
  func.func @transform_1(%arg0: i32) -> (i32, i32, i32) {
    %c0_i32 = arith.constant 0 : i32
    %c0_i32_0 = arith.constant 0 : i32
    %c0_i32_1 = arith.constant 0 : i32
    %c0_i32_2 = arith.constant 0 : i32
    return %c0_i32, %c0_i32_0, %c0_i32_1 : i32, i32, i32
  }
  func.func @transform_2(%arg0: i32) -> (i32, i32) {
    %c0_i32 = arith.constant 0 : i32
    %c0_i32_0 = arith.constant 0 : i32
    %c0_i32_1 = arith.constant 0 : i32
    return %c0_i32, %c0_i32_0 : i32, i32
  }
  func.func @transform_3(%arg0: i32) -> (i32, i32, i32) {
    %c0_i32 = arith.constant 0 : i32
    %c0_i32_0 = arith.constant 0 : i32
    %c0_i32_1 = arith.constant 0 : i32
    return %arg0, %c0_i32, %c0_i32_0 : i32, i32, i32
  }
}

module attributes {stable_mosaic.version = 11 : i64} {
  func.func @_conv_gemm_kernel(%arg0: i32, %arg1: memref<1x25x180xbf16, #tpu.memory_space<vmem>>, %arg2: memref<5x180x80xbf16, #tpu.memory_space<vmem>>, %arg3: memref<1x80xf32, #tpu.memory_space<vmem>>, %arg4: memref<1x21x80xf32, #tpu.memory_space<vmem>>) attributes {dimension_semantics = [#tpu.dimension_semantics<parallel>], iteration_bounds = array<i64: 2>, scalar_prefetch = 0 : i64, scratch_operands = 0 : i64, tpu.core_type = #tpu.core_type<tc>, window_params = [{transform_indices = @transform_0, window_bounds = array<i64: 1, 25, 180>}, {pipeline_mode = #tpu.pipeline_mode<synchronous>, transform_indices = @transform_1, window_bounds = array<i64: 5, 180, 80>}, {pipeline_mode = #tpu.pipeline_mode<synchronous>, transform_indices = @transform_2, window_bounds = array<i64: 1, 80>}, {transform_indices = @transform_3, window_bounds = array<i64: 1, 21, 80>}]} {
    %c0 = arith.constant 0 : index
    %c0_0 = arith.constant 0 : index
    %c0_1 = arith.constant 0 : index
    %0 = vector.load %arg1[%c0, %c0_0, %c0_1] : memref<1x25x180xbf16, #tpu.memory_space<vmem>>, vector<1x25x180xbf16>
    %1 = vector.shape_cast %0 : vector<1x25x180xbf16> to vector<25x180xbf16>
    %cst = arith.constant 0.000000e+00 : f32
    %2 = vector.broadcast %cst : f32 to vector<21x80xf32>
    %c0_2 = arith.constant 0 : index
    %c0_3 = arith.constant 0 : index
    %c0_4 = arith.constant 0 : index
    %3 = vector.load %arg2[%c0_2, %c0_3, %c0_4] : memref<5x180x80xbf16, #tpu.memory_space<vmem>>, vector<1x180x80xbf16>
    %4 = vector.shape_cast %3 : vector<1x180x80xbf16> to vector<180x80xbf16>
    %cst_5 = arith.constant dense<0.000000e+00> : vector<25x80xf32>
    %5 = tpu.matmul %1, %4, %cst_5 {dimension_numbers = #tpu.dot_dimension_numbers<[1], [0], [0], [1], [0, 0, 1, 1], [], []>} : vector<25x180xbf16>, vector<180x80xbf16>, vector<25x80xf32> -> vector<25x80xf32>
    %6 = vector.extract_strided_slice %5 {offsets = [0, 0], sizes = [21, 80], strides = [1, 1]} : vector<25x80xf32> to vector<21x80xf32>
    %7 = arith.addf %2, %6 : vector<21x80xf32>
    %c1 = arith.constant 1 : index
    %c0_6 = arith.constant 0 : index
    %c0_7 = arith.constant 0 : index
    %8 = vector.load %arg2[%c1, %c0_6, %c0_7] : memref<5x180x80xbf16, #tpu.memory_space<vmem>>, vector<1x180x80xbf16>
    %9 = vector.shape_cast %8 : vector<1x180x80xbf16> to vector<180x80xbf16>
    %cst_8 = arith.constant dense<0.000000e+00> : vector<25x80xf32>
    %10 = tpu.matmul %1, %9, %cst_8 {dimension_numbers = #tpu.dot_dimension_numbers<[1], [0], [0], [1], [0, 0, 1, 1], [], []>} : vector<25x180xbf16>, vector<180x80xbf16>, vector<25x80xf32> -> vector<25x80xf32>
    %11 = vector.extract_strided_slice %10 {offsets = [1, 0], sizes = [21, 80], strides = [1, 1]} : vector<25x80xf32> to vector<21x80xf32>
    %12 = arith.addf %7, %11 : vector<21x80xf32>
    %c2 = arith.constant 2 : index
    %c0_9 = arith.constant 0 : index
    %c0_10 = arith.constant 0 : index
    %13 = vector.load %arg2[%c2, %c0_9, %c0_10] : memref<5x180x80xbf16, #tpu.memory_space<vmem>>, vector<1x180x80xbf16>
    %14 = vector.shape_cast %13 : vector<1x180x80xbf16> to vector<180x80xbf16>
    %cst_11 = arith.constant dense<0.000000e+00> : vector<25x80xf32>
    %15 = tpu.matmul %1, %14, %cst_11 {dimension_numbers = #tpu.dot_dimension_numbers<[1], [0], [0], [1], [0, 0, 1, 1], [], []>} : vector<25x180xbf16>, vector<180x80xbf16>, vector<25x80xf32> -> vector<25x80xf32>
    %16 = vector.extract_strided_slice %15 {offsets = [2, 0], sizes = [21, 80], strides = [1, 1]} : vector<25x80xf32> to vector<21x80xf32>
    %17 = arith.addf %12, %16 : vector<21x80xf32>
    %c3 = arith.constant 3 : index
    %c0_12 = arith.constant 0 : index
    %c0_13 = arith.constant 0 : index
    %18 = vector.load %arg2[%c3, %c0_12, %c0_13] : memref<5x180x80xbf16, #tpu.memory_space<vmem>>, vector<1x180x80xbf16>
    %19 = vector.shape_cast %18 : vector<1x180x80xbf16> to vector<180x80xbf16>
    %cst_14 = arith.constant dense<0.000000e+00> : vector<25x80xf32>
    %20 = tpu.matmul %1, %19, %cst_14 {dimension_numbers = #tpu.dot_dimension_numbers<[1], [0], [0], [1], [0, 0, 1, 1], [], []>} : vector<25x180xbf16>, vector<180x80xbf16>, vector<25x80xf32> -> vector<25x80xf32>
    %21 = vector.extract_strided_slice %20 {offsets = [3, 0], sizes = [21, 80], strides = [1, 1]} : vector<25x80xf32> to vector<21x80xf32>
    %22 = arith.addf %17, %21 : vector<21x80xf32>
    %c4 = arith.constant 4 : index
    %c0_15 = arith.constant 0 : index
    %c0_16 = arith.constant 0 : index
    %23 = vector.load %arg2[%c4, %c0_15, %c0_16] : memref<5x180x80xbf16, #tpu.memory_space<vmem>>, vector<1x180x80xbf16>
    %24 = vector.shape_cast %23 : vector<1x180x80xbf16> to vector<180x80xbf16>
    %cst_17 = arith.constant dense<0.000000e+00> : vector<25x80xf32>
    %25 = tpu.matmul %1, %24, %cst_17 {dimension_numbers = #tpu.dot_dimension_numbers<[1], [0], [0], [1], [0, 0, 1, 1], [], []>} : vector<25x180xbf16>, vector<180x80xbf16>, vector<25x80xf32> -> vector<25x80xf32>
    %26 = vector.extract_strided_slice %25 {offsets = [4, 0], sizes = [21, 80], strides = [1, 1]} : vector<25x80xf32> to vector<21x80xf32>
    %27 = arith.addf %22, %26 : vector<21x80xf32>
    %c0_18 = arith.constant 0 : index
    %c0_19 = arith.constant 0 : index
    %28 = vector.load %arg3[%c0_18, %c0_19] : memref<1x80xf32, #tpu.memory_space<vmem>>, vector<1x80xf32>
    %29 = vector.broadcast %28 : vector<1x80xf32> to vector<21x80xf32>
    %30 = arith.addf %27, %29 : vector<21x80xf32>
    %cst_20 = arith.constant 0.000000e+00 : f32
    %31 = vector.broadcast %cst_20 : f32 to vector<21x80xf32>
    %32 = arith.maximumf %30, %31 : vector<21x80xf32>
    %c0_21 = arith.constant 0 : index
    %c0_22 = arith.constant 0 : index
    %c0_23 = arith.constant 0 : index
    %33 = vector.load %arg4[%c0_21, %c0_22, %c0_23] : memref<1x21x80xf32, #tpu.memory_space<vmem>>, vector<1x21x80xf32>
    %34 = vector.shape_cast %33 : vector<1x21x80xf32> to vector<21x80xf32>
    %35 = vector.shape_cast %32 : vector<21x80xf32> to vector<1x21x80xf32>
    tpu.vector_store %arg4[%c0_21, %c0_22, %c0_23], %35 {strides = array<i32>} : memref<1x21x80xf32, #tpu.memory_space<vmem>>, vector<1x21x80xf32>,
    return
  }
  func.func @transform_0(%arg0: i32) -> (i32, i32, i32) {
    %c0_i32 = arith.constant 0 : i32
    %c0_i32_0 = arith.constant 0 : i32
    %c0_i32_1 = arith.constant 0 : i32
    return %arg0, %c0_i32, %c0_i32_0 : i32, i32, i32
  }
  func.func @transform_1(%arg0: i32) -> (i32, i32, i32) {
    %c0_i32 = arith.constant 0 : i32
    %c0_i32_0 = arith.constant 0 : i32
    %c0_i32_1 = arith.constant 0 : i32
    %c0_i32_2 = arith.constant 0 : i32
    return %c0_i32, %c0_i32_0, %c0_i32_1 : i32, i32, i32
  }
  func.func @transform_2(%arg0: i32) -> (i32, i32) {
    %c0_i32 = arith.constant 0 : i32
    %c0_i32_0 = arith.constant 0 : i32
    %c0_i32_1 = arith.constant 0 : i32
    return %c0_i32, %c0_i32_0 : i32, i32
  }
  func.func @transform_3(%arg0: i32) -> (i32, i32, i32) {
    %c0_i32 = arith.constant 0 : i32
    %c0_i32_0 = arith.constant 0 : i32
    %c0_i32_1 = arith.constant 0 : i32
    return %arg0, %c0_i32, %c0_i32_0 : i32, i32, i32
  }
}

</mosaic_0001>

<llo_original>
// kernel: cnn_forward.2
$region0: #{cnn_forward.2}
  #allocation0 [shape = 'u32[]', space=smem, size = 0x4, offset = 0x4, fixed_abs, tag = 'smem constant byte address 0x4 - core index']
  #allocation1 [shape = 'u32[72,128]{1,0:T(1,128)}', space=vmem, size = 0x9000, scoped, tag = 'internal scratch']
  %s0 = inlined_call_operand.vmem [shape: bf16[2,201,560], index: 0, kind: input, shape index: {}]
  %s1 = inlined_call_operand.vmem [shape: bf16[6,560,60], index: 1, kind: input, shape index: {}]
  %s2 = inlined_call_operand.vmem [shape: f32[1,60], index: 2, kind: input, shape index: {}]
  %s3 = inlined_call_operand.vmem [shape: f32[2,195,60], index: 3, kind: output, shape index: {}]
  %s4 = sld [smem:[#allocation0]]
  $region45: #{cnn_forward.2} parent=0
    _
  %s6 = ssub.s32 1, %s4
  %s7 = scalar_select 0, %s6, %s4
  loop: start=0, step=1, limit=4
  $region2: #{cnn_forward.2} parent=0 // loop_pre_header
    _
  $region3: #{cnn_forward.2} parent=0 // loop_header
    %s9 = sphi 0, %s13
    %p10 = scmp.ge.s32.totalorder %s9, 4
    %s19 = sphi 0, %s21
    %s22 = sphi 0, %s19
    %s23 = sphi 0, %s22
    %s39 = sphi 0, %s23
    %s43 = sphi 0, %s43
    %s45 = sphi 0, %s43
    %s46 = sphi 0, %s45
    %s60 = sphi 0, %s46
    %s64 = sphi 0, %s64
    %s66 = sphi 0, %s64
    %s67 = sphi 0, %s66
    %s81 = sphi 0, %s67
    %s87 = sphi 0, %s89
    %s90 = sphi 0, %s87
    %s91 = sphi 0, %s90
    %s107 = sphi 0, %s91
  $region4: #{cnn_forward.2} parent=0 // loop_header_branch
    %12 = sbr.rel (%p10) target = $region8
  $region5: #{cnn_forward.2} parent=0 // loop_body
    %s14 = ssub.s32 %s9, 1
    %s15 = ssub.s32 %s9, 2
    %s16 = sadd.s32 %s9, 1
    %s17 = ssub.s32 %s9, %s16
    %p18 = scmp.eq.s32.totalorder %s17, 0
    %s20 = sadd.s32 %s19, 1
    %s21 = scalar_select %p18, %s19, %s20
    %p24 = pneg %p18
    %p25 = scmp.eq.s32.totalorder %s9, 1
    %p26 = por %p24, %p25
    %p27 = scmp.ne.s32.totalorder %s19, %s22
    %p28 = scmp.eq.s32.totalorder %s9, 0
    %p29 = por %p27, %p28
    %p30 = scmp.ne.s32.totalorder %s19, %s22
    %p31 = scmp.eq.s32.totalorder %s14, 1
    %p32 = por %p30, %p31
    %p33 = scmp.ne.s32.totalorder %s22, %s23
    %p34 = scmp.eq.s32.totalorder %s14, 0
    %p35 = por %p33, %p34
    %p36 = scmp.ne.s32.totalorder %s22, %s23
    %p37 = scmp.eq.s32.totalorder %s15, 1
    %p38 = por %p36, %p37
    %p40 = scmp.ne.s32.totalorder %s23, %s39
    %p41 = scmp.eq.s32.totalorder %s15, 0
    %p42 = por %p40, %p41
    %s44 = sadd.s32 %s43, 1
    %p47 = scmp.eq.s32.totalorder %s9, 1
    %p48 = scmp.ne.s32.totalorder %s43, %s45
    %p49 = scmp.eq.s32.totalorder %s9, 0
    %p50 = por %p48, %p49
    %p51 = scmp.ne.s32.totalorder %s43, %s45
    %p52 = scmp.eq.s32.totalorder %s14, 1
    %p53 = por %p51, %p52
    %p54 = scmp.ne.s32.totalorder %s45, %s46
    %p55 = scmp.eq.s32.totalorder %s14, 0
    %p56 = por %p54, %p55
    %p57 = scmp.ne.s32.totalorder %s45, %s46
    %p58 = scmp.eq.s32.totalorder %s15, 1
    %p59 = por %p57, %p58
    %p61 = scmp.ne.s32.totalorder %s46, %s60
    %p62 = scmp.eq.s32.totalorder %s15, 0
    %p63 = por %p61, %p62
    %s65 = sadd.s32 %s64, 1
    %p68 = scmp.eq.s32.totalorder %s9, 1
    %p69 = scmp.ne.s32.totalorder %s64, %s66
    %p70 = scmp.eq.s32.totalorder %s9, 0
    %p71 = por %p69, %p70
    %p72 = scmp.ne.s32.totalorder %s64, %s66
    %p73 = scmp.eq.s32.totalorder %s14, 1
    %p74 = por %p72, %p73
    %p75 = scmp.ne.s32.totalorder %s66, %s67
    %p76 = scmp.eq.s32.totalorder %s14, 0
    %p77 = por %p75, %p76
    %p78 = scmp.ne.s32.totalorder %s66, %s67
    %p79 = scmp.eq.s32.totalorder %s15, 1
    %p80 = por %p78, %p79
    %p82 = scmp.ne.s32.totalorder %s67, %s81
    %p83 = scmp.eq.s32.totalorder %s15, 0
    %p84 = por %p82, %p83
    %s85 = ssub.s32 %s9, %s16
    %p86 = scmp.eq.s32.totalorder %s85, 0
    %s88 = sadd.s32 %s87, 1
    %s89 = scalar_select %p86, %s87, %s88
    %p92 = pneg %p86
    %p93 = scmp.eq.s32.totalorder %s9, 1
    %p94 = por %p92, %p93
    %p95 = scmp.ne.s32.totalorder %s87, %s90
    %p96 = scmp.eq.s32.totalorder %s9, 0
    %p97 = por %p95, %p96
    %p98 = scmp.ne.s32.totalorder %s87, %s90
    %p99 = scmp.eq.s32.totalorder %s14, 1
    %p100 = por %p98, %p99
    %p101 = scmp.ne.s32.totalorder %s90, %s91
    %p102 = scmp.eq.s32.totalorder %s14, 0
    %p103 = por %p101, %p102
    %p104 = scmp.ne.s32.totalorder %s90, %s91
    %p105 = scmp.eq.s32.totalorder %s15, 1
    %p106 = por %p104, %p105
    %p108 = scmp.ne.s32.totalorder %s91, %s107
    %p109 = scmp.eq.s32.totalorder %s15, 0
    %p110 = por %p108, %p109
    %p111 = scmp.le.s32.totalorder 1, %s9
    %p112 = scmp.lt.s32.totalorder %s9, 3
    %p113 = pnand %p111, %p112
    %p114 = pneg %p113
    // Predicated region
    $region9: #{cnn_forward.2} parent=5 // pred_check
      _
    $region10: #{cnn_forward.2} parent=5 // pred_check_branch
      %116 = sbr.rel (%p113) target = $region12
    $region11: #{cnn_forward.2} parent=5 // pred_region
      %s117 = ssub.s32 %s9, 1
      // Predicated region
      $region13: #{cnn_forward.2} parent=11 // pred_check
        %p118 = pneg %p56
      $region14: #{cnn_forward.2} parent=11 // pred_check_branch
        %120 = sbr.rel (%p118) target = $region16
      $region15: #{cnn_forward.2} parent=11 // pred_region
        _
      $region16: #{cnn_forward.2} parent=11 // pred_fallthru
        _
      // Predicated region
      $region17: #{cnn_forward.2} parent=11 // pred_check
        %p121 = pneg %p77
      $region18: #{cnn_forward.2} parent=11 // pred_check_branch
        %123 = sbr.rel (%p121) target = $region20
      $region19: #{cnn_forward.2} parent=11 // pred_region
        _
      $region20: #{cnn_forward.2} parent=11 // pred_fallthru
        _
    $region12: #{cnn_forward.2} parent=5 // pred_fallthru
      _
    %p124 = scmp.lt.s32.totalorder %s9, 2
    // Predicated region
    $region21: #{cnn_forward.2} parent=5 // pred_check
      %p125 = pneg %p124
    $region22: #{cnn_forward.2} parent=5 // pred_check_branch
      %127 = sbr.rel (%p125) target = $region24
    $region23: #{cnn_forward.2} parent=5 // pred_region
      // Predicated region
      $region25: #{cnn_forward.2} parent=23 // pred_check
        %p128 = pneg %p29
      $region26: #{cnn_forward.2} parent=23 // pred_check_branch
        %130 = sbr.rel (%p128) target = $region28
      $region27: #{cnn_forward.2} parent=23 // pred_region
        %p131 = scmp.lt.s32.totalorder %s9, 1
        %s132 = scalar_select %p131, %s9, 1
        %s133 = smul.addr %s132, 130
        %s134 = smul.addr %s133, 4
        %s135 = scalar_lea.vmem %s0, %s134
      $region28: #{cnn_forward.2} parent=23 // pred_fallthru
        _
    $region24: #{cnn_forward.2} parent=5 // pred_fallthru
      _
    %p136 = scmp.le.s32.totalorder 1, %s9
    %p137 = scmp.lt.s32.totalorder %s9, 3
    %p138 = pnand %p136, %p137
    %p139 = pneg %p138
    // Predicated region
    $region29: #{cnn_forward.2} parent=5 // pred_check
      _
    $region30: #{cnn_forward.2} parent=5 // pred_check_branch
      %141 = sbr.rel (%p138) target = $region32
    $region31: #{cnn_forward.2} parent=5 // pred_region
      %s142 = ssub.s32 %s9, 1
      %p143 = scmp.lt.s32.totalorder %s14, 1
      %s144 = scalar_select %p143, %s14, 1
      %s145 = smul.addr %s144, 130
      %s146 = smul.addr %s145, 4
      %s147 = scalar_lea.vmem %s0, %s146
      %p148 = pneg %p35
      %p149 = pneg %p32
      %p150 = pneg %p56
      %p151 = pneg %p53
      %p152 = pneg %p77
      %p153 = pneg %p74
      %p154 = pneg %p103
      %p155 = pneg %p100
      %p156 = scmp.lt.s32.totalorder %s14, 1
      %s157 = scalar_select %p156, %s14, 1
      %s158 = smul.addr %s157, 25
      %s159 = smul.addr %s158, 8
      %s160 = scalar_lea.vmem %s3, %s159
      %p161 = scmp.lt.s32.totalorder %s14, 1
      %s162 = scalar_select %p161, %s14, 1
      %s163 = smul.addr %s162, 130
      %s164 = smul.addr %s163, 4
      %s165 = scalar_lea.vmem %s0, %s164
      %p166 = scmp.lt.s32.totalorder %s14, 1
      %s167 = scalar_select %p166, %s14, 1
      %s168 = smul.addr %s167, 25
      %s169 = smul.addr %s168, 8
      %s170 = scalar_lea.vmem %s3, %s169
      %v172 = vld [vmem:[%s165] sm:$0xff]
      %v173 = vld [vmem:[%s165 + $0x8] sm:$0xff]
      %v174 = vld [vmem:[%s165 + $0x10] sm:$0xf]
      %v175 = vld [vmem:[%s165 + $0x14] sm:$0xff]
      %v176 = vld [vmem:[%s165 + $0x1c] sm:$0xff]
      %v177 = vld [vmem:[%s165 + $0x24] sm:$0xf]
      %v178 = vld [vmem:[%s165 + $0x28] sm:$0xff]
      %v179 = vld [vmem:[%s165 + $0x30] sm:$0xff]
      %v180 = vld [vmem:[%s165 + $0x38] sm:$0xf]
      %v181 = vld [vmem:[%s165 + $0x3c] sm:$0xff]
      %v182 = vld [vmem:[%s165 + $0x44] sm:$0xff]
      %v183 = vld [vmem:[%s165 + $0x4c] sm:$0xf]
      %v184 = vld [vmem:[%s165 + $0x50] sm:$0xff]
      %v185 = vld [vmem:[%s165 + $0x58] sm:$0xff]
      %v186 = vld [vmem:[%s165 + $0x60] sm:$0xf]
      %v187 = vld [vmem:[%s165 + $0x64] sm:$0xff]
      %v188 = vld [vmem:[%s165 + $0x6c] sm:$0xff]
      %v189 = vld [vmem:[%s165 + $0x74] sm:$0xf]
      %v190 = vld [vmem:[%s165 + $0x78] sm:$0xff]
      %v191 = vld [vmem:[%s165 + $0x80] sm:$0xff]
      %v192 = vld [vmem:[%s165 + $0x88] sm:$0xf]
      %v193 = vld [vmem:[%s165 + $0x8c] sm:$0xff]
      %v194 = vld [vmem:[%s165 + $0x94] sm:$0xff]
      %v195 = vld [vmem:[%s165 + $0x9c] sm:$0xf]
      %v196 = vld [vmem:[%s165 + $0xa0] sm:$0xff]
      %v197 = vld [vmem:[%s165 + $0xa8] sm:$0xff]
      %v198 = vld [vmem:[%s165 + $0xb0] sm:$0xf]
      %v199 = vld [vmem:[%s165 + $0xb4] sm:$0xff]
      %v200 = vld [vmem:[%s165 + $0xbc] sm:$0xff]
      %v201 = vld [vmem:[%s165 + $0xc4] sm:$0xf]
      %v202 = vld [vmem:[%s165 + $0xc8] sm:$0xff]
      %v203 = vld [vmem:[%s165 + $0xd0] sm:$0xff]
      %v204 = vld [vmem:[%s165 + $0xd8] sm:$0xf]
      %v205 = vld [vmem:[%s165 + $0xdc] sm:$0xff]
      %v206 = vld [vmem:[%s165 + $0xe4] sm:$0xff]
      %v207 = vld [vmem:[%s165 + $0xec] sm:$0xf]
      %v208 = vld [vmem:[%s165 + $0xf0] sm:$0xff]
      %v209 = vld [vmem:[%s165 + $0xf8] sm:$0xff]
      %v210 = vld [vmem:[%s165 + $0x100] sm:$0xf]
      %v211 = vld [vmem:[%s165 + $0x104] sm:$0xff]
      %v212 = vld [vmem:[%s165 + $0x10c] sm:$0xff]
      %v213 = vld [vmem:[%s165 + $0x114] sm:$0xf]
      %v214 = vld [vmem:[%s165 + $0x118] sm:$0xff]
      %v215 = vld [vmem:[%s165 + $0x120] sm:$0xff]
      %v216 = vld [vmem:[%s165 + $0x128] sm:$0xf]
      %v217 = vld [vmem:[%s165 + $0x12c] sm:$0xff]
      %v218 = vld [vmem:[%s165 + $0x134] sm:$0xff]
      %v219 = vld [vmem:[%s165 + $0x13c] sm:$0xf]
      %v220 = vld [vmem:[%s165 + $0x140] sm:$0xff]
      %v221 = vld [vmem:[%s165 + $0x148] sm:$0xff]
      %v222 = vld [vmem:[%s165 + $0x150] sm:$0xf]
      %v223 = vld [vmem:[%s165 + $0x154] sm:$0xff]
      %v224 = vld [vmem:[%s165 + $0x15c] sm:$0xff]
      %v225 = vld [vmem:[%s165 + $0x164] sm:$0xf]
      %v226 = vld [vmem:[%s165 + $0x168] sm:$0xff]
      %v227 = vld [vmem:[%s165 + $0x170] sm:$0xff]
      %v228 = vld [vmem:[%s165 + $0x178] sm:$0xf]
      %v229 = vld [vmem:[%s165 + $0x17c] sm:$0xff]
      %v230 = vld [vmem:[%s165 + $0x184] sm:$0xff]
      %v231 = vld [vmem:[%s165 + $0x18c] sm:$0xf]
      %v232 = vld [vmem:[%s165 + $0x190] sm:$0xff]
      %v233 = vld [vmem:[%s165 + $0x198] sm:$0xff]
      %v234 = vld [vmem:[%s165 + $0x1a0] sm:$0xf]
      %v235 = vld [vmem:[%s165 + $0x1a4] sm:$0xff]
      %v236 = vld [vmem:[%s165 + $0x1ac] sm:$0xff]
      %v237 = vld [vmem:[%s165 + $0x1b4] sm:$0xf]
      %v238 = vld [vmem:[%s165 + $0x1b8] sm:$0xff]
      %v239 = vld [vmem:[%s165 + $0x1c0] sm:$0xff]
      %v240 = vld [vmem:[%s165 + $0x1c8] sm:$0xf]
      %v241 = vld [vmem:[%s165 + $0x1cc] sm:$0xff]
      %v242 = vld [vmem:[%s165 + $0x1d4] sm:$0xff]
      %v243 = vld [vmem:[%s165 + $0x1dc] sm:$0xf]
      %v244 = vld [vmem:[%s165 + $0x1e0] sm:$0xff]
      %v245 = vld [vmem:[%s165 + $0x1e8] sm:$0xff]
      %v246 = vld [vmem:[%s165 + $0x1f0] sm:$0xf]
      %v247 = vld [vmem:[%s165 + $0x1f4] sm:$0x11]
      %v248 = vld [vmem:[%s165 + $0x1fc] sm:$0x11]
      %v249 = vld [vmem:[%s165 + $0x204] sm:$0x1]
      %v250 = vld [vmem:[%s1] sm:$0xf]
      %v251 = vld [vmem:[%s1 + $0x4] sm:$0xf]
      %v252 = vld [vmem:[%s1 + $0x8] sm:$0xf]
      %v253 = vld [vmem:[%s1 + $0xc] sm:$0xf]
      %v254 = vld [vmem:[%s1 + $0x10] sm:$0xf]
      %v255 = vld [vmem:[%s1 + $0x14] sm:$0xf]
      %v256 = vld [vmem:[%s1 + $0x18] sm:$0xf]
      %v257 = vld [vmem:[%s1 + $0x1c] sm:$0xf]
      %v258 = vld [vmem:[%s1 + $0x20] sm:$0xf]
      %v259 = vld [vmem:[%s1 + $0x24] sm:$0xf]
      %v260 = vld [vmem:[%s1 + $0x28] sm:$0xf]
      %v261 = vld [vmem:[%s1 + $0x2c] sm:$0xf]
      %v262 = vld [vmem:[%s1 + $0x30] sm:$0xf]
      %v263 = vld [vmem:[%s1 + $0x34] sm:$0xf]
      %v264 = vld [vmem:[%s1 + $0x38] sm:$0xf]
      %v265 = vld [vmem:[%s1 + $0x3c] sm:$0xf]
      %v266 = vld [vmem:[%s1 + $0x40] sm:$0xf]
      %v267 = vld [vmem:[%s1 + $0x44] sm:$0xf]
      %v268 = vld [vmem:[%s1 + $0x48] sm:$0xf]
      %v269 = vld [vmem:[%s1 + $0x4c] sm:$0xf]
      %v270 = vld [vmem:[%s1 + $0x50] sm:$0xf]
      %v271 = vld [vmem:[%s1 + $0x54] sm:$0xf]
      %v272 = vld [vmem:[%s1 + $0x58] sm:$0xf]
      %v273 = vld [vmem:[%s1 + $0x5c] sm:$0xf]
      %v274 = vld [vmem:[%s1 + $0x60] sm:$0xf]
      %v275 = vld [vmem:[%s1 + $0x64] sm:$0xf]
      %v276 = vld [vmem:[%s1 + $0x68] sm:$0xf]
      %v277 = vld [vmem:[%s1 + $0x6c] sm:$0xf]
      %v278 = vld [vmem:[%s1 + $0x70] sm:$0xf]
      %v279 = vld [vmem:[%s1 + $0x74] sm:$0xf]
      %v280 = vld [vmem:[%s1 + $0x78] sm:$0xf]
      %v281 = vld [vmem:[%s1 + $0x7c] sm:$0xf]
      %v282 = vld [vmem:[%s1 + $0x80] sm:$0xf]
      %v283 = vld [vmem:[%s1 + $0x84] sm:$0xf]
      %v284 = vld [vmem:[%s1 + $0x88] sm:$0xf]
      %v285 = vld [vmem:[%s1 + $0x8c] sm:$0xf]
      %v286 = vld [vmem:[%s1 + $0x90] sm:$0xf]
      %v287 = vld [vmem:[%s1 + $0x94] sm:$0xf]
      %v288 = vld [vmem:[%s1 + $0x98] sm:$0xf]
      %v289 = vld [vmem:[%s1 + $0x9c] sm:$0xf]
      %v290 = vld [vmem:[%s1 + $0xa0] sm:$0xf]
      %v291 = vld [vmem:[%s1 + $0xa4] sm:$0xf]
      %v292 = vld [vmem:[%s1 + $0xa8] sm:$0xf]
      %v293 = vld [vmem:[%s1 + $0xac] sm:$0xf]
      %v294 = vld [vmem:[%s1 + $0xb0] sm:$0xf]
      %v295 = vld [vmem:[%s1 + $0xb4] sm:$0xf]
      %v296 = vld [vmem:[%s1 + $0xb8] sm:$0xf]
      %v297 = vld [vmem:[%s1 + $0xbc] sm:$0xf]
      %v298 = vld [vmem:[%s1 + $0xc0] sm:$0xf]
      %v299 = vld [vmem:[%s1 + $0xc4] sm:$0xf]
      %v300 = vld [vmem:[%s1 + $0xc8] sm:$0xf]
      %v301 = vld [vmem:[%s1 + $0xcc] sm:$0xf]
      %v302 = vld [vmem:[%s1 + $0xd0] sm:$0xf]
      %v303 = vld [vmem:[%s1 + $0xd4] sm:$0xf]
      %v304 = vld [vmem:[%s1 + $0xd8] sm:$0xf]
      %v305 = vld [vmem:[%s1 + $0xdc] sm:$0xf]
      %v306 = vld [vmem:[%s1 + $0xe0] sm:$0xf]
      %v307 = vld [vmem:[%s1 + $0xe4] sm:$0xf]
      %v308 = vld [vmem:[%s1 + $0xe8] sm:$0xf]
      %v309 = vld [vmem:[%s1 + $0xec] sm:$0xf]
      %v310 = vld [vmem:[%s1 + $0xf0] sm:$0xf]
      %v311 = vld [vmem:[%s1 + $0xf4] sm:$0xf]
      %v312 = vld [vmem:[%s1 + $0xf8] sm:$0xf]
      %v313 = vld [vmem:[%s1 + $0xfc] sm:$0xf]
      %v314 = vld [vmem:[%s1 + $0x100] sm:$0xf]
      %v315 = vld [vmem:[%s1 + $0x104] sm:$0xf]
      %v316 = vld [vmem:[%s1 + $0x108] sm:$0xf]
      %v317 = vld [vmem:[%s1 + $0x10c] sm:$0xf]
      %v318 = vld [vmem:[%s1 + $0x110] sm:$0xf]
      %v319 = vld [vmem:[%s1 + $0x114] sm:$0xf]
      %v398 = vunpack.c.l.b16 %v172
      %v399 = vunpack.c.h.b16 %v172
      %v400 = vunpack.c.l.b16 %v173
      %v401 = vunpack.c.h.b16 %v173
      %v402 = vunpack.c.l.b16 %v174
      %v403 = vunpack.c.l.b16 %v175
      %v404 = vunpack.c.h.b16 %v175
      %v405 = vunpack.c.l.b16 %v176
      %v406 = vunpack.c.h.b16 %v176
      %v407 = vunpack.c.l.b16 %v177
      %v408 = vunpack.c.l.b16 %v178
      %v409 = vunpack.c.h.b16 %v178
      %v410 = vunpack.c.l.b16 %v179
      %v411 = vunpack.c.h.b16 %v179
      %v412 = vunpack.c.l.b16 %v180
      %v413 = vunpack.c.l.b16 %v181
      %v414 = vunpack.c.h.b16 %v181
      %v415 = vunpack.c.l.b16 %v182
      %v416 = vunpack.c.h.b16 %v182
      %v417 = vunpack.c.l.b16 %v183
      %v418 = vunpack.c.l.b16 %v184
      %v419 = vunpack.c.h.b16 %v184
      %v420 = vunpack.c.l.b16 %v185
      %v421 = vunpack.c.h.b16 %v185
      %v422 = vunpack.c.l.b16 %v186
      %v423 = vunpack.c.l.b16 %v187
      %v424 = vunpack.c.h.b16 %v187
      %v425 = vunpack.c.l.b16 %v188
      %v426 = vunpack.c.h.b16 %v188
      %v427 = vunpack.c.l.b16 %v189
      %v428 = vunpack.c.l.b16 %v190
      %v429 = vunpack.c.h.b16 %v190
      %v430 = vunpack.c.l.b16 %v191
      %v431 = vunpack.c.h.b16 %v191
      %v432 = vunpack.c.l.b16 %v192
      %v433 = vunpack.c.l.b16 %v193
      %v434 = vunpack.c.h.b16 %v193
      %v435 = vunpack.c.l.b16 %v194
      %v436 = vunpack.c.h.b16 %v194
      %v437 = vunpack.c.l.b16 %v195
      %v438 = vunpack.c.l.b16 %v196
      %v439 = vunpack.c.h.b16 %v196
      %v440 = vunpack.c.l.b16 %v197
      %v441 = vunpack.c.h.b16 %v197
      %v442 = vunpack.c.l.b16 %v198
      %v443 = vunpack.c.l.b16 %v199
      %v444 = vunpack.c.h.b16 %v199
      %v445 = vunpack.c.l.b16 %v200
      %v446 = vunpack.c.h.b16 %v200
      %v447 = vunpack.c.l.b16 %v201
      %v448 = vunpack.c.l.b16 %v202
      %v449 = vunpack.c.h.b16 %v202
      %v450 = vunpack.c.l.b16 %v203
      %v451 = vunpack.c.h.b16 %v203
      %v452 = vunpack.c.l.b16 %v204
      %v453 = vunpack.c.l.b16 %v205
      %v454 = vunpack.c.h.b16 %v205
      %v455 = vunpack.c.l.b16 %v206
      %v456 = vunpack.c.h.b16 %v206
      %v457 = vunpack.c.l.b16 %v207
      %v458 = vunpack.c.l.b16 %v208
      %v459 = vunpack.c.h.b16 %v208
      %v460 = vunpack.c.l.b16 %v209
      %v461 = vunpack.c.h.b16 %v209
      %v462 = vunpack.c.l.b16 %v210
      %v463 = vunpack.c.l.b16 %v211
      %v464 = vunpack.c.h.b16 %v211
      %v465 = vunpack.c.l.b16 %v212
      %v466 = vunpack.c.h.b16 %v212
      %v467 = vunpack.c.l.b16 %v213
      %v468 = vunpack.c.l.b16 %v214
      %v469 = vunpack.c.h.b16 %v214
      %v470 = vunpack.c.l.b16 %v215
      %v471 = vunpack.c.h.b16 %v215
      %v472 = vunpack.c.l.b16 %v216
      %v473 = vunpack.c.l.b16 %v217
      %v474 = vunpack.c.h.b16 %v217
      %v475 = vunpack.c.l.b16 %v218
      %v476 = vunpack.c.h.b16 %v218
      %v477 = vunpack.c.l.b16 %v219
      %v478 = vunpack.c.l.b16 %v220
      %v479 = vunpack.c.h.b16 %v220
      %v480 = vunpack.c.l.b16 %v221
      %v481 = vunpack.c.h.b16 %v221
      %v482 = vunpack.c.l.b16 %v222
      %v483 = vunpack.c.l.b16 %v223
      %v484 = vunpack.c.h.b16 %v223
      %v485 = vunpack.c.l.b16 %v224
      %v486 = vunpack.c.h.b16 %v224
      %v487 = vunpack.c.l.b16 %v225
      %v488 = vunpack.c.l.b16 %v226
      %v489 = vunpack.c.h.b16 %v226
      %v490 = vunpack.c.l.b16 %v227
      %v491 = vunpack.c.h.b16 %v227
      %v492 = vunpack.c.l.b16 %v228
      %v493 = vunpack.c.l.b16 %v229
      %v494 = vunpack.c.h.b16 %v229
      %v495 = vunpack.c.l.b16 %v230
      %v496 = vunpack.c.h.b16 %v230
      %v497 = vunpack.c.l.b16 %v231
      %v498 = vunpack.c.l.b16 %v232
      %v499 = vunpack.c.h.b16 %v232
      %v500 = vunpack.c.l.b16 %v233
      %v501 = vunpack.c.h.b16 %v233
      %v502 = vunpack.c.l.b16 %v234
      %v503 = vunpack.c.l.b16 %v235
      %v504 = vunpack.c.h.b16 %v235
      %v505 = vunpack.c.l.b16 %v236
      %v506 = vunpack.c.h.b16 %v236
      %v507 = vunpack.c.l.b16 %v237
      %v508 = vunpack.c.l.b16 %v238
      %v509 = vunpack.c.h.b16 %v238
      %v510 = vunpack.c.l.b16 %v239
      %v511 = vunpack.c.h.b16 %v239
      %v512 = vunpack.c.l.b16 %v240
      %v513 = vunpack.c.l.b16 %v241
      %v514 = vunpack.c.h.b16 %v241
      %v515 = vunpack.c.l.b16 %v242
      %v516 = vunpack.c.h.b16 %v242
      %v517 = vunpack.c.l.b16 %v243
      %v518 = vunpack.c.l.b16 %v244
      %v519 = vunpack.c.h.b16 %v244
      %v520 = vunpack.c.l.b16 %v245
      %v521 = vunpack.c.h.b16 %v245
      %v522 = vunpack.c.l.b16 %v246
      %v523 = vunpack.c.l.b16 %v247
      %v524 = vunpack.c.h.b16 %v247
      %v525 = vunpack.c.l.b16 %v248
      %v526 = vunpack.c.h.b16 %v248
      %v527 = vunpack.c.l.b16 %v249
      %v528 = vpack.c.b16 %v403, %v398
      %v529 = vpack.c.b16 %v404, %v399
      %v530 = vpack.c.b16 %v405, %v400
      %v531 = vpack.c.b16 %v406, %v401
      %v532 = vpack.c.b16 %v407, %v402
      %v533 = vpack.c.b16 %v413, %v408
      %v534 = vpack.c.b16 %v414, %v409
      %v535 = vpack.c.b16 %v415, %v410
      %v536 = vpack.c.b16 %v416, %v411
      %v537 = vpack.c.b16 %v417, %v412
      %v538 = vpack.c.b16 %v423, %v418
      %v539 = vpack.c.b16 %v424, %v419
      %v540 = vpack.c.b16 %v425, %v420
      %v541 = vpack.c.b16 %v426, %v421
      %v542 = vpack.c.b16 %v427, %v422
      %v543 = vpack.c.b16 %v433, %v428
      %v544 = vpack.c.b16 %v434, %v429
      %v545 = vpack.c.b16 %v435, %v430
      %v546 = vpack.c.b16 %v436, %v431
      %v547 = vpack.c.b16 %v437, %v432
      %v548 = vpack.c.b16 %v443, %v438
      %v549 = vpack.c.b16 %v444, %v439
      %v550 = vpack.c.b16 %v445, %v440
      %v551 = vpack.c.b16 %v446, %v441
      %v552 = vpack.c.b16 %v447, %v442
      %v553 = vpack.c.b16 %v453, %v448
      %v554 = vpack.c.b16 %v454, %v449
      %v555 = vpack.c.b16 %v455, %v450
      %v556 = vpack.c.b16 %v456, %v451
      %v557 = vpack.c.b16 %v457, %v452
      %v558 = vpack.c.b16 %v463, %v458
      %v559 = vpack.c.b16 %v464, %v459
      %v560 = vpack.c.b16 %v465, %v460
      %v561 = vpack.c.b16 %v466, %v461
      %v562 = vpack.c.b16 %v467, %v462
      %v563 = vpack.c.b16 %v473, %v468
      %v564 = vpack.c.b16 %v474, %v469
      %v565 = vpack.c.b16 %v475, %v470
      %v566 = vpack.c.b16 %v476, %v471
      %v567 = vpack.c.b16 %v477, %v472
      %v568 = vpack.c.b16 %v483, %v478
      %v569 = vpack.c.b16 %v484, %v479
      %v570 = vpack.c.b16 %v485, %v480
      %v571 = vpack.c.b16 %v486, %v481
      %v572 = vpack.c.b16 %v487, %v482
      %v573 = vpack.c.b16 %v493, %v488
      %v574 = vpack.c.b16 %v494, %v489
      %v575 = vpack.c.b16 %v495, %v490
      %v576 = vpack.c.b16 %v496, %v491
      %v577 = vpack.c.b16 %v497, %v492
      %v578 = vpack.c.b16 %v503, %v498
      %v579 = vpack.c.b16 %v504, %v499
      %v580 = vpack.c.b16 %v505, %v500
      %v581 = vpack.c.b16 %v506, %v501
      %v582 = vpack.c.b16 %v507, %v502
      %v583 = vpack.c.b16 %v513, %v508
      %v584 = vpack.c.b16 %v514, %v509
      %v585 = vpack.c.b16 %v515, %v510
      %v586 = vpack.c.b16 %v516, %v511
      %v587 = vpack.c.b16 %v517, %v512
      %v588 = vpack.c.b16 %v523, %v518
      %v589 = vpack.c.b16 %v524, %v519
      %v590 = vpack.c.b16 %v525, %v520
      %v591 = vpack.c.b16 %v526, %v521
      %v592 = vpack.c.b16 %v527, %v522
      %v715 = vunpack.c.l.b16 %v250
      %v716 = vunpack.c.l.b16 %v251
      %v717 = vunpack.c.l.b16 %v252
      %v718 = vunpack.c.l.b16 %v253
      %v719 = vunpack.c.l.b16 %v254
      %v720 = vunpack.c.l.b16 %v255
      %v721 = vunpack.c.l.b16 %v256
      %v722 = vunpack.c.l.b16 %v257
      %v723 = vunpack.c.l.b16 %v258
      %v724 = vunpack.c.l.b16 %v259
      %v725 = vunpack.c.l.b16 %v260
      %v726 = vunpack.c.l.b16 %v261
      %v727 = vunpack.c.l.b16 %v262
      %v728 = vunpack.c.l.b16 %v263
      %v729 = vunpack.c.l.b16 %v264
      %v730 = vunpack.c.l.b16 %v265
      %v731 = vunpack.c.l.b16 %v266
      %v732 = vunpack.c.l.b16 %v267
      %v733 = vunpack.c.l.b16 %v268
      %v734 = vunpack.c.l.b16 %v269
      %v735 = vunpack.c.l.b16 %v270
      %v736 = vunpack.c.l.b16 %v271
      %v737 = vunpack.c.l.b16 %v272
      %v738 = vunpack.c.l.b16 %v273
      %v739 = vunpack.c.l.b16 %v274
      %v740 = vunpack.c.l.b16 %v275
      %v741 = vunpack.c.l.b16 %v276
      %v742 = vunpack.c.l.b16 %v277
      %v743 = vunpack.c.l.b16 %v278
      %v744 = vunpack.c.l.b16 %v279
      %v745 = vunpack.c.l.b16 %v280
      %v746 = vunpack.c.l.b16 %v281
      %v747 = vunpack.c.l.b16 %v282
      %v748 = vunpack.c.l.b16 %v283
      %v749 = vunpack.c.l.b16 %v284
      %v750 = vunpack.c.l.b16 %v285
      %v751 = vunpack.c.l.b16 %v286
      %v752 = vunpack.c.l.b16 %v287
      %v753 = vunpack.c.l.b16 %v288
      %v754 = vunpack.c.l.b16 %v289
      %v755 = vunpack.c.l.b16 %v290
      %v756 = vunpack.c.l.b16 %v291
      %v757 = vunpack.c.l.b16 %v292
      %v758 = vunpack.c.l.b16 %v293
      %v759 = vunpack.c.l.b16 %v294
      %v760 = vunpack.c.l.b16 %v295
      %v761 = vunpack.c.l.b16 %v296
      %v762 = vunpack.c.l.b16 %v297
      %v763 = vunpack.c.l.b16 %v298
      %v764 = vunpack.c.l.b16 %v299
      %v765 = vunpack.c.l.b16 %v300
      %v766 = vunpack.c.l.b16 %v301
      %v767 = vunpack.c.l.b16 %v302
      %v768 = vunpack.c.l.b16 %v303
      %v769 = vunpack.c.l.b16 %v304
      %v770 = vunpack.c.l.b16 %v305
      %v771 = vunpack.c.l.b16 %v306
      %v772 = vunpack.c.l.b16 %v307
      %v773 = vunpack.c.l.b16 %v308
      %v774 = vunpack.c.l.b16 %v309
      %v775 = vunpack.c.l.b16 %v310
      %v776 = vunpack.c.l.b16 %v311
      %v777 = vunpack.c.l.b16 %v312
      %v778 = vunpack.c.l.b16 %v313
      %v779 = vunpack.c.l.b16 %v314
      %v780 = vunpack.c.l.b16 %v315
      %v781 = vunpack.c.l.b16 %v316
      %v782 = vunpack.c.l.b16 %v317
      %v783 = vunpack.c.l.b16 %v318
      %v784 = vunpack.c.l.b16 %v319
      %v785 = vpack.c.b16 %v716, %v715
      %v786 = vpack.c.b16 %v718, %v717
      %v787 = vpack.c.b16 %v720, %v719
      %v788 = vpack.c.b16 %v722, %v721
      %v789 = vpack.c.b16 %v724, %v723
      %v790 = vpack.c.b16 %v726, %v725
      %v791 = vpack.c.b16 %v728, %v727
      %v792 = vpack.c.b16 %v730, %v729
      %v793 = vpack.c.b16 %v732, %v731
      %v794 = vpack.c.b16 %v734, %v733
      %v795 = vpack.c.b16 %v736, %v735
      %v796 = vpack.c.b16 %v738, %v737
      %v797 = vpack.c.b16 %v740, %v739
      %v798 = vpack.c.b16 %v742, %v741
      %v799 = vpack.c.b16 %v744, %v743
      %v800 = vpack.c.b16 %v746, %v745
      %v801 = vpack.c.b16 %v748, %v747
      %v802 = vpack.c.b16 %v750, %v749
      %v803 = vpack.c.b16 %v752, %v751
      %v804 = vpack.c.b16 %v754, %v753
      %v805 = vpack.c.b16 %v756, %v755
      %v806 = vpack.c.b16 %v758, %v757
      %v807 = vpack.c.b16 %v760, %v759
      %v808 = vpack.c.b16 %v762, %v761
      %v809 = vpack.c.b16 %v764, %v763
      %v810 = vpack.c.b16 %v766, %v765
      %v811 = vpack.c.b16 %v768, %v767
      %v812 = vpack.c.b16 %v770, %v769
      %v813 = vpack.c.b16 %v772, %v771
      %v814 = vpack.c.b16 %v774, %v773
      %v815 = vpack.c.b16 %v776, %v775
      %v816 = vpack.c.b16 %v778, %v777
      %v817 = vpack.c.b16 %v780, %v779
      %v818 = vpack.c.b16 %v782, %v781
      %v819 = vpack.c.b16 %v784, %v783
      %vm855 = vcmask 392192
      %v857 = vsel %vm855, %v532, 0
      %v860 = vsel %vm855, %v537, 0
      %v863 = vsel %vm855, %v542, 0
      %v866 = vsel %vm855, %v547, 0
      %v869 = vsel %vm855, %v552, 0
      %v872 = vsel %vm855, %v557, 0
      %v875 = vsel %vm855, %v562, 0
      %v878 = vsel %vm855, %v567, 0
      %v881 = vsel %vm855, %v572, 0
      %v884 = vsel %vm855, %v577, 0
      %v887 = vsel %vm855, %v582, 0
      %v890 = vsel %vm855, %v587, 0
      %v893 = vsel %vm855, %v592, 0
      %895 = vmatpush.bf16.msra.mxu0 %v792
      %896 = vmatpush.bf16.msra.mxu0 %v791
      %897 = vmatpush.bf16.msra.mxu0 %v790
      %898 = vmatpush.bf16.msra.mxu0 %v789
      %899 = vmatpush.bf16.msra.mxu0 %v788
      %900 = vmatpush.bf16.msra.mxu0 %v787
      %901 = vmatpush.bf16.msra.mxu0 %v786
      %902 = vmatpush.bf16.msra.mxu0 %v785
      %903 = vmatmul.bf16.gmra.mxu0 %v528
      %v904 = vpop.f32.mrf.mxu0
      %v905 = vadd.f32 0.0, %v904
      %v906 = vpop.f32.mrf.mxu0
      %v907 = vadd.f32 0.0, %v906
      %908 = vmatmul.bf16.gmra.mxu0 %v533
      %v909 = vpop.f32.mrf.mxu0
      %v910 = vadd.f32 0.0, %v909
      %v911 = vpop.f32.mrf.mxu0
      %v912 = vadd.f32 0.0, %v911
      %913 = vmatmul.bf16.gmra.mxu0 %v538
      %v914 = vpop.f32.mrf.mxu0
      %v915 = vadd.f32 0.0, %v914
      %v916 = vpop.f32.mrf.mxu0
      %v917 = vadd.f32 0.0, %v916
      %918 = vmatmul.bf16.gmra.mxu0 %v543
      %v919 = vpop.f32.mrf.mxu0
      %v920 = vadd.f32 0.0, %v919
      %v921 = vpop.f32.mrf.mxu0
      %v922 = vadd.f32 0.0, %v921
      %923 = vmatmul.bf16.gmra.mxu0 %v548
      %v924 = vpop.f32.mrf.mxu0
      %v925 = vadd.f32 0.0, %v924
      %v926 = vpop.f32.mrf.mxu0
      %v927 = vadd.f32 0.0, %v926
      %928 = vmatmul.bf16.gmra.mxu0 %v553
      %v929 = vpop.f32.mrf.mxu0
      %v930 = vadd.f32 0.0, %v929
      %v931 = vpop.f32.mrf.mxu0
      %v932 = vadd.f32 0.0, %v931
      %933 = vmatmul.bf16.gmra.mxu0 %v558
      %v934 = vpop.f32.mrf.mxu0
      %v935 = vadd.f32 0.0, %v934
      %v936 = vpop.f32.mrf.mxu0
      %v937 = vadd.f32 0.0, %v936
      %938 = vmatmul.bf16.gmra.mxu0 %v563
      %v939 = vpop.f32.mrf.mxu0
      %v940 = vadd.f32 0.0, %v939
      %v941 = vpop.f32.mrf.mxu0
      %v942 = vadd.f32 0.0, %v941
      %943 = vmatmul.bf16.gmra.mxu0 %v568
      %v944 = vpop.f32.mrf.mxu0
      %v945 = vadd.f32 0.0, %v944
      %v946 = vpop.f32.mrf.mxu0
      %v947 = vadd.f32 0.0, %v946
      %948 = vmatmul.bf16.gmra.mxu0 %v573
      %v949 = vpop.f32.mrf.mxu0
      %v950 = vadd.f32 0.0, %v949
      %v951 = vpop.f32.mrf.mxu0
      %v952 = vadd.f32 0.0, %v951
      %953 = vmatmul.bf16.gmra.mxu0 %v578
      %v954 = vpop.f32.mrf.mxu0
      %v955 = vadd.f32 0.0, %v954
      %v956 = vpop.f32.mrf.mxu0
      %v957 = vadd.f32 0.0, %v956
      %958 = vmatmul.bf16.gmra.mxu0 %v583
      %v959 = vpop.f32.mrf.mxu0
      %v960 = vadd.f32 0.0, %v959
      %v961 = vpop.f32.mrf.mxu0
      %v962 = vadd.f32 0.0, %v961
      %963 = vmatmul.bf16.gmra.mxu0 %v588
      %v964 = vpop.f32.mrf.mxu0
      %v965 = vadd.f32 0.0, %v964
      %v966 = vpop.f32.mrf.mxu0
      %967 = vdwg.mxu0
      %968 = vmatpush.bf16.msra.mxu0 %v800
      %969 = vmatpush.bf16.msra.mxu0 %v799
      %970 = vmatpush.bf16.msra.mxu0 %v798
      %971 = vmatpush.bf16.msra.mxu0 %v797
      %972 = vmatpush.bf16.msra.mxu0 %v796
      %973 = vmatpush.bf16.msra.mxu0 %v795
      %974 = vmatpush.bf16.msra.mxu0 %v794
      %975 = vmatpush.bf16.msra.mxu0 %v793
      %976 = vmatmul.bf16.gmra.mxu0 %v529
      %v977 = vpop.f32.mrf.mxu0
      %v978 = vadd.f32 %v905, %v977
      %v979 = vpop.f32.mrf.mxu0
      %v980 = vadd.f32 %v907, %v979
      %981 = vmatmul.bf16.gmra.mxu0 %v534
      %v982 = vpop.f32.mrf.mxu0
      %v983 = vadd.f32 %v910, %v982
      %v984 = vpop.f32.mrf.mxu0
      %v985 = vadd.f32 %v912, %v984
      %986 = vmatmul.bf16.gmra.mxu0 %v539
      %v987 = vpop.f32.mrf.mxu0
      %v988 = vadd.f32 %v915, %v987
      %v989 = vpop.f32.mrf.mxu0
      %v990 = vadd.f32 %v917, %v989
      %991 = vmatmul.bf16.gmra.mxu0 %v544
      %v992 = vpop.f32.mrf.mxu0
      %v993 = vadd.f32 %v920, %v992
      %v994 = vpop.f32.mrf.mxu0
      %v995 = vadd.f32 %v922, %v994
      %996 = vmatmul.bf16.gmra.mxu0 %v549
      %v997 = vpop.f32.mrf.mxu0
      %v998 = vadd.f32 %v925, %v997
      %v999 = vpop.f32.mrf.mxu0
      %v1000 = vadd.f32 %v927, %v999
      %1001 = vmatmul.bf16.gmra.mxu0 %v554
      %v1002 = vpop.f32.mrf.mxu0
      %v1003 = vadd.f32 %v930, %v1002
      %v1004 = vpop.f32.mrf.mxu0
      %v1005 = vadd.f32 %v932, %v1004
      %1006 = vmatmul.bf16.gmra.mxu0 %v559
      %v1007 = vpop.f32.mrf.mxu0
      %v1008 = vadd.f32 %v935, %v1007
      %v1009 = vpop.f32.mrf.mxu0
      %v1010 = vadd.f32 %v937, %v1009
      %1011 = vmatmul.bf16.gmra.mxu0 %v564
      %v1012 = vpop.f32.mrf.mxu0
      %v1013 = vadd.f32 %v940, %v1012
      %v1014 = vpop.f32.mrf.mxu0
      %v1015 = vadd.f32 %v942, %v1014
      %1016 = vmatmul.bf16.gmra.mxu0 %v569
      %v1017 = vpop.f32.mrf.mxu0
      %v1018 = vadd.f32 %v945, %v1017
      %v1019 = vpop.f32.mrf.mxu0
      %v1020 = vadd.f32 %v947, %v1019
      %1021 = vmatmul.bf16.gmra.mxu0 %v574
      %v1022 = vpop.f32.mrf.mxu0
      %v1023 = vadd.f32 %v950, %v1022
      %v1024 = vpop.f32.mrf.mxu0
      %v1025 = vadd.f32 %v952, %v1024
      %1026 = vmatmul.bf16.gmra.mxu0 %v579
      %v1027 = vpop.f32.mrf.mxu0
      %v1028 = vadd.f32 %v955, %v1027
      %v1029 = vpop.f32.mrf.mxu0
      %v1030 = vadd.f32 %v957, %v1029
      %1031 = vmatmul.bf16.gmra.mxu0 %v584
      %v1032 = vpop.f32.mrf.mxu0
      %v1033 = vadd.f32 %v960, %v1032
      %v1034 = vpop.f32.mrf.mxu0
      %v1035 = vadd.f32 %v962, %v1034
      %1036 = vmatmul.bf16.gmra.mxu0 %v589
      %v1037 = vpop.f32.mrf.mxu0
      %v1038 = vadd.f32 %v965, %v1037
      %v1039 = vpop.f32.mrf.mxu0
      %1040 = vdwg.mxu0
      %1041 = vmatpush.bf16.msra.mxu0 %v808
      %1042 = vmatpush.bf16.msra.mxu0 %v807
      %1043 = vmatpush.bf16.msra.mxu0 %v806
      %1044 = vmatpush.bf16.msra.mxu0 %v805
      %1045 = vmatpush.bf16.msra.mxu0 %v804
      %1046 = vmatpush.bf16.msra.mxu0 %v803
      %1047 = vmatpush.bf16.msra.mxu0 %v802
      %1048 = vmatpush.bf16.msra.mxu0 %v801
      %1049 = vmatmul.bf16.gmra.mxu0 %v530
      %v1050 = vpop.f32.mrf.mxu0
      %v1051 = vadd.f32 %v978, %v1050
      %v1052 = vpop.f32.mrf.mxu0
      %v1053 = vadd.f32 %v980, %v1052
      %1054 = vmatmul.bf16.gmra.mxu0 %v535
      %v1055 = vpop.f32.mrf.mxu0
      %v1056 = vadd.f32 %v983, %v1055
      %v1057 = vpop.f32.mrf.mxu0
      %v1058 = vadd.f32 %v985, %v1057
      %1059 = vmatmul.bf16.gmra.mxu0 %v540
      %v1060 = vpop.f32.mrf.mxu0
      %v1061 = vadd.f32 %v988, %v1060
      %v1062 = vpop.f32.mrf.mxu0
      %v1063 = vadd.f32 %v990, %v1062
      %1064 = vmatmul.bf16.gmra.mxu0 %v545
      %v1065 = vpop.f32.mrf.mxu0
      %v1066 = vadd.f32 %v993, %v1065
      %v1067 = vpop.f32.mrf.mxu0
      %v1068 = vadd.f32 %v995, %v1067
      %1069 = vmatmul.bf16.gmra.mxu0 %v550
      %v1070 = vpop.f32.mrf.mxu0
      %v1071 = vadd.f32 %v998, %v1070
      %v1072 = vpop.f32.mrf.mxu0
      %v1073 = vadd.f32 %v1000, %v1072
      %1074 = vmatmul.bf16.gmra.mxu0 %v555
      %v1075 = vpop.f32.mrf.mxu0
      %v1076 = vadd.f32 %v1003, %v1075
      %v1077 = vpop.f32.mrf.mxu0
      %v1078 = vadd.f32 %v1005, %v1077
      %1079 = vmatmul.bf16.gmra.mxu0 %v560
      %v1080 = vpop.f32.mrf.mxu0
      %v1081 = vadd.f32 %v1008, %v1080
      %v1082 = vpop.f32.mrf.mxu0
      %v1083 = vadd.f32 %v1010, %v1082
      %1084 = vmatmul.bf16.gmra.mxu0 %v565
      %v1085 = vpop.f32.mrf.mxu0
      %v1086 = vadd.f32 %v1013, %v1085
      %v1087 = vpop.f32.mrf.mxu0
      %v1088 = vadd.f32 %v1015, %v1087
      %1089 = vmatmul.bf16.gmra.mxu0 %v570
      %v1090 = vpop.f32.mrf.mxu0
      %v1091 = vadd.f32 %v1018, %v1090
      %v1092 = vpop.f32.mrf.mxu0
      %v1093 = vadd.f32 %v1020, %v1092
      %1094 = vmatmul.bf16.gmra.mxu0 %v575
      %v1095 = vpop.f32.mrf.mxu0
      %v1096 = vadd.f32 %v1023, %v1095
      %v1097 = vpop.f32.mrf.mxu0
      %v1098 = vadd.f32 %v1025, %v1097
      %1099 = vmatmul.bf16.gmra.mxu0 %v580
      %v1100 = vpop.f32.mrf.mxu0
      %v1101 = vadd.f32 %v1028, %v1100
      %v1102 = vpop.f32.mrf.mxu0
      %v1103 = vadd.f32 %v1030, %v1102
      %1104 = vmatmul.bf16.gmra.mxu0 %v585
      %v1105 = vpop.f32.mrf.mxu0
      %v1106 = vadd.f32 %v1033, %v1105
      %v1107 = vpop.f32.mrf.mxu0
      %v1108 = vadd.f32 %v1035, %v1107
      %1109 = vmatmul.bf16.gmra.mxu0 %v590
      %v1110 = vpop.f32.mrf.mxu0
      %v1111 = vadd.f32 %v1038, %v1110
      %v1112 = vpop.f32.mrf.mxu0
      %1113 = vdwg.mxu0
      %1114 = vmatpush.bf16.msra.mxu0 %v816
      %1115 = vmatpush.bf16.msra.mxu0 %v815
      %1116 = vmatpush.bf16.msra.mxu0 %v814
      %1117 = vmatpush.bf16.msra.mxu0 %v813
      %1118 = vmatpush.bf16.msra.mxu0 %v812
      %1119 = vmatpush.bf16.msra.mxu0 %v811
      %1120 = vmatpush.bf16.msra.mxu0 %v810
      %1121 = vmatpush.bf16.msra.mxu0 %v809
      %1122 = vmatmul.bf16.gmra.mxu0 %v531
      %v1123 = vpop.f32.mrf.mxu0
      %v1124 = vadd.f32 %v1051, %v1123
      %v1125 = vpop.f32.mrf.mxu0
      %v1126 = vadd.f32 %v1053, %v1125
      %1127 = vmatmul.bf16.gmra.mxu0 %v536
      %v1128 = vpop.f32.mrf.mxu0
      %v1129 = vadd.f32 %v1056, %v1128
      %v1130 = vpop.f32.mrf.mxu0
      %v1131 = vadd.f32 %v1058, %v1130
      %1132 = vmatmul.bf16.gmra.mxu0 %v541
      %v1133 = vpop.f32.mrf.mxu0
      %v1134 = vadd.f32 %v1061, %v1133
      %v1135 = vpop.f32.mrf.mxu0
      %v1136 = vadd.f32 %v1063, %v1135
      %1137 = vmatmul.bf16.gmra.mxu0 %v546
      %v1138 = vpop.f32.mrf.mxu0
      %v1139 = vadd.f32 %v1066, %v1138
      %v1140 = vpop.f32.mrf.mxu0
      %v1141 = vadd.f32 %v1068, %v1140
      %1142 = vmatmul.bf16.gmra.mxu0 %v551
      %v1143 = vpop.f32.mrf.mxu0
      %v1144 = vadd.f32 %v1071, %v1143
      %v1145 = vpop.f32.mrf.mxu0
      %v1146 = vadd.f32 %v1073, %v1145
      %1147 = vmatmul.bf16.gmra.mxu0 %v556
      %v1148 = vpop.f32.mrf.mxu0
      %v1149 = vadd.f32 %v1076, %v1148
      %v1150 = vpop.f32.mrf.mxu0
      %v1151 = vadd.f32 %v1078, %v1150
      %1152 = vmatmul.bf16.gmra.mxu0 %v561
      %v1153 = vpop.f32.mrf.mxu0
      %v1154 = vadd.f32 %v1081, %v1153
      %v1155 = vpop.f32.mrf.mxu0
      %v1156 = vadd.f32 %v1083, %v1155
      %1157 = vmatmul.bf16.gmra.mxu0 %v566
      %v1158 = vpop.f32.mrf.mxu0
      %v1159 = vadd.f32 %v1086, %v1158
      %v1160 = vpop.f32.mrf.mxu0
      %v1161 = vadd.f32 %v1088, %v1160
      %1162 = vmatmul.bf16.gmra.mxu0 %v571
      %v1163 = vpop.f32.mrf.mxu0
      %v1164 = vadd.f32 %v1091, %v1163
      %v1165 = vpop.f32.mrf.mxu0
      %v1166 = vadd.f32 %v1093, %v1165
      %1167 = vmatmul.bf16.gmra.mxu0 %v576
      %v1168 = vpop.f32.mrf.mxu0
      %v1169 = vadd.f32 %v1096, %v1168
      %v1170 = vpop.f32.mrf.mxu0
      %v1171 = vadd.f32 %v1098, %v1170
      %1172 = vmatmul.bf16.gmra.mxu0 %v581
      %v1173 = vpop.f32.mrf.mxu0
      %v1174 = vadd.f32 %v1101, %v1173
      %v1175 = vpop.f32.mrf.mxu0
      %v1176 = vadd.f32 %v1103, %v1175
      %1177 = vmatmul.bf16.gmra.mxu0 %v586
      %v1178 = vpop.f32.mrf.mxu0
      %v1179 = vadd.f32 %v1106, %v1178
      %v1180 = vpop.f32.mrf.mxu0
      %v1181 = vadd.f32 %v1108, %v1180
      %1182 = vmatmul.bf16.gmra.mxu0 %v591
      %v1183 = vpop.f32.mrf.mxu0
      %v1184 = vadd.f32 %v1111, %v1183
      %v1185 = vpop.f32.mrf.mxu0
      %1186 = vdwg.mxu0
      %1187 = vmatpush.bf16.msra.mxu0 0
      %1188 = vmatpush.bf16.msra.mxu0 0
      %1189 = vmatpush.bf16.msra.mxu0 0
      %1190 = vmatpush.bf16.msra.mxu0 0
      %1191 = vmatpush.bf16.msra.mxu0 0
      %1192 = vmatpush.bf16.msra.mxu0 %v819
      %1193 = vmatpush.bf16.msra.mxu0 %v818
      %1194 = vmatpush.bf16.msra.mxu0 %v817
      %1195 = vmatmul.bf16.gmra.mxu0 %v857
      %v1196 = vpop.f32.mrf.mxu0
      %v1197 = vadd.f32 %v1124, %v1196
      %v1198 = vpop.f32.mrf.mxu0
      %v1199 = vadd.f32 %v1126, %v1198
      %1200 = vmatmul.bf16.gmra.mxu0 %v860
      %v1201 = vpop.f32.mrf.mxu0
      %v1202 = vadd.f32 %v1129, %v1201
      %v1203 = vpop.f32.mrf.mxu0
      %v1204 = vadd.f32 %v1131, %v1203
      %1205 = vmatmul.bf16.gmra.mxu0 %v863
      %v1206 = vpop.f32.mrf.mxu0
      %v1207 = vadd.f32 %v1134, %v1206
      %v1208 = vpop.f32.mrf.mxu0
      %v1209 = vadd.f32 %v1136, %v1208
      %1210 = vmatmul.bf16.gmra.mxu0 %v866
      %v1211 = vpop.f32.mrf.mxu0
      %v1212 = vadd.f32 %v1139, %v1211
      %v1213 = vpop.f32.mrf.mxu0
      %v1214 = vadd.f32 %v1141, %v1213
      %1215 = vmatmul.bf16.gmra.mxu0 %v869
      %v1216 = vpop.f32.mrf.mxu0
      %v1217 = vadd.f32 %v1144, %v1216
      %v1218 = vpop.f32.mrf.mxu0
      %v1219 = vadd.f32 %v1146, %v1218
      %1220 = vmatmul.bf16.gmra.mxu0 %v872
      %v1221 = vpop.f32.mrf.mxu0
      %v1222 = vadd.f32 %v1149, %v1221
      %v1223 = vpop.f32.mrf.mxu0
      %v1224 = vadd.f32 %v1151, %v1223
      %1225 = vmatmul.bf16.gmra.mxu0 %v875
      %v1226 = vpop.f32.mrf.mxu0
      %v1227 = vadd.f32 %v1154, %v1226
      %v1228 = vpop.f32.mrf.mxu0
      %v1229 = vadd.f32 %v1156, %v1228
      %1230 = vmatmul.bf16.gmra.mxu0 %v878
      %v1231 = vpop.f32.mrf.mxu0
      %v1232 = vadd.f32 %v1159, %v1231
      %v1233 = vpop.f32.mrf.mxu0
      %v1234 = vadd.f32 %v1161, %v1233
      %1235 = vmatmul.bf16.gmra.mxu0 %v881
      %v1236 = vpop.f32.mrf.mxu0
      %v1237 = vadd.f32 %v1164, %v1236
      %v1238 = vpop.f32.mrf.mxu0
      %v1239 = vadd.f32 %v1166, %v1238
      %1240 = vmatmul.bf16.gmra.mxu0 %v884
      %v1241 = vpop.f32.mrf.mxu0
      %v1242 = vadd.f32 %v1169, %v1241
      %v1243 = vpop.f32.mrf.mxu0
      %v1244 = vadd.f32 %v1171, %v1243
      %1245 = vmatmul.bf16.gmra.mxu0 %v887
      %v1246 = vpop.f32.mrf.mxu0
      %v1247 = vadd.f32 %v1174, %v1246
      %v1248 = vpop.f32.mrf.mxu0
      %v1249 = vadd.f32 %v1176, %v1248
      %1250 = vmatmul.bf16.gmra.mxu0 %v890
      %v1251 = vpop.f32.mrf.mxu0
      %v1252 = vadd.f32 %v1179, %v1251
      %v1253 = vpop.f32.mrf.mxu0
      %v1254 = vadd.f32 %v1181, %v1253
      %1255 = vmatmul.bf16.gmra.mxu0 %v893
      %v1256 = vpop.f32.mrf.mxu0
      %v1257 = vadd.f32 %v1184, %v1256
      %v1258 = vpop.f32.mrf.mxu0
      %1259 = vdwg.mxu0
      %v1260 = vadd.f32 %v1197, 0.0
      %v1261 = vadd.f32 %v1199, 0.0
      %v1262 = vadd.f32 %v1202, 0.0
      %v1263 = vadd.f32 %v1204, 0.0
      %v1264 = vadd.f32 %v1207, 0.0
      %v1265 = vadd.f32 %v1209, 0.0
      %v1266 = vadd.f32 %v1212, 0.0
      %v1267 = vadd.f32 %v1214, 0.0
      %v1268 = vadd.f32 %v1217, 0.0
      %v1269 = vadd.f32 %v1219, 0.0
      %v1270 = vadd.f32 %v1222, 0.0
      %v1271 = vadd.f32 %v1224, 0.0
      %v1272 = vadd.f32 %v1227, 0.0
      %v1273 = vadd.f32 %v1229, 0.0
      %v1274 = vadd.f32 %v1232, 0.0
      %v1275 = vadd.f32 %v1234, 0.0
      %v1276 = vadd.f32 %v1237, 0.0
      %v1277 = vadd.f32 %v1239, 0.0
      %v1278 = vadd.f32 %v1242, 0.0
      %v1279 = vadd.f32 %v1244, 0.0
      %v1280 = vadd.f32 %v1247, 0.0
      %v1281 = vadd.f32 %v1249, 0.0
      %v1282 = vadd.f32 %v1252, 0.0
      %v1283 = vadd.f32 %v1254, 0.0
      %v1284 = vadd.f32 %v1257, 0.0
      %s1285 = scalar_lea.vmem %s1, 280
      %v1286 = vld [vmem:[%s1285] sm:$0xf]
      %v1287 = vld [vmem:[%s1285 + $0x4] sm:$0xf]
      %v1288 = vld [vmem:[%s1285 + $0x8] sm:$0xf]
      %v1289 = vld [vmem:[%s1285 + $0xc] sm:$0xf]
      %v1290 = vld [vmem:[%s1285 + $0x10] sm:$0xf]
      %v1291 = vld [vmem:[%s1285 + $0x14] sm:$0xf]
      %v1292 = vld [vmem:[%s1285 + $0x18] sm:$0xf]
      %v1293 = vld [vmem:[%s1285 + $0x1c] sm:$0xf]
      %v1294 = vld [vmem:[%s1285 + $0x20] sm:$0xf]
      %v1295 = vld [vmem:[%s1285 + $0x24] sm:$0xf]
      %v1296 = vld [vmem:[%s1285 + $0x28] sm:$0xf]
      %v1297 = vld [vmem:[%s1285 + $0x2c] sm:$0xf]
      %v1298 = vld [vmem:[%s1285 + $0x30] sm:$0xf]
      %v1299 = vld [vmem:[%s1285 + $0x34] sm:$0xf]
      %v1300 = vld [vmem:[%s1285 + $0x38] sm:$0xf]
      %v1301 = vld [vmem:[%s1285 + $0x3c] sm:$0xf]
      %v1302 = vld [vmem:[%s1285 + $0x40] sm:$0xf]
      %v1303 = vld [vmem:[%s1285 + $0x44] sm:$0xf]
      %v1304 = vld [vmem:[%s1285 + $0x48] sm:$0xf]
      %v1305 = vld [vmem:[%s1285 + $0x4c] sm:$0xf]
      %v1306 = vld [vmem:[%s1285 + $0x50] sm:$0xf]
      %v1307 = vld [vmem:[%s1285 + $0x54] sm:$0xf]
      %v1308 = vld [vmem:[%s1285 + $0x58] sm:$0xf]
      %v1309 = vld [vmem:[%s1285 + $0x5c] sm:$0xf]
      %v1310 = vld [vmem:[%s1285 + $0x60] sm:$0xf]
      %v1311 = vld [vmem:[%s1285 + $0x64] sm:$0xf]
      %v1312 = vld [vmem:[%s1285 + $0x68] sm:$0xf]
      %v1313 = vld [vmem:[%s1285 + $0x6c] sm:$0xf]
      %v1314 = vld [vmem:[%s1285 + $0x70] sm:$0xf]
      %v1315 = vld [vmem:[%s1285 + $0x74] sm:$0xf]
      %v1316 = vld [vmem:[%s1285 + $0x78] sm:$0xf]
      %v1317 = vld [vmem:[%s1285 + $0x7c] sm:$0xf]
      %v1318 = vld [vmem:[%s1285 + $0x80] sm:$0xf]
      %v1319 = vld [vmem:[%s1285 + $0x84] sm:$0xf]
      %v1320 = vld [vmem:[%s1285 + $0x88] sm:$0xf]
      %v1321 = vld [vmem:[%s1285 + $0x8c] sm:$0xf]
      %v1322 = vld [vmem:[%s1285 + $0x90] sm:$0xf]
      %v1323 = vld [vmem:[%s1285 + $0x94] sm:$0xf]
      %v1324 = vld [vmem:[%s1285 + $0x98] sm:$0xf]
      %v1325 = vld [vmem:[%s1285 + $0x9c] sm:$0xf]
      %v1326 = vld [vmem:[%s1285 + $0xa0] sm:$0xf]
      %v1327 = vld [vmem:[%s1285 + $0xa4] sm:$0xf]
      %v1328 = vld [vmem:[%s1285 + $0xa8] sm:$0xf]
      %v1329 = vld [vmem:[%s1285 + $0xac] sm:$0xf]
      %v1330 = vld [vmem:[%s1285 + $0xb0] sm:$0xf]
      %v1331 = vld [vmem:[%s1285 + $0xb4] sm:$0xf]
      %v1332 = vld [vmem:[%s1285 + $0xb8] sm:$0xf]
      %v1333 = vld [vmem:[%s1285 + $0xbc] sm:$0xf]
      %v1334 = vld [vmem:[%s1285 + $0xc0] sm:$0xf]
      %v1335 = vld [vmem:[%s1285 + $0xc4] sm:$0xf]
      %v1336 = vld [vmem:[%s1285 + $0xc8] sm:$0xf]
      %v1337 = vld [vmem:[%s1285 + $0xcc] sm:$0xf]
      %v1338 = vld [vmem:[%s1285 + $0xd0] sm:$0xf]
      %v1339 = vld [vmem:[%s1285 + $0xd4] sm:$0xf]
      %v1340 = vld [vmem:[%s1285 + $0xd8] sm:$0xf]
      %v1341 = vld [vmem:[%s1285 + $0xdc] sm:$0xf]
      %v1342 = vld [vmem:[%s1285 + $0xe0] sm:$0xf]
      %v1343 = vld [vmem:[%s1285 + $0xe4] sm:$0xf]
      %v1344 = vld [vmem:[%s1285 + $0xe8] sm:$0xf]
      %v1345 = vld [vmem:[%s1285 + $0xec] sm:$0xf]
      %v1346 = vld [vmem:[%s1285 + $0xf0] sm:$0xf]
      %v1347 = vld [vmem:[%s1285 + $0xf4] sm:$0xf]
      %v1348 = vld [vmem:[%s1285 + $0xf8] sm:$0xf]
      %v1349 = vld [vmem:[%s1285 + $0xfc] sm:$0xf]
      %v1350 = vld [vmem:[%s1285 + $0x100] sm:$0xf]
      %v1351 = vld [vmem:[%s1285 + $0x104] sm:$0xf]
      %v1352 = vld [vmem:[%s1285 + $0x108] sm:$0xf]
      %v1353 = vld [vmem:[%s1285 + $0x10c] sm:$0xf]
      %v1354 = vld [vmem:[%s1285 + $0x110] sm:$0xf]
      %v1355 = vld [vmem:[%s1285 + $0x114] sm:$0xf]
      %v1426 = vunpack.c.l.b16 %v1286
      %v1427 = vunpack.c.l.b16 %v1287
      %v1428 = vunpack.c.l.b16 %v1288
      %v1429 = vunpack.c.l.b16 %v1289
      %v1430 = vunpack.c.l.b16 %v1290
      %v1431 = vunpack.c.l.b16 %v1291
      %v1432 = vunpack.c.l.b16 %v1292
      %v1433 = vunpack.c.l.b16 %v1293
      %v1434 = vunpack.c.l.b16 %v1294
      %v1435 = vunpack.c.l.b16 %v1295
      %v1436 = vunpack.c.l.b16 %v1296
      %v1437 = vunpack.c.l.b16 %v1297
      %v1438 = vunpack.c.l.b16 %v1298
      %v1439 = vunpack.c.l.b16 %v1299
      %v1440 = vunpack.c.l.b16 %v1300
      %v1441 = vunpack.c.l.b16 %v1301
      %v1442 = vunpack.c.l.b16 %v1302
      %v1443 = vunpack.c.l.b16 %v1303
      %v1444 = vunpack.c.l.b16 %v1304
      %v1445 = vunpack.c.l.b16 %v1305
      %v1446 = vunpack.c.l.b16 %v1306
      %v1447 = vunpack.c.l.b16 %v1307
      %v1448 = vunpack.c.l.b16 %v1308
      %v1449 = vunpack.c.l.b16 %v1309
      %v1450 = vunpack.c.l.b16 %v1310
      %v1451 = vunpack.c.l.b16 %v1311
      %v1452 = vunpack.c.l.b16 %v1312
      %v1453 = vunpack.c.l.b16 %v1313
      %v1454 = vunpack.c.l.b16 %v1314
      %v1455 = vunpack.c.l.b16 %v1315
      %v1456 = vunpack.c.l.b16 %v1316
      %v1457 = vunpack.c.l.b16 %v1317
      %v1458 = vunpack.c.l.b16 %v1318
      %v1459 = vunpack.c.l.b16 %v1319
      %v1460 = vunpack.c.l.b16 %v1320
      %v1461 = vunpack.c.l.b16 %v1321
      %v1462 = vunpack.c.l.b16 %v1322
      %v1463 = vunpack.c.l.b16 %v1323
      %v1464 = vunpack.c.l.b16 %v1324
      %v1465 = vunpack.c.l.b16 %v1325
      %v1466 = vunpack.c.l.b16 %v1326
      %v1467 = vunpack.c.l.b16 %v1327
      %v1468 = vunpack.c.l.b16 %v1328
      %v1469 = vunpack.c.l.b16 %v1329
      %v1470 = vunpack.c.l.b16 %v1330
      %v1471 = vunpack.c.l.b16 %v1331
      %v1472 = vunpack.c.l.b16 %v1332
      %v1473 = vunpack.c.l.b16 %v1333
      %v1474 = vunpack.c.l.b16 %v1334
      %v1475 = vunpack.c.l.b16 %v1335
      %v1476 = vunpack.c.l.b16 %v1336
      %v1477 = vunpack.c.l.b16 %v1337
      %v1478 = vunpack.c.l.b16 %v1338
      %v1479 = vunpack.c.l.b16 %v1339
      %v1480 = vunpack.c.l.b16 %v1340
      %v1481 = vunpack.c.l.b16 %v1341
      %v1482 = vunpack.c.l.b16 %v1342
      %v1483 = vunpack.c.l.b16 %v1343
      %v1484 = vunpack.c.l.b16 %v1344
      %v1485 = vunpack.c.l.b16 %v1345
      %v1486 = vunpack.c.l.b16 %v1346
      %v1487 = vunpack.c.l.b16 %v1347
      %v1488 = vunpack.c.l.b16 %v1348
      %v1489 = vunpack.c.l.b16 %v1349
      %v1490 = vunpack.c.l.b16 %v1350
      %v1491 = vunpack.c.l.b16 %v1351
      %v1492 = vunpack.c.l.b16 %v1352
      %v1493 = vunpack.c.l.b16 %v1353
      %v1494 = vunpack.c.l.b16 %v1354
      %v1495 = vunpack.c.l.b16 %v1355
      %v1496 = vpack.c.b16 %v1427, %v1426
      %v1497 = vpack.c.b16 %v1429, %v1428
      %v1498 = vpack.c.b16 %v1431, %v1430
      %v1499 = vpack.c.b16 %v1433, %v1432
      %v1500 = vpack.c.b16 %v1435, %v1434
      %v1501 = vpack.c.b16 %v1437, %v1436
      %v1502 = vpack.c.b16 %v1439, %v1438
      %v1503 = vpack.c.b16 %v1441, %v1440
      %v1504 = vpack.c.b16 %v1443, %v1442
      %v1505 = vpack.c.b16 %v1445, %v1444
      %v1506 = vpack.c.b16 %v1447, %v1446
      %v1507 = vpack.c.b16 %v1449, %v1448
      %v1508 = vpack.c.b16 %v1451, %v1450
      %v1509 = vpack.c.b16 %v1453, %v1452
      %v1510 = vpack.c.b16 %v1455, %v1454
      %v1511 = vpack.c.b16 %v1457, %v1456
      %v1512 = vpack.c.b16 %v1459, %v1458
      %v1513 = vpack.c.b16 %v1461, %v1460
      %v1514 = vpack.c.b16 %v1463, %v1462
      %v1515 = vpack.c.b16 %v1465, %v1464
      %v1516 = vpack.c.b16 %v1467, %v1466
      %v1517 = vpack.c.b16 %v1469, %v1468
      %v1518 = vpack.c.b16 %v1471, %v1470
      %v1519 = vpack.c.b16 %v1473, %v1472
      %v1520 = vpack.c.b16 %v1475, %v1474
      %v1521 = vpack.c.b16 %v1477, %v1476
      %v1522 = vpack.c.b16 %v1479, %v1478
      %v1523 = vpack.c.b16 %v1481, %v1480
      %v1524 = vpack.c.b16 %v1483, %v1482
      %v1525 = vpack.c.b16 %v1485, %v1484
      %v1526 = vpack.c.b16 %v1487, %v1486
      %v1527 = vpack.c.b16 %v1489, %v1488
      %v1528 = vpack.c.b16 %v1491, %v1490
      %v1529 = vpack.c.b16 %v1493, %v1492
      %v1530 = vpack.c.b16 %v1495, %v1494
      %1566 = vmatpush.bf16.msra.mxu0 %v1503
      %1567 = vmatpush.bf16.msra.mxu0 %v1502
      %1568 = vmatpush.bf16.msra.mxu0 %v1501
      %1569 = vmatpush.bf16.msra.mxu0 %v1500
      %1570 = vmatpush.bf16.msra.mxu0 %v1499
      %1571 = vmatpush.bf16.msra.mxu0 %v1498
      %1572 = vmatpush.bf16.msra.mxu0 %v1497
      %1573 = vmatpush.bf16.msra.mxu0 %v1496
      %1574 = vmatmul.bf16.gmra.mxu0 %v528
      %v1575 = vpop.f32.mrf.mxu0
      %v1576 = vadd.f32 0.0, %v1575
      %v1577 = vpop.f32.mrf.mxu0
      %v1578 = vadd.f32 0.0, %v1577
      %1579 = vmatmul.bf16.gmra.mxu0 %v533
      %v1580 = vpop.f32.mrf.mxu0
      %v1581 = vadd.f32 0.0, %v1580
      %v1582 = vpop.f32.mrf.mxu0
      %v1583 = vadd.f32 0.0, %v1582
      %1584 = vmatmul.bf16.gmra.mxu0 %v538
      %v1585 = vpop.f32.mrf.mxu0
      %v1586 = vadd.f32 0.0, %v1585
      %v1587 = vpop.f32.mrf.mxu0
      %v1588 = vadd.f32 0.0, %v1587
      %1589 = vmatmul.bf16.gmra.mxu0 %v543
      %v1590 = vpop.f32.mrf.mxu0
      %v1591 = vadd.f32 0.0, %v1590
      %v1592 = vpop.f32.mrf.mxu0
      %v1593 = vadd.f32 0.0, %v1592
      %1594 = vmatmul.bf16.gmra.mxu0 %v548
      %v1595 = vpop.f32.mrf.mxu0
      %v1596 = vadd.f32 0.0, %v1595
      %v1597 = vpop.f32.mrf.mxu0
      %v1598 = vadd.f32 0.0, %v1597
      %1599 = vmatmul.bf16.gmra.mxu0 %v553
      %v1600 = vpop.f32.mrf.mxu0
      %v1601 = vadd.f32 0.0, %v1600
      %v1602 = vpop.f32.mrf.mxu0
      %v1603 = vadd.f32 0.0, %v1602
      %1604 = vmatmul.bf16.gmra.mxu0 %v558
      %v1605 = vpop.f32.mrf.mxu0
      %v1606 = vadd.f32 0.0, %v1605
      %v1607 = vpop.f32.mrf.mxu0
      %v1608 = vadd.f32 0.0, %v1607
      %1609 = vmatmul.bf16.gmra.mxu0 %v563
      %v1610 = vpop.f32.mrf.mxu0
      %v1611 = vadd.f32 0.0, %v1610
      %v1612 = vpop.f32.mrf.mxu0
      %v1613 = vadd.f32 0.0, %v1612
      %1614 = vmatmul.bf16.gmra.mxu0 %v568
      %v1615 = vpop.f32.mrf.mxu0
      %v1616 = vadd.f32 0.0, %v1615
      %v1617 = vpop.f32.mrf.mxu0
      %v1618 = vadd.f32 0.0, %v1617
      %1619 = vmatmul.bf16.gmra.mxu0 %v573
      %v1620 = vpop.f32.mrf.mxu0
      %v1621 = vadd.f32 0.0, %v1620
      %v1622 = vpop.f32.mrf.mxu0
      %v1623 = vadd.f32 0.0, %v1622
      %1624 = vmatmul.bf16.gmra.mxu0 %v578
      %v1625 = vpop.f32.mrf.mxu0
      %v1626 = vadd.f32 0.0, %v1625
      %v1627 = vpop.f32.mrf.mxu0
      %v1628 = vadd.f32 0.0, %v1627
      %1629 = vmatmul.bf16.gmra.mxu0 %v583
      %v1630 = vpop.f32.mrf.mxu0
      %v1631 = vadd.f32 0.0, %v1630
      %v1632 = vpop.f32.mrf.mxu0
      %v1633 = vadd.f32 0.0, %v1632
      %1634 = vmatmul.bf16.gmra.mxu0 %v588
      %v1635 = vpop.f32.mrf.mxu0
      %v1636 = vadd.f32 0.0, %v1635
      %v1637 = vpop.f32.mrf.mxu0
      %1638 = vdwg.mxu0
      %1639 = vmatpush.bf16.msra.mxu0 %v1511
      %1640 = vmatpush.bf16.msra.mxu0 %v1510
      %1641 = vmatpush.bf16.msra.mxu0 %v1509
      %1642 = vmatpush.bf16.msra.mxu0 %v1508
      %1643 = vmatpush.bf16.msra.mxu0 %v1507
      %1644 = vmatpush.bf16.msra.mxu0 %v1506
      %1645 = vmatpush.bf16.msra.mxu0 %v1505
      %1646 = vmatpush.bf16.msra.mxu0 %v1504
      %1647 = vmatmul.bf16.gmra.mxu0 %v529
      %v1648 = vpop.f32.mrf.mxu0
      %v1649 = vadd.f32 %v1576, %v1648
      %v1650 = vpop.f32.mrf.mxu0
      %v1651 = vadd.f32 %v1578, %v1650
      %1652 = vmatmul.bf16.gmra.mxu0 %v534
      %v1653 = vpop.f32.mrf.mxu0
      %v1654 = vadd.f32 %v1581, %v1653
      %v1655 = vpop.f32.mrf.mxu0
      %v1656 = vadd.f32 %v1583, %v1655
      %1657 = vmatmul.bf16.gmra.mxu0 %v539
      %v1658 = vpop.f32.mrf.mxu0
      %v1659 = vadd.f32 %v1586, %v1658
      %v1660 = vpop.f32.mrf.mxu0
      %v1661 = vadd.f32 %v1588, %v1660
      %1662 = vmatmul.bf16.gmra.mxu0 %v544
      %v1663 = vpop.f32.mrf.mxu0
      %v1664 = vadd.f32 %v1591, %v1663
      %v1665 = vpop.f32.mrf.mxu0
      %v1666 = vadd.f32 %v1593, %v1665
      %1667 = vmatmul.bf16.gmra.mxu0 %v549
      %v1668 = vpop.f32.mrf.mxu0
      %v1669 = vadd.f32 %v1596, %v1668
      %v1670 = vpop.f32.mrf.mxu0
      %v1671 = vadd.f32 %v1598, %v1670
      %1672 = vmatmul.bf16.gmra.mxu0 %v554
      %v1673 = vpop.f32.mrf.mxu0
      %v1674 = vadd.f32 %v1601, %v1673
      %v1675 = vpop.f32.mrf.mxu0
      %v1676 = vadd.f32 %v1603, %v1675
      %1677 = vmatmul.bf16.gmra.mxu0 %v559
      %v1678 = vpop.f32.mrf.mxu0
      %v1679 = vadd.f32 %v1606, %v1678
      %v1680 = vpop.f32.mrf.mxu0
      %v1681 = vadd.f32 %v1608, %v1680
      %1682 = vmatmul.bf16.gmra.mxu0 %v564
      %v1683 = vpop.f32.mrf.mxu0
      %v1684 = vadd.f32 %v1611, %v1683
      %v1685 = vpop.f32.mrf.mxu0
      %v1686 = vadd.f32 %v1613, %v1685
      %1687 = vmatmul.bf16.gmra.mxu0 %v569
      %v1688 = vpop.f32.mrf.mxu0
      %v1689 = vadd.f32 %v1616, %v1688
      %v1690 = vpop.f32.mrf.mxu0
      %v1691 = vadd.f32 %v1618, %v1690
      %1692 = vmatmul.bf16.gmra.mxu0 %v574
      %v1693 = vpop.f32.mrf.mxu0
      %v1694 = vadd.f32 %v1621, %v1693
      %v1695 = vpop.f32.mrf.mxu0
      %v1696 = vadd.f32 %v1623, %v1695
      %1697 = vmatmul.bf16.gmra.mxu0 %v579
      %v1698 = vpop.f32.mrf.mxu0
      %v1699 = vadd.f32 %v1626, %v1698
      %v1700 = vpop.f32.mrf.mxu0
      %v1701 = vadd.f32 %v1628, %v1700
      %1702 = vmatmul.bf16.gmra.mxu0 %v584
      %v1703 = vpop.f32.mrf.mxu0
      %v1704 = vadd.f32 %v1631, %v1703
      %v1705 = vpop.f32.mrf.mxu0
      %v1706 = vadd.f32 %v1633, %v1705
      %1707 = vmatmul.bf16.gmra.mxu0 %v589
      %v1708 = vpop.f32.mrf.mxu0
      %v1709 = vadd.f32 %v1636, %v1708
      %v1710 = vpop.f32.mrf.mxu0
      %1711 = vdwg.mxu0
      %1712 = vmatpush.bf16.msra.mxu0 %v1519
      %1713 = vmatpush.bf16.msra.mxu0 %v1518
      %1714 = vmatpush.bf16.msra.mxu0 %v1517
      %1715 = vmatpush.bf16.msra.mxu0 %v1516
      %1716 = vmatpush.bf16.msra.mxu0 %v1515
      %1717 = vmatpush.bf16.msra.mxu0 %v1514
      %1718 = vmatpush.bf16.msra.mxu0 %v1513
      %1719 = vmatpush.bf16.msra.mxu0 %v1512
      %1720 = vmatmul.bf16.gmra.mxu0 %v530
      %v1721 = vpop.f32.mrf.mxu0
      %v1722 = vadd.f32 %v1649, %v1721
      %v1723 = vpop.f32.mrf.mxu0
      %v1724 = vadd.f32 %v1651, %v1723
      %1725 = vmatmul.bf16.gmra.mxu0 %v535
      %v1726 = vpop.f32.mrf.mxu0
      %v1727 = vadd.f32 %v1654, %v1726
      %v1728 = vpop.f32.mrf.mxu0
      %v1729 = vadd.f32 %v1656, %v1728
      %1730 = vmatmul.bf16.gmra.mxu0 %v540
      %v1731 = vpop.f32.mrf.mxu0
      %v1732 = vadd.f32 %v1659, %v1731
      %v1733 = vpop.f32.mrf.mxu0
      %v1734 = vadd.f32 %v1661, %v1733
      %1735 = vmatmul.bf16.gmra.mxu0 %v545
      %v1736 = vpop.f32.mrf.mxu0
      %v1737 = vadd.f32 %v1664, %v1736
      %v1738 = vpop.f32.mrf.mxu0
      %v1739 = vadd.f32 %v1666, %v1738
      %1740 = vmatmul.bf16.gmra.mxu0 %v550
      %v1741 = vpop.f32.mrf.mxu0
      %v1742 = vadd.f32 %v1669, %v1741
      %v1743 = vpop.f32.mrf.mxu0
      %v1744 = vadd.f32 %v1671, %v1743
      %1745 = vmatmul.bf16.gmra.mxu0 %v555
      %v1746 = vpop.f32.mrf.mxu0
      %v1747 = vadd.f32 %v1674, %v1746
      %v1748 = vpop.f32.mrf.mxu0
      %v1749 = vadd.f32 %v1676, %v1748
      %1750 = vmatmul.bf16.gmra.mxu0 %v560
      %v1751 = vpop.f32.mrf.mxu0
      %v1752 = vadd.f32 %v1679, %v1751
      %v1753 = vpop.f32.mrf.mxu0
      %v1754 = vadd.f32 %v1681, %v1753
      %1755 = vmatmul.bf16.gmra.mxu0 %v565
      %v1756 = vpop.f32.mrf.mxu0
      %v1757 = vadd.f32 %v1684, %v1756
      %v1758 = vpop.f32.mrf.mxu0
      %v1759 = vadd.f32 %v1686, %v1758
      %1760 = vmatmul.bf16.gmra.mxu0 %v570
      %v1761 = vpop.f32.mrf.mxu0
      %v1762 = vadd.f32 %v1689, %v1761
      %v1763 = vpop.f32.mrf.mxu0
      %v1764 = vadd.f32 %v1691, %v1763
      %1765 = vmatmul.bf16.gmra.mxu0 %v575
      %v1766 = vpop.f32.mrf.mxu0
      %v1767 = vadd.f32 %v1694, %v1766
      %v1768 = vpop.f32.mrf.mxu0
      %v1769 = vadd.f32 %v1696, %v1768
      %1770 = vmatmul.bf16.gmra.mxu0 %v580
      %v1771 = vpop.f32.mrf.mxu0
      %v1772 = vadd.f32 %v1699, %v1771
      %v1773 = vpop.f32.mrf.mxu0
      %v1774 = vadd.f32 %v1701, %v1773
      %1775 = vmatmul.bf16.gmra.mxu0 %v585
      %v1776 = vpop.f32.mrf.mxu0
      %v1777 = vadd.f32 %v1704, %v1776
      %v1778 = vpop.f32.mrf.mxu0
      %v1779 = vadd.f32 %v1706, %v1778
      %1780 = vmatmul.bf16.gmra.mxu0 %v590
      %v1781 = vpop.f32.mrf.mxu0
      %v1782 = vadd.f32 %v1709, %v1781
      %v1783 = vpop.f32.mrf.mxu0
      %1784 = vdwg.mxu0
      %1785 = vmatpush.bf16.msra.mxu0 %v1527
      %1786 = vmatpush.bf16.msra.mxu0 %v1526
      %1787 = vmatpush.bf16.msra.mxu0 %v1525
      %1788 = vmatpush.bf16.msra.mxu0 %v1524
      %1789 = vmatpush.bf16.msra.mxu0 %v1523
      %1790 = vmatpush.bf16.msra.mxu0 %v1522
      %1791 = vmatpush.bf16.msra.mxu0 %v1521
      %1792 = vmatpush.bf16.msra.mxu0 %v1520
      %1793 = vmatmul.bf16.gmra.mxu0 %v531
      %v1794 = vpop.f32.mrf.mxu0
      %v1795 = vadd.f32 %v1722, %v1794
      %v1796 = vpop.f32.mrf.mxu0
      %v1797 = vadd.f32 %v1724, %v1796
      %1798 = vmatmul.bf16.gmra.mxu0 %v536
      %v1799 = vpop.f32.mrf.mxu0
      %v1800 = vadd.f32 %v1727, %v1799
      %v1801 = vpop.f32.mrf.mxu0
      %v1802 = vadd.f32 %v1729, %v1801
      %1803 = vmatmul.bf16.gmra.mxu0 %v541
      %v1804 = vpop.f32.mrf.mxu0
      %v1805 = vadd.f32 %v1732, %v1804
      %v1806 = vpop.f32.mrf.mxu0
      %v1807 = vadd.f32 %v1734, %v1806
      %1808 = vmatmul.bf16.gmra.mxu0 %v546
      %v1809 = vpop.f32.mrf.mxu0
      %v1810 = vadd.f32 %v1737, %v1809
      %v1811 = vpop.f32.mrf.mxu0
      %v1812 = vadd.f32 %v1739, %v1811
      %1813 = vmatmul.bf16.gmra.mxu0 %v551
      %v1814 = vpop.f32.mrf.mxu0
      %v1815 = vadd.f32 %v1742, %v1814
      %v1816 = vpop.f32.mrf.mxu0
      %v1817 = vadd.f32 %v1744, %v1816
      %1818 = vmatmul.bf16.gmra.mxu0 %v556
      %v1819 = vpop.f32.mrf.mxu0
      %v1820 = vadd.f32 %v1747, %v1819
      %v1821 = vpop.f32.mrf.mxu0
      %v1822 = vadd.f32 %v1749, %v1821
      %1823 = vmatmul.bf16.gmra.mxu0 %v561
      %v1824 = vpop.f32.mrf.mxu0
      %v1825 = vadd.f32 %v1752, %v1824
      %v1826 = vpop.f32.mrf.mxu0
      %v1827 = vadd.f32 %v1754, %v1826
      %1828 = vmatmul.bf16.gmra.mxu0 %v566
      %v1829 = vpop.f32.mrf.mxu0
      %v1830 = vadd.f32 %v1757, %v1829
      %v1831 = vpop.f32.mrf.mxu0
      %v1832 = vadd.f32 %v1759, %v1831
      %1833 = vmatmul.bf16.gmra.mxu0 %v571
      %v1834 = vpop.f32.mrf.mxu0
      %v1835 = vadd.f32 %v1762, %v1834
      %v1836 = vpop.f32.mrf.mxu0
      %v1837 = vadd.f32 %v1764, %v1836
      %1838 = vmatmul.bf16.gmra.mxu0 %v576
      %v1839 = vpop.f32.mrf.mxu0
      %v1840 = vadd.f32 %v1767, %v1839
      %v1841 = vpop.f32.mrf.mxu0
      %v1842 = vadd.f32 %v1769, %v1841
      %1843 = vmatmul.bf16.gmra.mxu0 %v581
      %v1844 = vpop.f32.mrf.mxu0
      %v1845 = vadd.f32 %v1772, %v1844
      %v1846 = vpop.f32.mrf.mxu0
      %v1847 = vadd.f32 %v1774, %v1846
      %1848 = vmatmul.bf16.gmra.mxu0 %v586
      %v1849 = vpop.f32.mrf.mxu0
      %v1850 = vadd.f32 %v1777, %v1849
      %v1851 = vpop.f32.mrf.mxu0
      %v1852 = vadd.f32 %v1779, %v1851
      %1853 = vmatmul.bf16.gmra.mxu0 %v591
      %v1854 = vpop.f32.mrf.mxu0
      %v1855 = vadd.f32 %v1782, %v1854
      %v1856 = vpop.f32.mrf.mxu0
      %1857 = vdwg.mxu0
      %1858 = vmatpush.bf16.msra.mxu0 0
      %1859 = vmatpush.bf16.msra.mxu0 0
      %1860 = vmatpush.bf16.msra.mxu0 0
      %1861 = vmatpush.bf16.msra.mxu0 0
      %1862 = vmatpush.bf16.msra.mxu0 0
      %1863 = vmatpush.bf16.msra.mxu0 %v1530
      %1864 = vmatpush.bf16.msra.mxu0 %v1529
      %1865 = vmatpush.bf16.msra.mxu0 %v1528
      %1866 = vmatmul.bf16.gmra.mxu0 %v857
      %v1867 = vpop.f32.mrf.mxu0
      %v1868 = vadd.f32 %v1795, %v1867
      %v1869 = vpop.f32.mrf.mxu0
      %v1870 = vadd.f32 %v1797, %v1869
      %1871 = vmatmul.bf16.gmra.mxu0 %v860
      %v1872 = vpop.f32.mrf.mxu0
      %v1873 = vadd.f32 %v1800, %v1872
      %v1874 = vpop.f32.mrf.mxu0
      %v1875 = vadd.f32 %v1802, %v1874
      %1876 = vmatmul.bf16.gmra.mxu0 %v863
      %v1877 = vpop.f32.mrf.mxu0
      %v1878 = vadd.f32 %v1805, %v1877
      %v1879 = vpop.f32.mrf.mxu0
      %v1880 = vadd.f32 %v1807, %v1879
      %1881 = vmatmul.bf16.gmra.mxu0 %v866
      %v1882 = vpop.f32.mrf.mxu0
      %v1883 = vadd.f32 %v1810, %v1882
      %v1884 = vpop.f32.mrf.mxu0
      %v1885 = vadd.f32 %v1812, %v1884
      %1886 = vmatmul.bf16.gmra.mxu0 %v869
      %v1887 = vpop.f32.mrf.mxu0
      %v1888 = vadd.f32 %v1815, %v1887
      %v1889 = vpop.f32.mrf.mxu0
      %v1890 = vadd.f32 %v1817, %v1889
      %1891 = vmatmul.bf16.gmra.mxu0 %v872
      %v1892 = vpop.f32.mrf.mxu0
      %v1893 = vadd.f32 %v1820, %v1892
      %v1894 = vpop.f32.mrf.mxu0
      %v1895 = vadd.f32 %v1822, %v1894
      %1896 = vmatmul.bf16.gmra.mxu0 %v875
      %v1897 = vpop.f32.mrf.mxu0
      %v1898 = vadd.f32 %v1825, %v1897
      %v1899 = vpop.f32.mrf.mxu0
      %v1900 = vadd.f32 %v1827, %v1899
      %1901 = vmatmul.bf16.gmra.mxu0 %v878
      %v1902 = vpop.f32.mrf.mxu0
      %v1903 = vadd.f32 %v1830, %v1902
      %v1904 = vpop.f32.mrf.mxu0
      %v1905 = vadd.f32 %v1832, %v1904
      %1906 = vmatmul.bf16.gmra.mxu0 %v881
      %v1907 = vpop.f32.mrf.mxu0
      %v1908 = vadd.f32 %v1835, %v1907
      %v1909 = vpop.f32.mrf.mxu0
      %v1910 = vadd.f32 %v1837, %v1909
      %1911 = vmatmul.bf16.gmra.mxu0 %v884
      %v1912 = vpop.f32.mrf.mxu0
      %v1913 = vadd.f32 %v1840, %v1912
      %v1914 = vpop.f32.mrf.mxu0
      %v1915 = vadd.f32 %v1842, %v1914
      %1916 = vmatmul.bf16.gmra.mxu0 %v887
      %v1917 = vpop.f32.mrf.mxu0
      %v1918 = vadd.f32 %v1845, %v1917
      %v1919 = vpop.f32.mrf.mxu0
      %v1920 = vadd.f32 %v1847, %v1919
      %1921 = vmatmul.bf16.gmra.mxu0 %v890
      %v1922 = vpop.f32.mrf.mxu0
      %v1923 = vadd.f32 %v1850, %v1922
      %v1924 = vpop.f32.mrf.mxu0
      %v1925 = vadd.f32 %v1852, %v1924
      %1926 = vmatmul.bf16.gmra.mxu0 %v893
      %v1927 = vpop.f32.mrf.mxu0
      %v1928 = vadd.f32 %v1855, %v1927
      %v1929 = vpop.f32.mrf.mxu0
      %1930 = vdwg.mxu0
      %vm1956 = vcmask 1046528
      %v1957 = vrot.slane %v1868, 1
      %v1958 = vrot.slane %v1870, 1
      %v1959 = vsel %vm1956, %v1957, %v1958
      %v1960 = vrot.slane %v1873, 1
      %v1961 = vsel %vm1956, %v1958, %v1960
      %v1962 = vrot.slane %v1875, 1
      %v1963 = vsel %vm1956, %v1960, %v1962
      %v1964 = vrot.slane %v1878, 1
      %v1965 = vsel %vm1956, %v1962, %v1964
      %v1966 = vrot.slane %v1880, 1
      %v1967 = vsel %vm1956, %v1964, %v1966
      %v1968 = vrot.slane %v1883, 1
      %v1969 = vsel %vm1956, %v1966, %v1968
      %v1970 = vrot.slane %v1885, 1
      %v1971 = vsel %vm1956, %v1968, %v1970
      %v1972 = vrot.slane %v1888, 1
      %v1973 = vsel %vm1956, %v1970, %v1972
      %v1974 = vrot.slane %v1890, 1
      %v1975 = vsel %vm1956, %v1972, %v1974
      %v1976 = vrot.slane %v1893, 1
      %v1977 = vsel %vm1956, %v1974, %v1976
      %v1978 = vrot.slane %v1895, 1
      %v1979 = vsel %vm1956, %v1976, %v1978
      %v1980 = vrot.slane %v1898, 1
      %v1981 = vsel %vm1956, %v1978, %v1980
      %v1982 = vrot.slane %v1900, 1
      %v1983 = vsel %vm1956, %v1980, %v1982
      %v1984 = vrot.slane %v1903, 1
      %v1985 = vsel %vm1956, %v1982, %v1984
      %v1986 = vrot.slane %v1905, 1
      %v1987 = vsel %vm1956, %v1984, %v1986
      %v1988 = vrot.slane %v1908, 1
      %v1989 = vsel %vm1956, %v1986, %v1988
      %v1990 = vrot.slane %v1910, 1
      %v1991 = vsel %vm1956, %v1988, %v1990
      %v1992 = vrot.slane %v1913, 1
      %v1993 = vsel %vm1956, %v1990, %v1992
      %v1994 = vrot.slane %v1915, 1
      %v1995 = vsel %vm1956, %v1992, %v1994
      %v1996 = vrot.slane %v1918, 1
      %v1997 = vsel %vm1956, %v1994, %v1996
      %v1998 = vrot.slane %v1920, 1
      %v1999 = vsel %vm1956, %v1996, %v1998
      %v2000 = vrot.slane %v1923, 1
      %v2001 = vsel %vm1956, %v1998, %v2000
      %v2002 = vrot.slane %v1925, 1
      %v2003 = vsel %vm1956, %v2000, %v2002
      %v2004 = vrot.slane %v1928, 1
      %v2005 = vsel %vm1956, %v2002, %v2004
      %v2031 = vadd.f32 %v1260, %v1959
      %v2032 = vadd.f32 %v1261, %v1961
      %v2033 = vadd.f32 %v1262, %v1963
      %v2034 = vadd.f32 %v1263, %v1965
      %v2035 = vadd.f32 %v1264, %v1967
      %v2036 = vadd.f32 %v1265, %v1969
      %v2037 = vadd.f32 %v1266, %v1971
      %v2038 = vadd.f32 %v1267, %v1973
      %v2039 = vadd.f32 %v1268, %v1975
      %v2040 = vadd.f32 %v1269, %v1977
      %v2041 = vadd.f32 %v1270, %v1979
      %v2042 = vadd.f32 %v1271, %v1981
      %v2043 = vadd.f32 %v1272, %v1983
      %v2044 = vadd.f32 %v1273, %v1985
      %v2045 = vadd.f32 %v1274, %v1987
      %v2046 = vadd.f32 %v1275, %v1989
      %v2047 = vadd.f32 %v1276, %v1991
      %v2048 = vadd.f32 %v1277, %v1993
      %v2049 = vadd.f32 %v1278, %v1995
      %v2050 = vadd.f32 %v1279, %v1997
      %v2051 = vadd.f32 %v1280, %v1999
      %v2052 = vadd.f32 %v1281, %v2001
      %v2053 = vadd.f32 %v1282, %v2003
      %v2054 = vadd.f32 %v1283, %v2005
      %v2055 = vadd.f32 %v1284, %v2004
      %s2056 = scalar_lea.vmem %s1, 560
      %v2057 = vld [vmem:[%s2056] sm:$0xf]
      %v2058 = vld [vmem:[%s2056 + $0x4] sm:$0xf]
      %v2059 = vld [vmem:[%s2056 + $0x8] sm:$0xf]
      %v2060 = vld [vmem:[%s2056 + $0xc] sm:$0xf]
      %v2061 = vld [vmem:[%s2056 + $0x10] sm:$0xf]
      %v2062 = vld [vmem:[%s2056 + $0x14] sm:$0xf]
      %v2063 = vld [vmem:[%s2056 + $0x18] sm:$0xf]
      %v2064 = vld [vmem:[%s2056 + $0x1c] sm:$0xf]
      %v2065 = vld [vmem:[%s2056 + $0x20] sm:$0xf]
      %v2066 = vld [vmem:[%s2056 + $0x24] sm:$0xf]
      %v2067 = vld [vmem:[%s2056 + $0x28] sm:$0xf]
      %v2068 = vld [vmem:[%s2056 + $0x2c] sm:$0xf]
      %v2069 = vld [vmem:[%s2056 + $0x30] sm:$0xf]
      %v2070 = vld [vmem:[%s2056 + $0x34] sm:$0xf]
      %v2071 = vld [vmem:[%s2056 + $0x38] sm:$0xf]
      %v2072 = vld [vmem:[%s2056 + $0x3c] sm:$0xf]
      %v2073 = vld [vmem:[%s2056 + $0x40] sm:$0xf]
      %v2074 = vld [vmem:[%s2056 + $0x44] sm:$0xf]
      %v2075 = vld [vmem:[%s2056 + $0x48] sm:$0xf]
      %v2076 = vld [vmem:[%s2056 + $0x4c] sm:$0xf]
      %v2077 = vld [vmem:[%s2056 + $0x50] sm:$0xf]
      %v2078 = vld [vmem:[%s2056 + $0x54] sm:$0xf]
      %v2079 = vld [vmem:[%s2056 + $0x58] sm:$0xf]
      %v2080 = vld [vmem:[%s2056 + $0x5c] sm:$0xf]
      %v2081 = vld [vmem:[%s2056 + $0x60] sm:$0xf]
      %v2082 = vld [vmem:[%s2056 + $0x64] sm:$0xf]
      %v2083 = vld [vmem:[%s2056 + $0x68] sm:$0xf]
      %v2084 = vld [vmem:[%s2056 + $0x6c] sm:$0xf]
      %v2085 = vld [vmem:[%s2056 + $0x70] sm:$0xf]
      %v2086 = vld [vmem:[%s2056 + $0x74] sm:$0xf]
      %v2087 = vld [vmem:[%s2056 + $0x78] sm:$0xf]
      %v2088 = vld [vmem:[%s2056 + $0x7c] sm:$0xf]
      %v2089 = vld [vmem:[%s2056 + $0x80] sm:$0xf]
      %v2090 = vld [vmem:[%s2056 + $0x84] sm:$0xf]
      %v2091 = vld [vmem:[%s2056 + $0x88] sm:$0xf]
      %v2092 = vld [vmem:[%s2056 + $0x8c] sm:$0xf]
      %v2093 = vld [vmem:[%s2056 + $0x90] sm:$0xf]
      %v2094 = vld [vmem:[%s2056 + $0x94] sm:$0xf]
      %v2095 = vld [vmem:[%s2056 + $0x98] sm:$0xf]
      %v2096 = vld [vmem:[%s2056 + $0x9c] sm:$0xf]
      %v2097 = vld [vmem:[%s2056 + $0xa0] sm:$0xf]
      %v2098 = vld [vmem:[%s2056 + $0xa4] sm:$0xf]
      %v2099 = vld [vmem:[%s2056 + $0xa8] sm:$0xf]
      %v2100 = vld [vmem:[%s2056 + $0xac] sm:$0xf]
      %v2101 = vld [vmem:[%s2056 + $0xb0] sm:$0xf]
      %v2102 = vld [vmem:[%s2056 + $0xb4] sm:$0xf]
      %v2103 = vld [vmem:[%s2056 + $0xb8] sm:$0xf]
      %v2104 = vld [vmem:[%s2056 + $0xbc] sm:$0xf]
      %v2105 = vld [vmem:[%s2056 + $0xc0] sm:$0xf]
      %v2106 = vld [vmem:[%s2056 + $0xc4] sm:$0xf]
      %v2107 = vld [vmem:[%s2056 + $0xc8] sm:$0xf]
      %v2108 = vld [vmem:[%s2056 + $0xcc] sm:$0xf]
      %v2109 = vld [vmem:[%s2056 + $0xd0] sm:$0xf]
      %v2110 = vld [vmem:[%s2056 + $0xd4] sm:$0xf]
      %v2111 = vld [vmem:[%s2056 + $0xd8] sm:$0xf]
      %v2112 = vld [vmem:[%s2056 + $0xdc] sm:$0xf]
      %v2113 = vld [vmem:[%s2056 + $0xe0] sm:$0xf]
      %v2114 = vld [vmem:[%s2056 + $0xe4] sm:$0xf]
      %v2115 = vld [vmem:[%s2056 + $0xe8] sm:$0xf]
      %v2116 = vld [vmem:[%s2056 + $0xec] sm:$0xf]
      %v2117 = vld [vmem:[%s2056 + $0xf0] sm:$0xf]
      %v2118 = vld [vmem:[%s2056 + $0xf4] sm:$0xf]
      %v2119 = vld [vmem:[%s2056 + $0xf8] sm:$0xf]
      %v2120 = vld [vmem:[%s2056 + $0xfc] sm:$0xf]
      %v2121 = vld [vmem:[%s2056 + $0x100] sm:$0xf]
      %v2122 = vld [vmem:[%s2056 + $0x104] sm:$0xf]
      %v2123 = vld [vmem:[%s2056 + $0x108] sm:$0xf]
      %v2124 = vld [vmem:[%s2056 + $0x10c] sm:$0xf]
      %v2125 = vld [vmem:[%s2056 + $0x110] sm:$0xf]
      %v2126 = vld [vmem:[%s2056 + $0x114] sm:$0xf]
      %v2197 = vunpack.c.l.b16 %v2057
      %v2198 = vunpack.c.l.b16 %v2058
      %v2199 = vunpack.c.l.b16 %v2059
      %v2200 = vunpack.c.l.b16 %v2060
      %v2201 = vunpack.c.l.b16 %v2061
      %v2202 = vunpack.c.l.b16 %v2062
      %v2203 = vunpack.c.l.b16 %v2063
      %v2204 = vunpack.c.l.b16 %v2064
      %v2205 = vunpack.c.l.b16 %v2065
      %v2206 = vunpack.c.l.b16 %v2066
      %v2207 = vunpack.c.l.b16 %v2067
      %v2208 = vunpack.c.l.b16 %v2068
      %v2209 = vunpack.c.l.b16 %v2069
      %v2210 = vunpack.c.l.b16 %v2070
      %v2211 = vunpack.c.l.b16 %v2071
      %v2212 = vunpack.c.l.b16 %v2072
      %v2213 = vunpack.c.l.b16 %v2073
      %v2214 = vunpack.c.l.b16 %v2074
      %v2215 = vunpack.c.l.b16 %v2075
      %v2216 = vunpack.c.l.b16 %v2076
      %v2217 = vunpack.c.l.b16 %v2077
      %v2218 = vunpack.c.l.b16 %v2078
      %v2219 = vunpack.c.l.b16 %v2079
      %v2220 = vunpack.c.l.b16 %v2080
      %v2221 = vunpack.c.l.b16 %v2081
      %v2222 = vunpack.c.l.b16 %v2082
      %v2223 = vunpack.c.l.b16 %v2083
      %v2224 = vunpack.c.l.b16 %v2084
      %v2225 = vunpack.c.l.b16 %v2085
      %v2226 = vunpack.c.l.b16 %v2086
      %v2227 = vunpack.c.l.b16 %v2087
      %v2228 = vunpack.c.l.b16 %v2088
      %v2229 = vunpack.c.l.b16 %v2089
      %v2230 = vunpack.c.l.b16 %v2090
      %v2231 = vunpack.c.l.b16 %v2091
      %v2232 = vunpack.c.l.b16 %v2092
      %v2233 = vunpack.c.l.b16 %v2093
      %v2234 = vunpack.c.l.b16 %v2094
      %v2235 = vunpack.c.l.b16 %v2095
      %v2236 = vunpack.c.l.b16 %v2096
      %v2237 = vunpack.c.l.b16 %v2097
      %v2238 = vunpack.c.l.b16 %v2098
      %v2239 = vunpack.c.l.b16 %v2099
      %v2240 = vunpack.c.l.b16 %v2100
      %v2241 = vunpack.c.l.b16 %v2101
      %v2242 = vunpack.c.l.b16 %v2102
      %v2243 = vunpack.c.l.b16 %v2103
      %v2244 = vunpack.c.l.b16 %v2104
      %v2245 = vunpack.c.l.b16 %v2105
      %v2246 = vunpack.c.l.b16 %v2106
      %v2247 = vunpack.c.l.b16 %v2107
      %v2248 = vunpack.c.l.b16 %v2108
      %v2249 = vunpack.c.l.b16 %v2109
      %v2250 = vunpack.c.l.b16 %v2110
      %v2251 = vunpack.c.l.b16 %v2111
      %v2252 = vunpack.c.l.b16 %v2112
      %v2253 = vunpack.c.l.b16 %v2113
      %v2254 = vunpack.c.l.b16 %v2114
      %v2255 = vunpack.c.l.b16 %v2115
      %v2256 = vunpack.c.l.b16 %v2116
      %v2257 = vunpack.c.l.b16 %v2117
      %v2258 = vunpack.c.l.b16 %v2118
      %v2259 = vunpack.c.l.b16 %v2119
      %v2260 = vunpack.c.l.b16 %v2120
      %v2261 = vunpack.c.l.b16 %v2121
      %v2262 = vunpack.c.l.b16 %v2122
      %v2263 = vunpack.c.l.b16 %v2123
      %v2264 = vunpack.c.l.b16 %v2124
      %v2265 = vunpack.c.l.b16 %v2125
      %v2266 = vunpack.c.l.b16 %v2126
      %v2267 = vpack.c.b16 %v2198, %v2197
      %v2268 = vpack.c.b16 %v2200, %v2199
      %v2269 = vpack.c.b16 %v2202, %v2201
      %v2270 = vpack.c.b16 %v2204, %v2203
      %v2271 = vpack.c.b16 %v2206, %v2205
      %v2272 = vpack.c.b16 %v2208, %v2207
      %v2273 = vpack.c.b16 %v2210, %v2209
      %v2274 = vpack.c.b16 %v2212, %v2211
      %v2275 = vpack.c.b16 %v2214, %v2213
      %v2276 = vpack.c.b16 %v2216, %v2215
      %v2277 = vpack.c.b16 %v2218, %v2217
      %v2278 = vpack.c.b16 %v2220, %v2219
      %v2279 = vpack.c.b16 %v2222, %v2221
      %v2280 = vpack.c.b16 %v2224, %v2223
      %v2281 = vpack.c.b16 %v2226, %v2225
      %v2282 = vpack.c.b16 %v2228, %v2227
      %v2283 = vpack.c.b16 %v2230, %v2229
      %v2284 = vpack.c.b16 %v2232, %v2231
      %v2285 = vpack.c.b16 %v2234, %v2233
      %v2286 = vpack.c.b16 %v2236, %v2235
      %v2287 = vpack.c.b16 %v2238, %v2237
      %v2288 = vpack.c.b16 %v2240, %v2239
      %v2289 = vpack.c.b16 %v2242, %v2241
      %v2290 = vpack.c.b16 %v2244, %v2243
      %v2291 = vpack.c.b16 %v2246, %v2245
      %v2292 = vpack.c.b16 %v2248, %v2247
      %v2293 = vpack.c.b16 %v2250, %v2249
      %v2294 = vpack.c.b16 %v2252, %v2251
      %v2295 = vpack.c.b16 %v2254, %v2253
      %v2296 = vpack.c.b16 %v2256, %v2255
      %v2297 = vpack.c.b16 %v2258, %v2257
      %v2298 = vpack.c.b16 %v2260, %v2259
      %v2299 = vpack.c.b16 %v2262, %v2261
      %v2300 = vpack.c.b16 %v2264, %v2263
      %v2301 = vpack.c.b16 %v2266, %v2265
      %2337 = vmatpush.bf16.msra.mxu0 %v2274
      %2338 = vmatpush.bf16.msra.mxu0 %v2273
      %2339 = vmatpush.bf16.msra.mxu0 %v2272
      %2340 = vmatpush.bf16.msra.mxu0 %v2271
      %2341 = vmatpush.bf16.msra.mxu0 %v2270
      %2342 = vmatpush.bf16.msra.mxu0 %v2269
      %2343 = vmatpush.bf16.msra.mxu0 %v2268
      %2344 = vmatpush.bf16.msra.mxu0 %v2267
      %2345 = vmatmul.bf16.gmra.mxu0 %v528
      %v2346 = vpop.f32.mrf.mxu0
      %v2347 = vadd.f32 0.0, %v2346
      %v2348 = vpop.f32.mrf.mxu0
      %v2349 = vadd.f32 0.0, %v2348
      %2350 = vmatmul.bf16.gmra.mxu0 %v533
      %v2351 = vpop.f32.mrf.mxu0
      %v2352 = vadd.f32 0.0, %v2351
      %v2353 = vpop.f32.mrf.mxu0
      %v2354 = vadd.f32 0.0, %v2353
      %2355 = vmatmul.bf16.gmra.mxu0 %v538
      %v2356 = vpop.f32.mrf.mxu0
      %v2357 = vadd.f32 0.0, %v2356
      %v2358 = vpop.f32.mrf.mxu0
      %v2359 = vadd.f32 0.0, %v2358
      %2360 = vmatmul.bf16.gmra.mxu0 %v543
      %v2361 = vpop.f32.mrf.mxu0
      %v2362 = vadd.f32 0.0, %v2361
      %v2363 = vpop.f32.mrf.mxu0
      %v2364 = vadd.f32 0.0, %v2363
      %2365 = vmatmul.bf16.gmra.mxu0 %v548
      %v2366 = vpop.f32.mrf.mxu0
      %v2367 = vadd.f32 0.0, %v2366
      %v2368 = vpop.f32.mrf.mxu0
      %v2369 = vadd.f32 0.0, %v2368
      %2370 = vmatmul.bf16.gmra.mxu0 %v553
      %v2371 = vpop.f32.mrf.mxu0
      %v2372 = vadd.f32 0.0, %v2371
      %v2373 = vpop.f32.mrf.mxu0
      %v2374 = vadd.f32 0.0, %v2373
      %2375 = vmatmul.bf16.gmra.mxu0 %v558
      %v2376 = vpop.f32.mrf.mxu0
      %v2377 = vadd.f32 0.0, %v2376
      %v2378 = vpop.f32.mrf.mxu0
      %v2379 = vadd.f32 0.0, %v2378
      %2380 = vmatmul.bf16.gmra.mxu0 %v563
      %v2381 = vpop.f32.mrf.mxu0
      %v2382 = vadd.f32 0.0, %v2381
      %v2383 = vpop.f32.mrf.mxu0
      %v2384 = vadd.f32 0.0, %v2383
      %2385 = vmatmul.bf16.gmra.mxu0 %v568
      %v2386 = vpop.f32.mrf.mxu0
      %v2387 = vadd.f32 0.0, %v2386
      %v2388 = vpop.f32.mrf.mxu0
      %v2389 = vadd.f32 0.0, %v2388
      %2390 = vmatmul.bf16.gmra.mxu0 %v573
      %v2391 = vpop.f32.mrf.mxu0
      %v2392 = vadd.f32 0.0, %v2391
      %v2393 = vpop.f32.mrf.mxu0
      %v2394 = vadd.f32 0.0, %v2393
      %2395 = vmatmul.bf16.gmra.mxu0 %v578
      %v2396 = vpop.f32.mrf.mxu0
      %v2397 = vadd.f32 0.0, %v2396
      %v2398 = vpop.f32.mrf.mxu0
      %v2399 = vadd.f32 0.0, %v2398
      %2400 = vmatmul.bf16.gmra.mxu0 %v583
      %v2401 = vpop.f32.mrf.mxu0
      %v2402 = vadd.f32 0.0, %v2401
      %v2403 = vpop.f32.mrf.mxu0
      %v2404 = vadd.f32 0.0, %v2403
      %2405 = vmatmul.bf16.gmra.mxu0 %v588
      %v2406 = vpop.f32.mrf.mxu0
      %v2407 = vadd.f32 0.0, %v2406
      %v2408 = vpop.f32.mrf.mxu0
      %2409 = vdwg.mxu0
      %2410 = vmatpush.bf16.msra.mxu0 %v2282
      %2411 = vmatpush.bf16.msra.mxu0 %v2281
      %2412 = vmatpush.bf16.msra.mxu0 %v2280
      %2413 = vmatpush.bf16.msra.mxu0 %v2279
      %2414 = vmatpush.bf16.msra.mxu0 %v2278
      %2415 = vmatpush.bf16.msra.mxu0 %v2277
      %2416 = vmatpush.bf16.msra.mxu0 %v2276
      %2417 = vmatpush.bf16.msra.mxu0 %v2275
      %2418 = vmatmul.bf16.gmra.mxu0 %v529
      %v2419 = vpop.f32.mrf.mxu0
      %v2420 = vadd.f32 %v2347, %v2419
      %v2421 = vpop.f32.mrf.mxu0
      %v2422 = vadd.f32 %v2349, %v2421
      %2423 = vmatmul.bf16.gmra.mxu0 %v534
      %v2424 = vpop.f32.mrf.mxu0
      %v2425 = vadd.f32 %v2352, %v2424
      %v2426 = vpop.f32.mrf.mxu0
      %v2427 = vadd.f32 %v2354, %v2426
      %2428 = vmatmul.bf16.gmra.mxu0 %v539
      %v2429 = vpop.f32.mrf.mxu0
      %v2430 = vadd.f32 %v2357, %v2429
      %v2431 = vpop.f32.mrf.mxu0
      %v2432 = vadd.f32 %v2359, %v2431
      %2433 = vmatmul.bf16.gmra.mxu0 %v544
      %v2434 = vpop.f32.mrf.mxu0
      %v2435 = vadd.f32 %v2362, %v2434
      %v2436 = vpop.f32.mrf.mxu0
      %v2437 = vadd.f32 %v2364, %v2436
      %2438 = vmatmul.bf16.gmra.mxu0 %v549
      %v2439 = vpop.f32.mrf.mxu0
      %v2440 = vadd.f32 %v2367, %v2439
      %v2441 = vpop.f32.mrf.mxu0
      %v2442 = vadd.f32 %v2369, %v2441
      %2443 = vmatmul.bf16.gmra.mxu0 %v554
      %v2444 = vpop.f32.mrf.mxu0
      %v2445 = vadd.f32 %v2372, %v2444
      %v2446 = vpop.f32.mrf.mxu0
      %v2447 = vadd.f32 %v2374, %v2446
      %2448 = vmatmul.bf16.gmra.mxu0 %v559
      %v2449 = vpop.f32.mrf.mxu0
      %v2450 = vadd.f32 %v2377, %v2449
      %v2451 = vpop.f32.mrf.mxu0
      %v2452 = vadd.f32 %v2379, %v2451
      %2453 = vmatmul.bf16.gmra.mxu0 %v564
      %v2454 = vpop.f32.mrf.mxu0
      %v2455 = vadd.f32 %v2382, %v2454
      %v2456 = vpop.f32.mrf.mxu0
      %v2457 = vadd.f32 %v2384, %v2456
      %2458 = vmatmul.bf16.gmra.mxu0 %v569
      %v2459 = vpop.f32.mrf.mxu0
      %v2460 = vadd.f32 %v2387, %v2459
      %v2461 = vpop.f32.mrf.mxu0
      %v2462 = vadd.f32 %v2389, %v2461
      %2463 = vmatmul.bf16.gmra.mxu0 %v574
      %v2464 = vpop.f32.mrf.mxu0
      %v2465 = vadd.f32 %v2392, %v2464
      %v2466 = vpop.f32.mrf.mxu0
      %v2467 = vadd.f32 %v2394, %v2466
      %2468 = vmatmul.bf16.gmra.mxu0 %v579
      %v2469 = vpop.f32.mrf.mxu0
      %v2470 = vadd.f32 %v2397, %v2469
      %v2471 = vpop.f32.mrf.mxu0
      %v2472 = vadd.f32 %v2399, %v2471
      %2473 = vmatmul.bf16.gmra.mxu0 %v584
      %v2474 = vpop.f32.mrf.mxu0
      %v2475 = vadd.f32 %v2402, %v2474
      %v2476 = vpop.f32.mrf.mxu0
      %v2477 = vadd.f32 %v2404, %v2476
      %2478 = vmatmul.bf16.gmra.mxu0 %v589
      %v2479 = vpop.f32.mrf.mxu0
      %v2480 = vadd.f32 %v2407, %v2479
      %v2481 = vpop.f32.mrf.mxu0
      %2482 = vdwg.mxu0
      %2483 = vmatpush.bf16.msra.mxu0 %v2290
      %2484 = vmatpush.bf16.msra.mxu0 %v2289
      %2485 = vmatpush.bf16.msra.mxu0 %v2288
      %2486 = vmatpush.bf16.msra.mxu0 %v2287
      %2487 = vmatpush.bf16.msra.mxu0 %v2286
      %2488 = vmatpush.bf16.msra.mxu0 %v2285
      %2489 = vmatpush.bf16.msra.mxu0 %v2284
      %2490 = vmatpush.bf16.msra.mxu0 %v2283
      %2491 = vmatmul.bf16.gmra.mxu0 %v530
      %v2492 = vpop.f32.mrf.mxu0
      %v2493 = vadd.f32 %v2420, %v2492
      %v2494 = vpop.f32.mrf.mxu0
      %v2495 = vadd.f32 %v2422, %v2494
      %2496 = vmatmul.bf16.gmra.mxu0 %v535
      %v2497 = vpop.f32.mrf.mxu0
      %v2498 = vadd.f32 %v2425, %v2497
      %v2499 = vpop.f32.mrf.mxu0
      %v2500 = vadd.f32 %v2427, %v2499
      %2501 = vmatmul.bf16.gmra.mxu0 %v540
      %v2502 = vpop.f32.mrf.mxu0
      %v2503 = vadd.f32 %v2430, %v2502
      %v2504 = vpop.f32.mrf.mxu0
      %v2505 = vadd.f32 %v2432, %v2504
      %2506 = vmatmul.bf16.gmra.mxu0 %v545
      %v2507 = vpop.f32.mrf.mxu0
      %v2508 = vadd.f32 %v2435, %v2507
      %v2509 = vpop.f32.mrf.mxu0
      %v2510 = vadd.f32 %v2437, %v2509
      %2511 = vmatmul.bf16.gmra.mxu0 %v550
      %v2512 = vpop.f32.mrf.mxu0
      %v2513 = vadd.f32 %v2440, %v2512
      %v2514 = vpop.f32.mrf.mxu0
      %v2515 = vadd.f32 %v2442, %v2514
      %2516 = vmatmul.bf16.gmra.mxu0 %v555
      %v2517 = vpop.f32.mrf.mxu0
      %v2518 = vadd.f32 %v2445, %v2517
      %v2519 = vpop.f32.mrf.mxu0
      %v2520 = vadd.f32 %v2447, %v2519
      %2521 = vmatmul.bf16.gmra.mxu0 %v560
      %v2522 = vpop.f32.mrf.mxu0
      %v2523 = vadd.f32 %v2450, %v2522
      %v2524 = vpop.f32.mrf.mxu0
      %v2525 = vadd.f32 %v2452, %v2524
      %2526 = vmatmul.bf16.gmra.mxu0 %v565
      %v2527 = vpop.f32.mrf.mxu0
      %v2528 = vadd.f32 %v2455, %v2527
      %v2529 = vpop.f32.mrf.mxu0
      %v2530 = vadd.f32 %v2457, %v2529
      %2531 = vmatmul.bf16.gmra.mxu0 %v570
      %v2532 = vpop.f32.mrf.mxu0
      %v2533 = vadd.f32 %v2460, %v2532
      %v2534 = vpop.f32.mrf.mxu0
      %v2535 = vadd.f32 %v2462, %v2534
      %2536 = vmatmul.bf16.gmra.mxu0 %v575
      %v2537 = vpop.f32.mrf.mxu0
      %v2538 = vadd.f32 %v2465, %v2537
      %v2539 = vpop.f32.mrf.mxu0
      %v2540 = vadd.f32 %v2467, %v2539
      %2541 = vmatmul.bf16.gmra.mxu0 %v580
      %v2542 = vpop.f32.mrf.mxu0
      %v2543 = vadd.f32 %v2470, %v2542
      %v2544 = vpop.f32.mrf.mxu0
      %v2545 = vadd.f32 %v2472, %v2544
      %2546 = vmatmul.bf16.gmra.mxu0 %v585
      %v2547 = vpop.f32.mrf.mxu0
      %v2548 = vadd.f32 %v2475, %v2547
      %v2549 = vpop.f32.mrf.mxu0
      %v2550 = vadd.f32 %v2477, %v2549
      %2551 = vmatmul.bf16.gmra.mxu0 %v590
      %v2552 = vpop.f32.mrf.mxu0
      %v2553 = vadd.f32 %v2480, %v2552
      %v2554 = vpop.f32.mrf.mxu0
      %2555 = vdwg.mxu0
      %2556 = vmatpush.bf16.msra.mxu0 %v2298
      %2557 = vmatpush.bf16.msra.mxu0 %v2297
      %2558 = vmatpush.bf16.msra.mxu0 %v2296
      %2559 = vmatpush.bf16.msra.mxu0 %v2295
      %2560 = vmatpush.bf16.msra.mxu0 %v2294
      %2561 = vmatpush.bf16.msra.mxu0 %v2293
      %2562 = vmatpush.bf16.msra.mxu0 %v2292
      %2563 = vmatpush.bf16.msra.mxu0 %v2291
      %2564 = vmatmul.bf16.gmra.mxu0 %v531
      %v2565 = vpop.f32.mrf.mxu0
      %v2566 = vadd.f32 %v2493, %v2565
      %v2567 = vpop.f32.mrf.mxu0
      %v2568 = vadd.f32 %v2495, %v2567
      %2569 = vmatmul.bf16.gmra.mxu0 %v536
      %v2570 = vpop.f32.mrf.mxu0
      %v2571 = vadd.f32 %v2498, %v2570
      %v2572 = vpop.f32.mrf.mxu0
      %v2573 = vadd.f32 %v2500, %v2572
      %2574 = vmatmul.bf16.gmra.mxu0 %v541
      %v2575 = vpop.f32.mrf.mxu0
      %v2576 = vadd.f32 %v2503, %v2575
      %v2577 = vpop.f32.mrf.mxu0
      %v2578 = vadd.f32 %v2505, %v2577
      %2579 = vmatmul.bf16.gmra.mxu0 %v546
      %v2580 = vpop.f32.mrf.mxu0
      %v2581 = vadd.f32 %v2508, %v2580
      %v2582 = vpop.f32.mrf.mxu0
      %v2583 = vadd.f32 %v2510, %v2582
      %2584 = vmatmul.bf16.gmra.mxu0 %v551
      %v2585 = vpop.f32.mrf.mxu0
      %v2586 = vadd.f32 %v2513, %v2585
      %v2587 = vpop.f32.mrf.mxu0
      %v2588 = vadd.f32 %v2515, %v2587
      %2589 = vmatmul.bf16.gmra.mxu0 %v556
      %v2590 = vpop.f32.mrf.mxu0
      %v2591 = vadd.f32 %v2518, %v2590
      %v2592 = vpop.f32.mrf.mxu0
      %v2593 = vadd.f32 %v2520, %v2592
      %2594 = vmatmul.bf16.gmra.mxu0 %v561
      %v2595 = vpop.f32.mrf.mxu0
      %v2596 = vadd.f32 %v2523, %v2595
      %v2597 = vpop.f32.mrf.mxu0
      %v2598 = vadd.f32 %v2525, %v2597
      %2599 = vmatmul.bf16.gmra.mxu0 %v566
      %v2600 = vpop.f32.mrf.mxu0
      %v2601 = vadd.f32 %v2528, %v2600
      %v2602 = vpop.f32.mrf.mxu0
      %v2603 = vadd.f32 %v2530, %v2602
      %2604 = vmatmul.bf16.gmra.mxu0 %v571
      %v2605 = vpop.f32.mrf.mxu0
      %v2606 = vadd.f32 %v2533, %v2605
      %v2607 = vpop.f32.mrf.mxu0
      %v2608 = vadd.f32 %v2535, %v2607
      %2609 = vmatmul.bf16.gmra.mxu0 %v576
      %v2610 = vpop.f32.mrf.mxu0
      %v2611 = vadd.f32 %v2538, %v2610
      %v2612 = vpop.f32.mrf.mxu0
      %v2613 = vadd.f32 %v2540, %v2612
      %2614 = vmatmul.bf16.gmra.mxu0 %v581
      %v2615 = vpop.f32.mrf.mxu0
      %v2616 = vadd.f32 %v2543, %v2615
      %v2617 = vpop.f32.mrf.mxu0
      %v2618 = vadd.f32 %v2545, %v2617
      %2619 = vmatmul.bf16.gmra.mxu0 %v586
      %v2620 = vpop.f32.mrf.mxu0
      %v2621 = vadd.f32 %v2548, %v2620
      %v2622 = vpop.f32.mrf.mxu0
      %v2623 = vadd.f32 %v2550, %v2622
      %2624 = vmatmul.bf16.gmra.mxu0 %v591
      %v2625 = vpop.f32.mrf.mxu0
      %v2626 = vadd.f32 %v2553, %v2625
      %v2627 = vpop.f32.mrf.mxu0
      %2628 = vdwg.mxu0
      %2629 = vmatpush.bf16.msra.mxu0 0
      %2630 = vmatpush.bf16.msra.mxu0 0
      %2631 = vmatpush.bf16.msra.mxu0 0
      %2632 = vmatpush.bf16.msra.mxu0 0
      %2633 = vmatpush.bf16.msra.mxu0 0
      %2634 = vmatpush.bf16.msra.mxu0 %v2301
      %2635 = vmatpush.bf16.msra.mxu0 %v2300
      %2636 = vmatpush.bf16.msra.mxu0 %v2299
      %2637 = vmatmul.bf16.gmra.mxu0 %v857
      %v2638 = vpop.f32.mrf.mxu0
      %v2639 = vadd.f32 %v2566, %v2638
      %v2640 = vpop.f32.mrf.mxu0
      %v2641 = vadd.f32 %v2568, %v2640
      %2642 = vmatmul.bf16.gmra.mxu0 %v860
      %v2643 = vpop.f32.mrf.mxu0
      %v2644 = vadd.f32 %v2571, %v2643
      %v2645 = vpop.f32.mrf.mxu0
      %v2646 = vadd.f32 %v2573, %v2645
      %2647 = vmatmul.bf16.gmra.mxu0 %v863
      %v2648 = vpop.f32.mrf.mxu0
      %v2649 = vadd.f32 %v2576, %v2648
      %v2650 = vpop.f32.mrf.mxu0
      %v2651 = vadd.f32 %v2578, %v2650
      %2652 = vmatmul.bf16.gmra.mxu0 %v866
      %v2653 = vpop.f32.mrf.mxu0
      %v2654 = vadd.f32 %v2581, %v2653
      %v2655 = vpop.f32.mrf.mxu0
      %v2656 = vadd.f32 %v2583, %v2655
      %2657 = vmatmul.bf16.gmra.mxu0 %v869
      %v2658 = vpop.f32.mrf.mxu0
      %v2659 = vadd.f32 %v2586, %v2658
      %v2660 = vpop.f32.mrf.mxu0
      %v2661 = vadd.f32 %v2588, %v2660
      %2662 = vmatmul.bf16.gmra.mxu0 %v872
      %v2663 = vpop.f32.mrf.mxu0
      %v2664 = vadd.f32 %v2591, %v2663
      %v2665 = vpop.f32.mrf.mxu0
      %v2666 = vadd.f32 %v2593, %v2665
      %2667 = vmatmul.bf16.gmra.mxu0 %v875
      %v2668 = vpop.f32.mrf.mxu0
      %v2669 = vadd.f32 %v2596, %v2668
      %v2670 = vpop.f32.mrf.mxu0
      %v2671 = vadd.f32 %v2598, %v2670
      %2672 = vmatmul.bf16.gmra.mxu0 %v878
      %v2673 = vpop.f32.mrf.mxu0
      %v2674 = vadd.f32 %v2601, %v2673
      %v2675 = vpop.f32.mrf.mxu0
      %v2676 = vadd.f32 %v2603, %v2675
      %2677 = vmatmul.bf16.gmra.mxu0 %v881
      %v2678 = vpop.f32.mrf.mxu0
      %v2679 = vadd.f32 %v2606, %v2678
      %v2680 = vpop.f32.mrf.mxu0
      %v2681 = vadd.f32 %v2608, %v2680
      %2682 = vmatmul.bf16.gmra.mxu0 %v884
      %v2683 = vpop.f32.mrf.mxu0
      %v2684 = vadd.f32 %v2611, %v2683
      %v2685 = vpop.f32.mrf.mxu0
      %v2686 = vadd.f32 %v2613, %v2685
      %2687 = vmatmul.bf16.gmra.mxu0 %v887
      %v2688 = vpop.f32.mrf.mxu0
      %v2689 = vadd.f32 %v2616, %v2688
      %v2690 = vpop.f32.mrf.mxu0
      %v2691 = vadd.f32 %v2618, %v2690
      %2692 = vmatmul.bf16.gmra.mxu0 %v890
      %v2693 = vpop.f32.mrf.mxu0
      %v2694 = vadd.f32 %v2621, %v2693
      %v2695 = vpop.f32.mrf.mxu0
      %v2696 = vadd.f32 %v2623, %v2695
      %2697 = vmatmul.bf16.gmra.mxu0 %v893
      %v2698 = vpop.f32.mrf.mxu0
      %v2699 = vadd.f32 %v2626, %v2698
      %v2700 = vpop.f32.mrf.mxu0
      %2701 = vdwg.mxu0
      %vm2727 = vcmask 1045504
      %v2728 = vrot.slane %v2639, 2
      %v2729 = vrot.slane %v2641, 2
      %v2730 = vsel %vm2727, %v2728, %v2729
      %v2731 = vrot.slane %v2644, 2
      %v2732 = vsel %vm2727, %v2729, %v2731
      %v2733 = vrot.slane %v2646, 2
      %v2734 = vsel %vm2727, %v2731, %v2733
      %v2735 = vrot.slane %v2649, 2
      %v2736 = vsel %vm2727, %v2733, %v2735
      %v2737 = vrot.slane %v2651, 2
      %v2738 = vsel %vm2727, %v2735, %v2737
      %v2739 = vrot.slane %v2654, 2
      %v2740 = vsel %vm2727, %v2737, %v2739
      %v2741 = vrot.slane %v2656, 2
      %v2742 = vsel %vm2727, %v2739, %v2741
      %v2743 = vrot.slane %v2659, 2
      %v2744 = vsel %vm2727, %v2741, %v2743
      %v2745 = vrot.slane %v2661, 2
      %v2746 = vsel %vm2727, %v2743, %v2745
      %v2747 = vrot.slane %v2664, 2
      %v2748 = vsel %vm2727, %v2745, %v2747
      %v2749 = vrot.slane %v2666, 2
      %v2750 = vsel %vm2727, %v2747, %v2749
      %v2751 = vrot.slane %v2669, 2
      %v2752 = vsel %vm2727, %v2749, %v2751
      %v2753 = vrot.slane %v2671, 2
      %v2754 = vsel %vm2727, %v2751, %v2753
      %v2755 = vrot.slane %v2674, 2
      %v2756 = vsel %vm2727, %v2753, %v2755
      %v2757 = vrot.slane %v2676, 2
      %v2758 = vsel %vm2727, %v2755, %v2757
      %v2759 = vrot.slane %v2679, 2
      %v2760 = vsel %vm2727, %v2757, %v2759
      %v2761 = vrot.slane %v2681, 2
      %v2762 = vsel %vm2727, %v2759, %v2761
      %v2763 = vrot.slane %v2684, 2
      %v2764 = vsel %vm2727, %v2761, %v2763
      %v2765 = vrot.slane %v2686, 2
      %v2766 = vsel %vm2727, %v2763, %v2765
      %v2767 = vrot.slane %v2689, 2
      %v2768 = vsel %vm2727, %v2765, %v2767
      %v2769 = vrot.slane %v2691, 2
      %v2770 = vsel %vm2727, %v2767, %v2769
      %v2771 = vrot.slane %v2694, 2
      %v2772 = vsel %vm2727, %v2769, %v2771
      %v2773 = vrot.slane %v2696, 2
      %v2774 = vsel %vm2727, %v2771, %v2773
      %v2775 = vrot.slane %v2699, 2
      %v2776 = vsel %vm2727, %v2773, %v2775
      %v2802 = vadd.f32 %v2031, %v2730
      %v2803 = vadd.f32 %v2032, %v2732
      %v2804 = vadd.f32 %v2033, %v2734
      %v2805 = vadd.f32 %v2034, %v2736
      %v2806 = vadd.f32 %v2035, %v2738
      %v2807 = vadd.f32 %v2036, %v2740
      %v2808 = vadd.f32 %v2037, %v2742
      %v2809 = vadd.f32 %v2038, %v2744
      %v2810 = vadd.f32 %v2039, %v2746
      %v2811 = vadd.f32 %v2040, %v2748
      %v2812 = vadd.f32 %v2041, %v2750
      %v2813 = vadd.f32 %v2042, %v2752
      %v2814 = vadd.f32 %v2043, %v2754
      %v2815 = vadd.f32 %v2044, %v2756
      %v2816 = vadd.f32 %v2045, %v2758
      %v2817 = vadd.f32 %v2046, %v2760
      %v2818 = vadd.f32 %v2047, %v2762
      %v2819 = vadd.f32 %v2048, %v2764
      %v2820 = vadd.f32 %v2049, %v2766
      %v2821 = vadd.f32 %v2050, %v2768
      %v2822 = vadd.f32 %v2051, %v2770
      %v2823 = vadd.f32 %v2052, %v2772
      %v2824 = vadd.f32 %v2053, %v2774
      %v2825 = vadd.f32 %v2054, %v2776
      %v2826 = vadd.f32 %v2055, %v2775
      %s2827 = scalar_lea.vmem %s1, 840
      %v2828 = vld [vmem:[%s2827] sm:$0xf]
      %v2829 = vld [vmem:[%s2827 + $0x4] sm:$0xf]
      %v2830 = vld [vmem:[%s2827 + $0x8] sm:$0xf]
      %v2831 = vld [vmem:[%s2827 + $0xc] sm:$0xf]
      %v2832 = vld [vmem:[%s2827 + $0x10] sm:$0xf]
      %v2833 = vld [vmem:[%s2827 + $0x14] sm:$0xf]
      %v2834 = vld [vmem:[%s2827 + $0x18] sm:$0xf]
      %v2835 = vld [vmem:[%s2827 + $0x1c] sm:$0xf]
      %v2836 = vld [vmem:[%s2827 + $0x20] sm:$0xf]
      %v2837 = vld [vmem:[%s2827 + $0x24] sm:$0xf]
      %v2838 = vld [vmem:[%s2827 + $0x28] sm:$0xf]
      %v2839 = vld [vmem:[%s2827 + $0x2c] sm:$0xf]
      %v2840 = vld [vmem:[%s2827 + $0x30] sm:$0xf]
      %v2841 = vld [vmem:[%s2827 + $0x34] sm:$0xf]
      %v2842 = vld [vmem:[%s2827 + $0x38] sm:$0xf]
      %v2843 = vld [vmem:[%s2827 + $0x3c] sm:$0xf]
      %v2844 = vld [vmem:[%s2827 + $0x40] sm:$0xf]
      %v2845 = vld [vmem:[%s2827 + $0x44] sm:$0xf]
      %v2846 = vld [vmem:[%s2827 + $0x48] sm:$0xf]
      %v2847 = vld [vmem:[%s2827 + $0x4c] sm:$0xf]
      %v2848 = vld [vmem:[%s2827 + $0x50] sm:$0xf]
      %v2849 = vld [vmem:[%s2827 + $0x54] sm:$0xf]
      %v2850 = vld [vmem:[%s2827 + $0x58] sm:$0xf]
      %v2851 = vld [vmem:[%s2827 + $0x5c] sm:$0xf]
      %v2852 = vld [vmem:[%s2827 + $0x60] sm:$0xf]
      %v2853 = vld [vmem:[%s2827 + $0x64] sm:$0xf]
      %v2854 = vld [vmem:[%s2827 + $0x68] sm:$0xf]
      %v2855 = vld [vmem:[%s2827 + $0x6c] sm:$0xf]
      %v2856 = vld [vmem:[%s2827 + $0x70] sm:$0xf]
      %v2857 = vld [vmem:[%s2827 + $0x74] sm:$0xf]
      %v2858 = vld [vmem:[%s2827 + $0x78] sm:$0xf]
      %v2859 = vld [vmem:[%s2827 + $0x7c] sm:$0xf]
      %v2860 = vld [vmem:[%s2827 + $0x80] sm:$0xf]
      %v2861 = vld [vmem:[%s2827 + $0x84] sm:$0xf]
      %v2862 = vld [vmem:[%s2827 + $0x88] sm:$0xf]
      %v2863 = vld [vmem:[%s2827 + $0x8c] sm:$0xf]
      %v2864 = vld [vmem:[%s2827 + $0x90] sm:$0xf]
      %v2865 = vld [vmem:[%s2827 + $0x94] sm:$0xf]
      %v2866 = vld [vmem:[%s2827 + $0x98] sm:$0xf]
      %v2867 = vld [vmem:[%s2827 + $0x9c] sm:$0xf]
      %v2868 = vld [vmem:[%s2827 + $0xa0] sm:$0xf]
      %v2869 = vld [vmem:[%s2827 + $0xa4] sm:$0xf]
      %v2870 = vld [vmem:[%s2827 + $0xa8] sm:$0xf]
      %v2871 = vld [vmem:[%s2827 + $0xac] sm:$0xf]
      %v2872 = vld [vmem:[%s2827 + $0xb0] sm:$0xf]
      %v2873 = vld [vmem:[%s2827 + $0xb4] sm:$0xf]
      %v2874 = vld [vmem:[%s2827 + $0xb8] sm:$0xf]
      %v2875 = vld [vmem:[%s2827 + $0xbc] sm:$0xf]
      %v2876 = vld [vmem:[%s2827 + $0xc0] sm:$0xf]
      %v2877 = vld [vmem:[%s2827 + $0xc4] sm:$0xf]
      %v2878 = vld [vmem:[%s2827 + $0xc8] sm:$0xf]
      %v2879 = vld [vmem:[%s2827 + $0xcc] sm:$0xf]
      %v2880 = vld [vmem:[%s2827 + $0xd0] sm:$0xf]
      %v2881 = vld [vmem:[%s2827 + $0xd4] sm:$0xf]
      %v2882 = vld [vmem:[%s2827 + $0xd8] sm:$0xf]
      %v2883 = vld [vmem:[%s2827 + $0xdc] sm:$0xf]
      %v2884 = vld [vmem:[%s2827 + $0xe0] sm:$0xf]
      %v2885 = vld [vmem:[%s2827 + $0xe4] sm:$0xf]
      %v2886 = vld [vmem:[%s2827 + $0xe8] sm:$0xf]
      %v2887 = vld [vmem:[%s2827 + $0xec] sm:$0xf]
      %v2888 = vld [vmem:[%s2827 + $0xf0] sm:$0xf]
      %v2889 = vld [vmem:[%s2827 + $0xf4] sm:$0xf]
      %v2890 = vld [vmem:[%s2827 + $0xf8] sm:$0xf]
      %v2891 = vld [vmem:[%s2827 + $0xfc] sm:$0xf]
      %v2892 = vld [vmem:[%s2827 + $0x100] sm:$0xf]
      %v2893 = vld [vmem:[%s2827 + $0x104] sm:$0xf]
      %v2894 = vld [vmem:[%s2827 + $0x108] sm:$0xf]
      %v2895 = vld [vmem:[%s2827 + $0x10c] sm:$0xf]
      %v2896 = vld [vmem:[%s2827 + $0x110] sm:$0xf]
      %v2897 = vld [vmem:[%s2827 + $0x114] sm:$0xf]
      %v2968 = vunpack.c.l.b16 %v2828
      %v2969 = vunpack.c.l.b16 %v2829
      %v2970 = vunpack.c.l.b16 %v2830
      %v2971 = vunpack.c.l.b16 %v2831
      %v2972 = vunpack.c.l.b16 %v2832
      %v2973 = vunpack.c.l.b16 %v2833
      %v2974 = vunpack.c.l.b16 %v2834
      %v2975 = vunpack.c.l.b16 %v2835
      %v2976 = vunpack.c.l.b16 %v2836
      %v2977 = vunpack.c.l.b16 %v2837
      %v2978 = vunpack.c.l.b16 %v2838
      %v2979 = vunpack.c.l.b16 %v2839
      %v2980 = vunpack.c.l.b16 %v2840
      %v2981 = vunpack.c.l.b16 %v2841
      %v2982 = vunpack.c.l.b16 %v2842
      %v2983 = vunpack.c.l.b16 %v2843
      %v2984 = vunpack.c.l.b16 %v2844
      %v2985 = vunpack.c.l.b16 %v2845
      %v2986 = vunpack.c.l.b16 %v2846
      %v2987 = vunpack.c.l.b16 %v2847
      %v2988 = vunpack.c.l.b16 %v2848
      %v2989 = vunpack.c.l.b16 %v2849
      %v2990 = vunpack.c.l.b16 %v2850
      %v2991 = vunpack.c.l.b16 %v2851
      %v2992 = vunpack.c.l.b16 %v2852
      %v2993 = vunpack.c.l.b16 %v2853
      %v2994 = vunpack.c.l.b16 %v2854
      %v2995 = vunpack.c.l.b16 %v2855
      %v2996 = vunpack.c.l.b16 %v2856
      %v2997 = vunpack.c.l.b16 %v2857
      %v2998 = vunpack.c.l.b16 %v2858
      %v2999 = vunpack.c.l.b16 %v2859
      %v3000 = vunpack.c.l.b16 %v2860
      %v3001 = vunpack.c.l.b16 %v2861
      %v3002 = vunpack.c.l.b16 %v2862
      %v3003 = vunpack.c.l.b16 %v2863
      %v3004 = vunpack.c.l.b16 %v2864
      %v3005 = vunpack.c.l.b16 %v2865
      %v3006 = vunpack.c.l.b16 %v2866
      %v3007 = vunpack.c.l.b16 %v2867
      %v3008 = vunpack.c.l.b16 %v2868
      %v3009 = vunpack.c.l.b16 %v2869
      %v3010 = vunpack.c.l.b16 %v2870
      %v3011 = vunpack.c.l.b16 %v2871
      %v3012 = vunpack.c.l.b16 %v2872
      %v3013 = vunpack.c.l.b16 %v2873
      %v3014 = vunpack.c.l.b16 %v2874
      %v3015 = vunpack.c.l.b16 %v2875
      %v3016 = vunpack.c.l.b16 %v2876
      %v3017 = vunpack.c.l.b16 %v2877
      %v3018 = vunpack.c.l.b16 %v2878
      %v3019 = vunpack.c.l.b16 %v2879
      %v3020 = vunpack.c.l.b16 %v2880
      %v3021 = vunpack.c.l.b16 %v2881
      %v3022 = vunpack.c.l.b16 %v2882
      %v3023 = vunpack.c.l.b16 %v2883
      %v3024 = vunpack.c.l.b16 %v2884
      %v3025 = vunpack.c.l.b16 %v2885
      %v3026 = vunpack.c.l.b16 %v2886
      %v3027 = vunpack.c.l.b16 %v2887
      %v3028 = vunpack.c.l.b16 %v2888
      %v3029 = vunpack.c.l.b16 %v2889
      %v3030 = vunpack.c.l.b16 %v2890
      %v3031 = vunpack.c.l.b16 %v2891
      %v3032 = vunpack.c.l.b16 %v2892
      %v3033 = vunpack.c.l.b16 %v2893
      %v3034 = vunpack.c.l.b16 %v2894
      %v3035 = vunpack.c.l.b16 %v2895
      %v3036 = vunpack.c.l.b16 %v2896
      %v3037 = vunpack.c.l.b16 %v2897
      %v3038 = vpack.c.b16 %v2969, %v2968
      %v3039 = vpack.c.b16 %v2971, %v2970
      %v3040 = vpack.c.b16 %v2973, %v2972
      %v3041 = vpack.c.b16 %v2975, %v2974
      %v3042 = vpack.c.b16 %v2977, %v2976
      %v3043 = vpack.c.b16 %v2979, %v2978
      %v3044 = vpack.c.b16 %v2981, %v2980
      %v3045 = vpack.c.b16 %v2983, %v2982
      %v3046 = vpack.c.b16 %v2985, %v2984
      %v3047 = vpack.c.b16 %v2987, %v2986
      %v3048 = vpack.c.b16 %v2989, %v2988
      %v3049 = vpack.c.b16 %v2991, %v2990
      %v3050 = vpack.c.b16 %v2993, %v2992
      %v3051 = vpack.c.b16 %v2995, %v2994
      %v3052 = vpack.c.b16 %v2997, %v2996
      %v3053 = vpack.c.b16 %v2999, %v2998
      %v3054 = vpack.c.b16 %v3001, %v3000
      %v3055 = vpack.c.b16 %v3003, %v3002
      %v3056 = vpack.c.b16 %v3005, %v3004
      %v3057 = vpack.c.b16 %v3007, %v3006
      %v3058 = vpack.c.b16 %v3009, %v3008
      %v3059 = vpack.c.b16 %v3011, %v3010
      %v3060 = vpack.c.b16 %v3013, %v3012
      %v3061 = vpack.c.b16 %v3015, %v3014
      %v3062 = vpack.c.b16 %v3017, %v3016
      %v3063 = vpack.c.b16 %v3019, %v3018
      %v3064 = vpack.c.b16 %v3021, %v3020
      %v3065 = vpack.c.b16 %v3023, %v3022
      %v3066 = vpack.c.b16 %v3025, %v3024
      %v3067 = vpack.c.b16 %v3027, %v3026
      %v3068 = vpack.c.b16 %v3029, %v3028
      %v3069 = vpack.c.b16 %v3031, %v3030
      %v3070 = vpack.c.b16 %v3033, %v3032
      %v3071 = vpack.c.b16 %v3035, %v3034
      %v3072 = vpack.c.b16 %v3037, %v3036
      %3108 = vmatpush.bf16.msra.mxu0 %v3045
      %3109 = vmatpush.bf16.msra.mxu0 %v3044
      %3110 = vmatpush.bf16.msra.mxu0 %v3043
      %3111 = vmatpush.bf16.msra.mxu0 %v3042
      %3112 = vmatpush.bf16.msra.mxu0 %v3041
      %3113 = vmatpush.bf16.msra.mxu0 %v3040
      %3114 = vmatpush.bf16.msra.mxu0 %v3039
      %3115 = vmatpush.bf16.msra.mxu0 %v3038
      %3116 = vmatmul.bf16.gmra.mxu0 %v528
      %v3117 = vpop.f32.mrf.mxu0
      %v3118 = vadd.f32 0.0, %v3117
      %v3119 = vpop.f32.mrf.mxu0
      %v3120 = vadd.f32 0.0, %v3119
      %3121 = vmatmul.bf16.gmra.mxu0 %v533
      %v3122 = vpop.f32.mrf.mxu0
      %v3123 = vadd.f32 0.0, %v3122
      %v3124 = vpop.f32.mrf.mxu0
      %v3125 = vadd.f32 0.0, %v3124
      %3126 = vmatmul.bf16.gmra.mxu0 %v538
      %v3127 = vpop.f32.mrf.mxu0
      %v3128 = vadd.f32 0.0, %v3127
      %v3129 = vpop.f32.mrf.mxu0
      %v3130 = vadd.f32 0.0, %v3129
      %3131 = vmatmul.bf16.gmra.mxu0 %v543
      %v3132 = vpop.f32.mrf.mxu0
      %v3133 = vadd.f32 0.0, %v3132
      %v3134 = vpop.f32.mrf.mxu0
      %v3135 = vadd.f32 0.0, %v3134
      %3136 = vmatmul.bf16.gmra.mxu0 %v548
      %v3137 = vpop.f32.mrf.mxu0
      %v3138 = vadd.f32 0.0, %v3137
      %v3139 = vpop.f32.mrf.mxu0
      %v3140 = vadd.f32 0.0, %v3139
      %3141 = vmatmul.bf16.gmra.mxu0 %v553
      %v3142 = vpop.f32.mrf.mxu0
      %v3143 = vadd.f32 0.0, %v3142
      %v3144 = vpop.f32.mrf.mxu0
      %v3145 = vadd.f32 0.0, %v3144
      %3146 = vmatmul.bf16.gmra.mxu0 %v558
      %v3147 = vpop.f32.mrf.mxu0
      %v3148 = vadd.f32 0.0, %v3147
      %v3149 = vpop.f32.mrf.mxu0
      %v3150 = vadd.f32 0.0, %v3149
      %3151 = vmatmul.bf16.gmra.mxu0 %v563
      %v3152 = vpop.f32.mrf.mxu0
      %v3153 = vadd.f32 0.0, %v3152
      %v3154 = vpop.f32.mrf.mxu0
      %v3155 = vadd.f32 0.0, %v3154
      %3156 = vmatmul.bf16.gmra.mxu0 %v568
      %v3157 = vpop.f32.mrf.mxu0
      %v3158 = vadd.f32 0.0, %v3157
      %v3159 = vpop.f32.mrf.mxu0
      %v3160 = vadd.f32 0.0, %v3159
      %3161 = vmatmul.bf16.gmra.mxu0 %v573
      %v3162 = vpop.f32.mrf.mxu0
      %v3163 = vadd.f32 0.0, %v3162
      %v3164 = vpop.f32.mrf.mxu0
      %v3165 = vadd.f32 0.0, %v3164
      %3166 = vmatmul.bf16.gmra.mxu0 %v578
      %v3167 = vpop.f32.mrf.mxu0
      %v3168 = vadd.f32 0.0, %v3167
      %v3169 = vpop.f32.mrf.mxu0
      %v3170 = vadd.f32 0.0, %v3169
      %3171 = vmatmul.bf16.gmra.mxu0 %v583
      %v3172 = vpop.f32.mrf.mxu0
      %v3173 = vadd.f32 0.0, %v3172
      %v3174 = vpop.f32.mrf.mxu0
      %v3175 = vadd.f32 0.0, %v3174
      %3176 = vmatmul.bf16.gmra.mxu0 %v588
      %v3177 = vpop.f32.mrf.mxu0
      %v3178 = vadd.f32 0.0, %v3177
      %v3179 = vpop.f32.mrf.mxu0
      %3180 = vdwg.mxu0
      %3181 = vmatpush.bf16.msra.mxu0 %v3053
      %3182 = vmatpush.bf16.msra.mxu0 %v3052
      %3183 = vmatpush.bf16.msra.mxu0 %v3051
      %3184 = vmatpush.bf16.msra.mxu0 %v3050
      %3185 = vmatpush.bf16.msra.mxu0 %v3049
      %3186 = vmatpush.bf16.msra.mxu0 %v3048
      %3187 = vmatpush.bf16.msra.mxu0 %v3047
      %3188 = vmatpush.bf16.msra.mxu0 %v3046
      %3189 = vmatmul.bf16.gmra.mxu0 %v529
      %v3190 = vpop.f32.mrf.mxu0
      %v3191 = vadd.f32 %v3118, %v3190
      %v3192 = vpop.f32.mrf.mxu0
      %v3193 = vadd.f32 %v3120, %v3192
      %3194 = vmatmul.bf16.gmra.mxu0 %v534
      %v3195 = vpop.f32.mrf.mxu0
      %v3196 = vadd.f32 %v3123, %v3195
      %v3197 = vpop.f32.mrf.mxu0
      %v3198 = vadd.f32 %v3125, %v3197
      %3199 = vmatmul.bf16.gmra.mxu0 %v539
      %v3200 = vpop.f32.mrf.mxu0
      %v3201 = vadd.f32 %v3128, %v3200
      %v3202 = vpop.f32.mrf.mxu0
      %v3203 = vadd.f32 %v3130, %v3202
      %3204 = vmatmul.bf16.gmra.mxu0 %v544
      %v3205 = vpop.f32.mrf.mxu0
      %v3206 = vadd.f32 %v3133, %v3205
      %v3207 = vpop.f32.mrf.mxu0
      %v3208 = vadd.f32 %v3135, %v3207
      %3209 = vmatmul.bf16.gmra.mxu0 %v549
      %v3210 = vpop.f32.mrf.mxu0
      %v3211 = vadd.f32 %v3138, %v3210
      %v3212 = vpop.f32.mrf.mxu0
      %v3213 = vadd.f32 %v3140, %v3212
      %3214 = vmatmul.bf16.gmra.mxu0 %v554
      %v3215 = vpop.f32.mrf.mxu0
      %v3216 = vadd.f32 %v3143, %v3215
      %v3217 = vpop.f32.mrf.mxu0
      %v3218 = vadd.f32 %v3145, %v3217
      %3219 = vmatmul.bf16.gmra.mxu0 %v559
      %v3220 = vpop.f32.mrf.mxu0
      %v3221 = vadd.f32 %v3148, %v3220
      %v3222 = vpop.f32.mrf.mxu0
      %v3223 = vadd.f32 %v3150, %v3222
      %3224 = vmatmul.bf16.gmra.mxu0 %v564
      %v3225 = vpop.f32.mrf.mxu0
      %v3226 = vadd.f32 %v3153, %v3225
      %v3227 = vpop.f32.mrf.mxu0
      %v3228 = vadd.f32 %v3155, %v3227
      %3229 = vmatmul.bf16.gmra.mxu0 %v569
      %v3230 = vpop.f32.mrf.mxu0
      %v3231 = vadd.f32 %v3158, %v3230
      %v3232 = vpop.f32.mrf.mxu0
      %v3233 = vadd.f32 %v3160, %v3232
      %3234 = vmatmul.bf16.gmra.mxu0 %v574
      %v3235 = vpop.f32.mrf.mxu0
      %v3236 = vadd.f32 %v3163, %v3235
      %v3237 = vpop.f32.mrf.mxu0
      %v3238 = vadd.f32 %v3165, %v3237
      %3239 = vmatmul.bf16.gmra.mxu0 %v579
      %v3240 = vpop.f32.mrf.mxu0
      %v3241 = vadd.f32 %v3168, %v3240
      %v3242 = vpop.f32.mrf.mxu0
      %v3243 = vadd.f32 %v3170, %v3242
      %3244 = vmatmul.bf16.gmra.mxu0 %v584
      %v3245 = vpop.f32.mrf.mxu0
      %v3246 = vadd.f32 %v3173, %v3245
      %v3247 = vpop.f32.mrf.mxu0
      %v3248 = vadd.f32 %v3175, %v3247
      %3249 = vmatmul.bf16.gmra.mxu0 %v589
      %v3250 = vpop.f32.mrf.mxu0
      %v3251 = vadd.f32 %v3178, %v3250
      %v3252 = vpop.f32.mrf.mxu0
      %3253 = vdwg.mxu0
      %3254 = vmatpush.bf16.msra.mxu0 %v3061
      %3255 = vmatpush.bf16.msra.mxu0 %v3060
      %3256 = vmatpush.bf16.msra.mxu0 %v3059
      %3257 = vmatpush.bf16.msra.mxu0 %v3058
      %3258 = vmatpush.bf16.msra.mxu0 %v3057
      %3259 = vmatpush.bf16.msra.mxu0 %v3056
      %3260 = vmatpush.bf16.msra.mxu0 %v3055
      %3261 = vmatpush.bf16.msra.mxu0 %v3054
      %3262 = vmatmul.bf16.gmra.mxu0 %v530
      %v3263 = vpop.f32.mrf.mxu0
      %v3264 = vadd.f32 %v3191, %v3263
      %v3265 = vpop.f32.mrf.mxu0
      %v3266 = vadd.f32 %v3193, %v3265
      %3267 = vmatmul.bf16.gmra.mxu0 %v535
      %v3268 = vpop.f32.mrf.mxu0
      %v3269 = vadd.f32 %v3196, %v3268
      %v3270 = vpop.f32.mrf.mxu0
      %v3271 = vadd.f32 %v3198, %v3270
      %3272 = vmatmul.bf16.gmra.mxu0 %v540
      %v3273 = vpop.f32.mrf.mxu0
      %v3274 = vadd.f32 %v3201, %v3273
      %v3275 = vpop.f32.mrf.mxu0
      %v3276 = vadd.f32 %v3203, %v3275
      %3277 = vmatmul.bf16.gmra.mxu0 %v545
      %v3278 = vpop.f32.mrf.mxu0
      %v3279 = vadd.f32 %v3206, %v3278
      %v3280 = vpop.f32.mrf.mxu0
      %v3281 = vadd.f32 %v3208, %v3280
      %3282 = vmatmul.bf16.gmra.mxu0 %v550
      %v3283 = vpop.f32.mrf.mxu0
      %v3284 = vadd.f32 %v3211, %v3283
      %v3285 = vpop.f32.mrf.mxu0
      %v3286 = vadd.f32 %v3213, %v3285
      %3287 = vmatmul.bf16.gmra.mxu0 %v555
      %v3288 = vpop.f32.mrf.mxu0
      %v3289 = vadd.f32 %v3216, %v3288
      %v3290 = vpop.f32.mrf.mxu0
      %v3291 = vadd.f32 %v3218, %v3290
      %3292 = vmatmul.bf16.gmra.mxu0 %v560
      %v3293 = vpop.f32.mrf.mxu0
      %v3294 = vadd.f32 %v3221, %v3293
      %v3295 = vpop.f32.mrf.mxu0
      %v3296 = vadd.f32 %v3223, %v3295
      %3297 = vmatmul.bf16.gmra.mxu0 %v565
      %v3298 = vpop.f32.mrf.mxu0
      %v3299 = vadd.f32 %v3226, %v3298
      %v3300 = vpop.f32.mrf.mxu0
      %v3301 = vadd.f32 %v3228, %v3300
      %3302 = vmatmul.bf16.gmra.mxu0 %v570
      %v3303 = vpop.f32.mrf.mxu0
      %v3304 = vadd.f32 %v3231, %v3303
      %v3305 = vpop.f32.mrf.mxu0
      %v3306 = vadd.f32 %v3233, %v3305
      %3307 = vmatmul.bf16.gmra.mxu0 %v575
      %v3308 = vpop.f32.mrf.mxu0
      %v3309 = vadd.f32 %v3236, %v3308
      %v3310 = vpop.f32.mrf.mxu0
      %v3311 = vadd.f32 %v3238, %v3310
      %3312 = vmatmul.bf16.gmra.mxu0 %v580
      %v3313 = vpop.f32.mrf.mxu0
      %v3314 = vadd.f32 %v3241, %v3313
      %v3315 = vpop.f32.mrf.mxu0
      %v3316 = vadd.f32 %v3243, %v3315
      %3317 = vmatmul.bf16.gmra.mxu0 %v585
      %v3318 = vpop.f32.mrf.mxu0
      %v3319 = vadd.f32 %v3246, %v3318
      %v3320 = vpop.f32.mrf.mxu0
      %v3321 = vadd.f32 %v3248, %v3320
      %3322 = vmatmul.bf16.gmra.mxu0 %v590
      %v3323 = vpop.f32.mrf.mxu0
      %v3324 = vadd.f32 %v3251, %v3323
      %v3325 = vpop.f32.mrf.mxu0
      %3326 = vdwg.mxu0
      %3327 = vmatpush.bf16.msra.mxu0 %v3069
      %3328 = vmatpush.bf16.msra.mxu0 %v3068
      %3329 = vmatpush.bf16.msra.mxu0 %v3067
      %3330 = vmatpush.bf16.msra.mxu0 %v3066
      %3331 = vmatpush.bf16.msra.mxu0 %v3065
      %3332 = vmatpush.bf16.msra.mxu0 %v3064
      %3333 = vmatpush.bf16.msra.mxu0 %v3063
      %3334 = vmatpush.bf16.msra.mxu0 %v3062
      %3335 = vmatmul.bf16.gmra.mxu0 %v531
      %v3336 = vpop.f32.mrf.mxu0
      %v3337 = vadd.f32 %v3264, %v3336
      %v3338 = vpop.f32.mrf.mxu0
      %v3339 = vadd.f32 %v3266, %v3338
      %3340 = vmatmul.bf16.gmra.mxu0 %v536
      %v3341 = vpop.f32.mrf.mxu0
      %v3342 = vadd.f32 %v3269, %v3341
      %v3343 = vpop.f32.mrf.mxu0
      %v3344 = vadd.f32 %v3271, %v3343
      %3345 = vmatmul.bf16.gmra.mxu0 %v541
      %v3346 = vpop.f32.mrf.mxu0
      %v3347 = vadd.f32 %v3274, %v3346
      %v3348 = vpop.f32.mrf.mxu0
      %v3349 = vadd.f32 %v3276, %v3348
      %3350 = vmatmul.bf16.gmra.mxu0 %v546
      %v3351 = vpop.f32.mrf.mxu0
      %v3352 = vadd.f32 %v3279, %v3351
      %v3353 = vpop.f32.mrf.mxu0
      %v3354 = vadd.f32 %v3281, %v3353
      %3355 = vmatmul.bf16.gmra.mxu0 %v551
      %v3356 = vpop.f32.mrf.mxu0
      %v3357 = vadd.f32 %v3284, %v3356
      %v3358 = vpop.f32.mrf.mxu0
      %v3359 = vadd.f32 %v3286, %v3358
      %3360 = vmatmul.bf16.gmra.mxu0 %v556
      %v3361 = vpop.f32.mrf.mxu0
      %v3362 = vadd.f32 %v3289, %v3361
      %v3363 = vpop.f32.mrf.mxu0
      %v3364 = vadd.f32 %v3291, %v3363
      %3365 = vmatmul.bf16.gmra.mxu0 %v561
      %v3366 = vpop.f32.mrf.mxu0
      %v3367 = vadd.f32 %v3294, %v3366
      %v3368 = vpop.f32.mrf.mxu0
      %v3369 = vadd.f32 %v3296, %v3368
      %3370 = vmatmul.bf16.gmra.mxu0 %v566
      %v3371 = vpop.f32.mrf.mxu0
      %v3372 = vadd.f32 %v3299, %v3371
      %v3373 = vpop.f32.mrf.mxu0
      %v3374 = vadd.f32 %v3301, %v3373
      %3375 = vmatmul.bf16.gmra.mxu0 %v571
      %v3376 = vpop.f32.mrf.mxu0
      %v3377 = vadd.f32 %v3304, %v3376
      %v3378 = vpop.f32.mrf.mxu0
      %v3379 = vadd.f32 %v3306, %v3378
      %3380 = vmatmul.bf16.gmra.mxu0 %v576
      %v3381 = vpop.f32.mrf.mxu0
      %v3382 = vadd.f32 %v3309, %v3381
      %v3383 = vpop.f32.mrf.mxu0
      %v3384 = vadd.f32 %v3311, %v3383
      %3385 = vmatmul.bf16.gmra.mxu0 %v581
      %v3386 = vpop.f32.mrf.mxu0
      %v3387 = vadd.f32 %v3314, %v3386
      %v3388 = vpop.f32.mrf.mxu0
      %v3389 = vadd.f32 %v3316, %v3388
      %3390 = vmatmul.bf16.gmra.mxu0 %v586
      %v3391 = vpop.f32.mrf.mxu0
      %v3392 = vadd.f32 %v3319, %v3391
      %v3393 = vpop.f32.mrf.mxu0
      %v3394 = vadd.f32 %v3321, %v3393
      %3395 = vmatmul.bf16.gmra.mxu0 %v591
      %v3396 = vpop.f32.mrf.mxu0
      %v3397 = vadd.f32 %v3324, %v3396
      %v3398 = vpop.f32.mrf.mxu0
      %3399 = vdwg.mxu0
      %3400 = vmatpush.bf16.msra.mxu0 0
      %3401 = vmatpush.bf16.msra.mxu0 0
      %3402 = vmatpush.bf16.msra.mxu0 0
      %3403 = vmatpush.bf16.msra.mxu0 0
      %3404 = vmatpush.bf16.msra.mxu0 0
      %3405 = vmatpush.bf16.msra.mxu0 %v3072
      %3406 = vmatpush.bf16.msra.mxu0 %v3071
      %3407 = vmatpush.bf16.msra.mxu0 %v3070
      %3408 = vmatmul.bf16.gmra.mxu0 %v857
      %v3409 = vpop.f32.mrf.mxu0
      %v3410 = vadd.f32 %v3337, %v3409
      %v3411 = vpop.f32.mrf.mxu0
      %v3412 = vadd.f32 %v3339, %v3411
      %3413 = vmatmul.bf16.gmra.mxu0 %v860
      %v3414 = vpop.f32.mrf.mxu0
      %v3415 = vadd.f32 %v3342, %v3414
      %v3416 = vpop.f32.mrf.mxu0
      %v3417 = vadd.f32 %v3344, %v3416
      %3418 = vmatmul.bf16.gmra.mxu0 %v863
      %v3419 = vpop.f32.mrf.mxu0
      %v3420 = vadd.f32 %v3347, %v3419
      %v3421 = vpop.f32.mrf.mxu0
      %v3422 = vadd.f32 %v3349, %v3421
      %3423 = vmatmul.bf16.gmra.mxu0 %v866
      %v3424 = vpop.f32.mrf.mxu0
      %v3425 = vadd.f32 %v3352, %v3424
      %v3426 = vpop.f32.mrf.mxu0
      %v3427 = vadd.f32 %v3354, %v3426
      %3428 = vmatmul.bf16.gmra.mxu0 %v869
      %v3429 = vpop.f32.mrf.mxu0
      %v3430 = vadd.f32 %v3357, %v3429
      %v3431 = vpop.f32.mrf.mxu0
      %v3432 = vadd.f32 %v3359, %v3431
      %3433 = vmatmul.bf16.gmra.mxu0 %v872
      %v3434 = vpop.f32.mrf.mxu0
      %v3435 = vadd.f32 %v3362, %v3434
      %v3436 = vpop.f32.mrf.mxu0
      %v3437 = vadd.f32 %v3364, %v3436
      %3438 = vmatmul.bf16.gmra.mxu0 %v875
      %v3439 = vpop.f32.mrf.mxu0
      %v3440 = vadd.f32 %v3367, %v3439
      %v3441 = vpop.f32.mrf.mxu0
      %v3442 = vadd.f32 %v3369, %v3441
      %3443 = vmatmul.bf16.gmra.mxu0 %v878
      %v3444 = vpop.f32.mrf.mxu0
      %v3445 = vadd.f32 %v3372, %v3444
      %v3446 = vpop.f32.mrf.mxu0
      %v3447 = vadd.f32 %v3374, %v3446
      %3448 = vmatmul.bf16.gmra.mxu0 %v881
      %v3449 = vpop.f32.mrf.mxu0
      %v3450 = vadd.f32 %v3377, %v3449
      %v3451 = vpop.f32.mrf.mxu0
      %v3452 = vadd.f32 %v3379, %v3451
      %3453 = vmatmul.bf16.gmra.mxu0 %v884
      %v3454 = vpop.f32.mrf.mxu0
      %v3455 = vadd.f32 %v3382, %v3454
      %v3456 = vpop.f32.mrf.mxu0
      %v3457 = vadd.f32 %v3384, %v3456
      %3458 = vmatmul.bf16.gmra.mxu0 %v887
      %v3459 = vpop.f32.mrf.mxu0
      %v3460 = vadd.f32 %v3387, %v3459
      %v3461 = vpop.f32.mrf.mxu0
      %v3462 = vadd.f32 %v3389, %v3461
      %3463 = vmatmul.bf16.gmra.mxu0 %v890
      %v3464 = vpop.f32.mrf.mxu0
      %v3465 = vadd.f32 %v3392, %v3464
      %v3466 = vpop.f32.mrf.mxu0
      %v3467 = vadd.f32 %v3394, %v3466
      %3468 = vmatmul.bf16.gmra.mxu0 %v893
      %v3469 = vpop.f32.mrf.mxu0
      %v3470 = vadd.f32 %v3397, %v3469
      %v3471 = vpop.f32.mrf.mxu0
      %3472 = vdwg.mxu0
      %vm3498 = vcmask 1044480
      %v3499 = vrot.slane %v3410, 3
      %v3500 = vrot.slane %v3412, 3
      %v3501 = vsel %vm3498, %v3499, %v3500
      %v3502 = vrot.slane %v3415, 3
      %v3503 = vsel %vm3498, %v3500, %v3502
      %v3504 = vrot.slane %v3417, 3
      %v3505 = vsel %vm3498, %v3502, %v3504
      %v3506 = vrot.slane %v3420, 3
      %v3507 = vsel %vm3498, %v3504, %v3506
      %v3508 = vrot.slane %v3422, 3
      %v3509 = vsel %vm3498, %v3506, %v3508
      %v3510 = vrot.slane %v3425, 3
      %v3511 = vsel %vm3498, %v3508, %v3510
      %v3512 = vrot.slane %v3427, 3
      %v3513 = vsel %vm3498, %v3510, %v3512
      %v3514 = vrot.slane %v3430, 3
      %v3515 = vsel %vm3498, %v3512, %v3514
      %v3516 = vrot.slane %v3432, 3
      %v3517 = vsel %vm3498, %v3514, %v3516
      %v3518 = vrot.slane %v3435, 3
      %v3519 = vsel %vm3498, %v3516, %v3518
      %v3520 = vrot.slane %v3437, 3
      %v3521 = vsel %vm3498, %v3518, %v3520
      %v3522 = vrot.slane %v3440, 3
      %v3523 = vsel %vm3498, %v3520, %v3522
      %v3524 = vrot.slane %v3442, 3
      %v3525 = vsel %vm3498, %v3522, %v3524
      %v3526 = vrot.slane %v3445, 3
      %v3527 = vsel %vm3498, %v3524, %v3526
      %v3528 = vrot.slane %v3447, 3
      %v3529 = vsel %vm3498, %v3526, %v3528
      %v3530 = vrot.slane %v3450, 3
      %v3531 = vsel %vm3498, %v3528, %v3530
      %v3532 = vrot.slane %v3452, 3
      %v3533 = vsel %vm3498, %v3530, %v3532
      %v3534 = vrot.slane %v3455, 3
      %v3535 = vsel %vm3498, %v3532, %v3534
      %v3536 = vrot.slane %v3457, 3
      %v3537 = vsel %vm3498, %v3534, %v3536
      %v3538 = vrot.slane %v3460, 3
      %v3539 = vsel %vm3498, %v3536, %v3538
      %v3540 = vrot.slane %v3462, 3
      %v3541 = vsel %vm3498, %v3538, %v3540
      %v3542 = vrot.slane %v3465, 3
      %v3543 = vsel %vm3498, %v3540, %v3542
      %v3544 = vrot.slane %v3467, 3
      %v3545 = vsel %vm3498, %v3542, %v3544
      %v3546 = vrot.slane %v3470, 3
      %v3547 = vsel %vm3498, %v3544, %v3546
      %v3573 = vadd.f32 %v2802, %v3501
      %v3574 = vadd.f32 %v2803, %v3503
      %v3575 = vadd.f32 %v2804, %v3505
      %v3576 = vadd.f32 %v2805, %v3507
      %v3577 = vadd.f32 %v2806, %v3509
      %v3578 = vadd.f32 %v2807, %v3511
      %v3579 = vadd.f32 %v2808, %v3513
      %v3580 = vadd.f32 %v2809, %v3515
      %v3581 = vadd.f32 %v2810, %v3517
      %v3582 = vadd.f32 %v2811, %v3519
      %v3583 = vadd.f32 %v2812, %v3521
      %v3584 = vadd.f32 %v2813, %v3523
      %v3585 = vadd.f32 %v2814, %v3525
      %v3586 = vadd.f32 %v2815, %v3527
      %v3587 = vadd.f32 %v2816, %v3529
      %v3588 = vadd.f32 %v2817, %v3531
      %v3589 = vadd.f32 %v2818, %v3533
      %v3590 = vadd.f32 %v2819, %v3535
      %v3591 = vadd.f32 %v2820, %v3537
      %v3592 = vadd.f32 %v2821, %v3539
      %v3593 = vadd.f32 %v2822, %v3541
      %v3594 = vadd.f32 %v2823, %v3543
      %v3595 = vadd.f32 %v2824, %v3545
      %v3596 = vadd.f32 %v2825, %v3547
      %v3597 = vadd.f32 %v2826, %v3546
      %s3598 = scalar_lea.vmem %s1, 1120
      %v3599 = vld [vmem:[%s3598] sm:$0xf]
      %v3600 = vld [vmem:[%s3598 + $0x4] sm:$0xf]
      %v3601 = vld [vmem:[%s3598 + $0x8] sm:$0xf]
      %v3602 = vld [vmem:[%s3598 + $0xc] sm:$0xf]
      %v3603 = vld [vmem:[%s3598 + $0x10] sm:$0xf]
      %v3604 = vld [vmem:[%s3598 + $0x14] sm:$0xf]
      %v3605 = vld [vmem:[%s3598 + $0x18] sm:$0xf]
      %v3606 = vld [vmem:[%s3598 + $0x1c] sm:$0xf]
      %v3607 = vld [vmem:[%s3598 + $0x20] sm:$0xf]
      %v3608 = vld [vmem:[%s3598 + $0x24] sm:$0xf]
      %v3609 = vld [vmem:[%s3598 + $0x28] sm:$0xf]
      %v3610 = vld [vmem:[%s3598 + $0x2c] sm:$0xf]
      %v3611 = vld [vmem:[%s3598 + $0x30] sm:$0xf]
      %v3612 = vld [vmem:[%s3598 + $0x34] sm:$0xf]
      %v3613 = vld [vmem:[%s3598 + $0x38] sm:$0xf]
      %v3614 = vld [vmem:[%s3598 + $0x3c] sm:$0xf]
      %v3615 = vld [vmem:[%s3598 + $0x40] sm:$0xf]
      %v3616 = vld [vmem:[%s3598 + $0x44] sm:$0xf]
      %v3617 = vld [vmem:[%s3598 + $0x48] sm:$0xf]
      %v3618 = vld [vmem:[%s3598 + $0x4c] sm:$0xf]
      %v3619 = vld [vmem:[%s3598 + $0x50] sm:$0xf]
      %v3620 = vld [vmem:[%s3598 + $0x54] sm:$0xf]
      %v3621 = vld [vmem:[%s3598 + $0x58] sm:$0xf]
      %v3622 = vld [vmem:[%s3598 + $0x5c] sm:$0xf]
      %v3623 = vld [vmem:[%s3598 + $0x60] sm:$0xf]
      %v3624 = vld [vmem:[%s3598 + $0x64] sm:$0xf]
      %v3625 = vld [vmem:[%s3598 + $0x68] sm:$0xf]
      %v3626 = vld [vmem:[%s3598 + $0x6c] sm:$0xf]
      %v3627 = vld [vmem:[%s3598 + $0x70] sm:$0xf]
      %v3628 = vld [vmem:[%s3598 + $0x74] sm:$0xf]
      %v3629 = vld [vmem:[%s3598 + $0x78] sm:$0xf]
      %v3630 = vld [vmem:[%s3598 + $0x7c] sm:$0xf]
      %v3631 = vld [vmem:[%s3598 + $0x80] sm:$0xf]
      %v3632 = vld [vmem:[%s3598 + $0x84] sm:$0xf]
      %v3633 = vld [vmem:[%s3598 + $0x88] sm:$0xf]
      %v3634 = vld [vmem:[%s3598 + $0x8c] sm:$0xf]
      %v3635 = vld [vmem:[%s3598 + $0x90] sm:$0xf]
      %v3636 = vld [vmem:[%s3598 + $0x94] sm:$0xf]
      %v3637 = vld [vmem:[%s3598 + $0x98] sm:$0xf]
      %v3638 = vld [vmem:[%s3598 + $0x9c] sm:$0xf]
      %v3639 = vld [vmem:[%s3598 + $0xa0] sm:$0xf]
      %v3640 = vld [vmem:[%s3598 + $0xa4] sm:$0xf]
      %v3641 = vld [vmem:[%s3598 + $0xa8] sm:$0xf]
      %v3642 = vld [vmem:[%s3598 + $0xac] sm:$0xf]
      %v3643 = vld [vmem:[%s3598 + $0xb0] sm:$0xf]
      %v3644 = vld [vmem:[%s3598 + $0xb4] sm:$0xf]
      %v3645 = vld [vmem:[%s3598 + $0xb8] sm:$0xf]
      %v3646 = vld [vmem:[%s3598 + $0xbc] sm:$0xf]
      %v3647 = vld [vmem:[%s3598 + $0xc0] sm:$0xf]
      %v3648 = vld [vmem:[%s3598 + $0xc4] sm:$0xf]
      %v3649 = vld [vmem:[%s3598 + $0xc8] sm:$0xf]
      %v3650 = vld [vmem:[%s3598 + $0xcc] sm:$0xf]
      %v3651 = vld [vmem:[%s3598 + $0xd0] sm:$0xf]
      %v3652 = vld [vmem:[%s3598 + $0xd4] sm:$0xf]
      %v3653 = vld [vmem:[%s3598 + $0xd8] sm:$0xf]
      %v3654 = vld [vmem:[%s3598 + $0xdc] sm:$0xf]
      %v3655 = vld [vmem:[%s3598 + $0xe0] sm:$0xf]
      %v3656 = vld [vmem:[%s3598 + $0xe4] sm:$0xf]
      %v3657 = vld [vmem:[%s3598 + $0xe8] sm:$0xf]
      %v3658 = vld [vmem:[%s3598 + $0xec] sm:$0xf]
      %v3659 = vld [vmem:[%s3598 + $0xf0] sm:$0xf]
      %v3660 = vld [vmem:[%s3598 + $0xf4] sm:$0xf]
      %v3661 = vld [vmem:[%s3598 + $0xf8] sm:$0xf]
      %v3662 = vld [vmem:[%s3598 + $0xfc] sm:$0xf]
      %v3663 = vld [vmem:[%s3598 + $0x100] sm:$0xf]
      %v3664 = vld [vmem:[%s3598 + $0x104] sm:$0xf]
      %v3665 = vld [vmem:[%s3598 + $0x108] sm:$0xf]
      %v3666 = vld [vmem:[%s3598 + $0x10c] sm:$0xf]
      %v3667 = vld [vmem:[%s3598 + $0x110] sm:$0xf]
      %v3668 = vld [vmem:[%s3598 + $0x114] sm:$0xf]
      %v3739 = vunpack.c.l.b16 %v3599
      %v3740 = vunpack.c.l.b16 %v3600
      %v3741 = vunpack.c.l.b16 %v3601
      %v3742 = vunpack.c.l.b16 %v3602
      %v3743 = vunpack.c.l.b16 %v3603
      %v3744 = vunpack.c.l.b16 %v3604
      %v3745 = vunpack.c.l.b16 %v3605
      %v3746 = vunpack.c.l.b16 %v3606
      %v3747 = vunpack.c.l.b16 %v3607
      %v3748 = vunpack.c.l.b16 %v3608
      %v3749 = vunpack.c.l.b16 %v3609
      %v3750 = vunpack.c.l.b16 %v3610
      %v3751 = vunpack.c.l.b16 %v3611
      %v3752 = vunpack.c.l.b16 %v3612
      %v3753 = vunpack.c.l.b16 %v3613
      %v3754 = vunpack.c.l.b16 %v3614
      %v3755 = vunpack.c.l.b16 %v3615
      %v3756 = vunpack.c.l.b16 %v3616
      %v3757 = vunpack.c.l.b16 %v3617
      %v3758 = vunpack.c.l.b16 %v3618
      %v3759 = vunpack.c.l.b16 %v3619
      %v3760 = vunpack.c.l.b16 %v3620
      %v3761 = vunpack.c.l.b16 %v3621
      %v3762 = vunpack.c.l.b16 %v3622
      %v3763 = vunpack.c.l.b16 %v3623
      %v3764 = vunpack.c.l.b16 %v3624
      %v3765 = vunpack.c.l.b16 %v3625
      %v3766 = vunpack.c.l.b16 %v3626
      %v3767 = vunpack.c.l.b16 %v3627
      %v3768 = vunpack.c.l.b16 %v3628
      %v3769 = vunpack.c.l.b16 %v3629
      %v3770 = vunpack.c.l.b16 %v3630
      %v3771 = vunpack.c.l.b16 %v3631
      %v3772 = vunpack.c.l.b16 %v3632
      %v3773 = vunpack.c.l.b16 %v3633
      %v3774 = vunpack.c.l.b16 %v3634
      %v3775 = vunpack.c.l.b16 %v3635
      %v3776 = vunpack.c.l.b16 %v3636
      %v3777 = vunpack.c.l.b16 %v3637
      %v3778 = vunpack.c.l.b16 %v3638
      %v3779 = vunpack.c.l.b16 %v3639
      %v3780 = vunpack.c.l.b16 %v3640
      %v3781 = vunpack.c.l.b16 %v3641
      %v3782 = vunpack.c.l.b16 %v3642
      %v3783 = vunpack.c.l.b16 %v3643
      %v3784 = vunpack.c.l.b16 %v3644
      %v3785 = vunpack.c.l.b16 %v3645
      %v3786 = vunpack.c.l.b16 %v3646
      %v3787 = vunpack.c.l.b16 %v3647
      %v3788 = vunpack.c.l.b16 %v3648
      %v3789 = vunpack.c.l.b16 %v3649
      %v3790 = vunpack.c.l.b16 %v3650
      %v3791 = vunpack.c.l.b16 %v3651
      %v3792 = vunpack.c.l.b16 %v3652
      %v3793 = vunpack.c.l.b16 %v3653
      %v3794 = vunpack.c.l.b16 %v3654
      %v3795 = vunpack.c.l.b16 %v3655
      %v3796 = vunpack.c.l.b16 %v3656
      %v3797 = vunpack.c.l.b16 %v3657
      %v3798 = vunpack.c.l.b16 %v3658
      %v3799 = vunpack.c.l.b16 %v3659
      %v3800 = vunpack.c.l.b16 %v3660
      %v3801 = vunpack.c.l.b16 %v3661
      %v3802 = vunpack.c.l.b16 %v3662
      %v3803 = vunpack.c.l.b16 %v3663
      %v3804 = vunpack.c.l.b16 %v3664
      %v3805 = vunpack.c.l.b16 %v3665
      %v3806 = vunpack.c.l.b16 %v3666
      %v3807 = vunpack.c.l.b16 %v3667
      %v3808 = vunpack.c.l.b16 %v3668
      %v3809 = vpack.c.b16 %v3740, %v3739
      %v3810 = vpack.c.b16 %v3742, %v3741
      %v3811 = vpack.c.b16 %v3744, %v3743
      %v3812 = vpack.c.b16 %v3746, %v3745
      %v3813 = vpack.c.b16 %v3748, %v3747
      %v3814 = vpack.c.b16 %v3750, %v3749
      %v3815 = vpack.c.b16 %v3752, %v3751
      %v3816 = vpack.c.b16 %v3754, %v3753
      %v3817 = vpack.c.b16 %v3756, %v3755
      %v3818 = vpack.c.b16 %v3758, %v3757
      %v3819 = vpack.c.b16 %v3760, %v3759
      %v3820 = vpack.c.b16 %v3762, %v3761
      %v3821 = vpack.c.b16 %v3764, %v3763
      %v3822 = vpack.c.b16 %v3766, %v3765
      %v3823 = vpack.c.b16 %v3768, %v3767
      %v3824 = vpack.c.b16 %v3770, %v3769
      %v3825 = vpack.c.b16 %v3772, %v3771
      %v3826 = vpack.c.b16 %v3774, %v3773
      %v3827 = vpack.c.b16 %v3776, %v3775
      %v3828 = vpack.c.b16 %v3778, %v3777
      %v3829 = vpack.c.b16 %v3780, %v3779
      %v3830 = vpack.c.b16 %v3782, %v3781
      %v3831 = vpack.c.b16 %v3784, %v3783
      %v3832 = vpack.c.b16 %v3786, %v3785
      %v3833 = vpack.c.b16 %v3788, %v3787
      %v3834 = vpack.c.b16 %v3790, %v3789
      %v3835 = vpack.c.b16 %v3792, %v3791
      %v3836 = vpack.c.b16 %v3794, %v3793
      %v3837 = vpack.c.b16 %v3796, %v3795
      %v3838 = vpack.c.b16 %v3798, %v3797
      %v3839 = vpack.c.b16 %v3800, %v3799
      %v3840 = vpack.c.b16 %v3802, %v3801
      %v3841 = vpack.c.b16 %v3804, %v3803
      %v3842 = vpack.c.b16 %v3806, %v3805
      %v3843 = vpack.c.b16 %v3808, %v3807
      %3879 = vmatpush.bf16.msra.mxu0 %v3816
      %3880 = vmatpush.bf16.msra.mxu0 %v3815
      %3881 = vmatpush.bf16.msra.mxu0 %v3814
      %3882 = vmatpush.bf16.msra.mxu0 %v3813
      %3883 = vmatpush.bf16.msra.mxu0 %v3812
      %3884 = vmatpush.bf16.msra.mxu0 %v3811
      %3885 = vmatpush.bf16.msra.mxu0 %v3810
      %3886 = vmatpush.bf16.msra.mxu0 %v3809
      %3887 = vmatmul.bf16.gmra.mxu0 %v528
      %v3888 = vpop.f32.mrf.mxu0
      %v3889 = vadd.f32 0.0, %v3888
      %v3890 = vpop.f32.mrf.mxu0
      %v3891 = vadd.f32 0.0, %v3890
      %3892 = vmatmul.bf16.gmra.mxu0 %v533
      %v3893 = vpop.f32.mrf.mxu0
      %v3894 = vadd.f32 0.0, %v3893
      %v3895 = vpop.f32.mrf.mxu0
      %v3896 = vadd.f32 0.0, %v3895
      %3897 = vmatmul.bf16.gmra.mxu0 %v538
      %v3898 = vpop.f32.mrf.mxu0
      %v3899 = vadd.f32 0.0, %v3898
      %v3900 = vpop.f32.mrf.mxu0
      %v3901 = vadd.f32 0.0, %v3900
      %3902 = vmatmul.bf16.gmra.mxu0 %v543
      %v3903 = vpop.f32.mrf.mxu0
      %v3904 = vadd.f32 0.0, %v3903
      %v3905 = vpop.f32.mrf.mxu0
      %v3906 = vadd.f32 0.0, %v3905
      %3907 = vmatmul.bf16.gmra.mxu0 %v548
      %v3908 = vpop.f32.mrf.mxu0
      %v3909 = vadd.f32 0.0, %v3908
      %v3910 = vpop.f32.mrf.mxu0
      %v3911 = vadd.f32 0.0, %v3910
      %3912 = vmatmul.bf16.gmra.mxu0 %v553
      %v3913 = vpop.f32.mrf.mxu0
      %v3914 = vadd.f32 0.0, %v3913
      %v3915 = vpop.f32.mrf.mxu0
      %v3916 = vadd.f32 0.0, %v3915
      %3917 = vmatmul.bf16.gmra.mxu0 %v558
      %v3918 = vpop.f32.mrf.mxu0
      %v3919 = vadd.f32 0.0, %v3918
      %v3920 = vpop.f32.mrf.mxu0
      %v3921 = vadd.f32 0.0, %v3920
      %3922 = vmatmul.bf16.gmra.mxu0 %v563
      %v3923 = vpop.f32.mrf.mxu0
      %v3924 = vadd.f32 0.0, %v3923
      %v3925 = vpop.f32.mrf.mxu0
      %v3926 = vadd.f32 0.0, %v3925
      %3927 = vmatmul.bf16.gmra.mxu0 %v568
      %v3928 = vpop.f32.mrf.mxu0
      %v3929 = vadd.f32 0.0, %v3928
      %v3930 = vpop.f32.mrf.mxu0
      %v3931 = vadd.f32 0.0, %v3930
      %3932 = vmatmul.bf16.gmra.mxu0 %v573
      %v3933 = vpop.f32.mrf.mxu0
      %v3934 = vadd.f32 0.0, %v3933
      %v3935 = vpop.f32.mrf.mxu0
      %v3936 = vadd.f32 0.0, %v3935
      %3937 = vmatmul.bf16.gmra.mxu0 %v578
      %v3938 = vpop.f32.mrf.mxu0
      %v3939 = vadd.f32 0.0, %v3938
      %v3940 = vpop.f32.mrf.mxu0
      %v3941 = vadd.f32 0.0, %v3940
      %3942 = vmatmul.bf16.gmra.mxu0 %v583
      %v3943 = vpop.f32.mrf.mxu0
      %v3944 = vadd.f32 0.0, %v3943
      %v3945 = vpop.f32.mrf.mxu0
      %v3946 = vadd.f32 0.0, %v3945
      %3947 = vmatmul.bf16.gmra.mxu0 %v588
      %v3948 = vpop.f32.mrf.mxu0
      %v3949 = vadd.f32 0.0, %v3948
      %v3950 = vpop.f32.mrf.mxu0
      %3951 = vdwg.mxu0
      %3952 = vmatpush.bf16.msra.mxu0 %v3824
      %3953 = vmatpush.bf16.msra.mxu0 %v3823
      %3954 = vmatpush.bf16.msra.mxu0 %v3822
      %3955 = vmatpush.bf16.msra.mxu0 %v3821
      %3956 = vmatpush.bf16.msra.mxu0 %v3820
      %3957 = vmatpush.bf16.msra.mxu0 %v3819
      %3958 = vmatpush.bf16.msra.mxu0 %v3818
      %3959 = vmatpush.bf16.msra.mxu0 %v3817
      %3960 = vmatmul.bf16.gmra.mxu0 %v529
      %v3961 = vpop.f32.mrf.mxu0
      %v3962 = vadd.f32 %v3889, %v3961
      %v3963 = vpop.f32.mrf.mxu0
      %v3964 = vadd.f32 %v3891, %v3963
      %3965 = vmatmul.bf16.gmra.mxu0 %v534
      %v3966 = vpop.f32.mrf.mxu0
      %v3967 = vadd.f32 %v3894, %v3966
      %v3968 = vpop.f32.mrf.mxu0
      %v3969 = vadd.f32 %v3896, %v3968
      %3970 = vmatmul.bf16.gmra.mxu0 %v539
      %v3971 = vpop.f32.mrf.mxu0
      %v3972 = vadd.f32 %v3899, %v3971
      %v3973 = vpop.f32.mrf.mxu0
      %v3974 = vadd.f32 %v3901, %v3973
      %3975 = vmatmul.bf16.gmra.mxu0 %v544
      %v3976 = vpop.f32.mrf.mxu0
      %v3977 = vadd.f32 %v3904, %v3976
      %v3978 = vpop.f32.mrf.mxu0
      %v3979 = vadd.f32 %v3906, %v3978
      %3980 = vmatmul.bf16.gmra.mxu0 %v549
      %v3981 = vpop.f32.mrf.mxu0
      %v3982 = vadd.f32 %v3909, %v3981
      %v3983 = vpop.f32.mrf.mxu0
      %v3984 = vadd.f32 %v3911, %v3983
      %3985 = vmatmul.bf16.gmra.mxu0 %v554
      %v3986 = vpop.f32.mrf.mxu0
      %v3987 = vadd.f32 %v3914, %v3986
      %v3988 = vpop.f32.mrf.mxu0
      %v3989 = vadd.f32 %v3916, %v3988
      %3990 = vmatmul.bf16.gmra.mxu0 %v559
      %v3991 = vpop.f32.mrf.mxu0
      %v3992 = vadd.f32 %v3919, %v3991
      %v3993 = vpop.f32.mrf.mxu0
      %v3994 = vadd.f32 %v3921, %v3993
      %3995 = vmatmul.bf16.gmra.mxu0 %v564
      %v3996 = vpop.f32.mrf.mxu0
      %v3997 = vadd.f32 %v3924, %v3996
      %v3998 = vpop.f32.mrf.mxu0
      %v3999 = vadd.f32 %v3926, %v3998
      %4000 = vmatmul.bf16.gmra.mxu0 %v569
      %v4001 = vpop.f32.mrf.mxu0
      %v4002 = vadd.f32 %v3929, %v4001
      %v4003 = vpop.f32.mrf.mxu0
      %v4004 = vadd.f32 %v3931, %v4003
      %4005 = vmatmul.bf16.gmra.mxu0 %v574
      %v4006 = vpop.f32.mrf.mxu0
      %v4007 = vadd.f32 %v3934, %v4006
      %v4008 = vpop.f32.mrf.mxu0
      %v4009 = vadd.f32 %v3936, %v4008
      %4010 = vmatmul.bf16.gmra.mxu0 %v579
      %v4011 = vpop.f32.mrf.mxu0
      %v4012 = vadd.f32 %v3939, %v4011
      %v4013 = vpop.f32.mrf.mxu0
      %v4014 = vadd.f32 %v3941, %v4013
      %4015 = vmatmul.bf16.gmra.mxu0 %v584
      %v4016 = vpop.f32.mrf.mxu0
      %v4017 = vadd.f32 %v3944, %v4016
      %v4018 = vpop.f32.mrf.mxu0
      %v4019 = vadd.f32 %v3946, %v4018
      %4020 = vmatmul.bf16.gmra.mxu0 %v589
      %v4021 = vpop.f32.mrf.mxu0
      %v4022 = vadd.f32 %v3949, %v4021
      %v4023 = vpop.f32.mrf.mxu0
      %4024 = vdwg.mxu0
      %4025 = vmatpush.bf16.msra.mxu0 %v3832
      %4026 = vmatpush.bf16.msra.mxu0 %v3831
      %4027 = vmatpush.bf16.msra.mxu0 %v3830
      %4028 = vmatpush.bf16.msra.mxu0 %v3829
      %4029 = vmatpush.bf16.msra.mxu0 %v3828
      %4030 = vmatpush.bf16.msra.mxu0 %v3827
      %4031 = vmatpush.bf16.msra.mxu0 %v3826
      %4032 = vmatpush.bf16.msra.mxu0 %v3825
      %4033 = vmatmul.bf16.gmra.mxu0 %v530
      %v4034 = vpop.f32.mrf.mxu0
      %v4035 = vadd.f32 %v3962, %v4034
      %v4036 = vpop.f32.mrf.mxu0
      %v4037 = vadd.f32 %v3964, %v4036
      %4038 = vmatmul.bf16.gmra.mxu0 %v535
      %v4039 = vpop.f32.mrf.mxu0
      %v4040 = vadd.f32 %v3967, %v4039
      %v4041 = vpop.f32.mrf.mxu0
      %v4042 = vadd.f32 %v3969, %v4041
      %4043 = vmatmul.bf16.gmra.mxu0 %v540
      %v4044 = vpop.f32.mrf.mxu0
      %v4045 = vadd.f32 %v3972, %v4044
      %v4046 = vpop.f32.mrf.mxu0
      %v4047 = vadd.f32 %v3974, %v4046
      %4048 = vmatmul.bf16.gmra.mxu0 %v545
      %v4049 = vpop.f32.mrf.mxu0
      %v4050 = vadd.f32 %v3977, %v4049
      %v4051 = vpop.f32.mrf.mxu0
      %v4052 = vadd.f32 %v3979, %v4051
      %4053 = vmatmul.bf16.gmra.mxu0 %v550
      %v4054 = vpop.f32.mrf.mxu0
      %v4055 = vadd.f32 %v3982, %v4054
      %v4056 = vpop.f32.mrf.mxu0
      %v4057 = vadd.f32 %v3984, %v4056
      %4058 = vmatmul.bf16.gmra.mxu0 %v555
      %v4059 = vpop.f32.mrf.mxu0
      %v4060 = vadd.f32 %v3987, %v4059
      %v4061 = vpop.f32.mrf.mxu0
      %v4062 = vadd.f32 %v3989, %v4061
      %4063 = vmatmul.bf16.gmra.mxu0 %v560
      %v4064 = vpop.f32.mrf.mxu0
      %v4065 = vadd.f32 %v3992, %v4064
      %v4066 = vpop.f32.mrf.mxu0
      %v4067 = vadd.f32 %v3994, %v4066
      %4068 = vmatmul.bf16.gmra.mxu0 %v565
      %v4069 = vpop.f32.mrf.mxu0
      %v4070 = vadd.f32 %v3997, %v4069
      %v4071 = vpop.f32.mrf.mxu0
      %v4072 = vadd.f32 %v3999, %v4071
      %4073 = vmatmul.bf16.gmra.mxu0 %v570
      %v4074 = vpop.f32.mrf.mxu0
      %v4075 = vadd.f32 %v4002, %v4074
      %v4076 = vpop.f32.mrf.mxu0
      %v4077 = vadd.f32 %v4004, %v4076
      %4078 = vmatmul.bf16.gmra.mxu0 %v575
      %v4079 = vpop.f32.mrf.mxu0
      %v4080 = vadd.f32 %v4007, %v4079
      %v4081 = vpop.f32.mrf.mxu0
      %v4082 = vadd.f32 %v4009, %v4081
      %4083 = vmatmul.bf16.gmra.mxu0 %v580
      %v4084 = vpop.f32.mrf.mxu0
      %v4085 = vadd.f32 %v4012, %v4084
      %v4086 = vpop.f32.mrf.mxu0
      %v4087 = vadd.f32 %v4014, %v4086
      %4088 = vmatmul.bf16.gmra.mxu0 %v585
      %v4089 = vpop.f32.mrf.mxu0
      %v4090 = vadd.f32 %v4017, %v4089
      %v4091 = vpop.f32.mrf.mxu0
      %v4092 = vadd.f32 %v4019, %v4091
      %4093 = vmatmul.bf16.gmra.mxu0 %v590
      %v4094 = vpop.f32.mrf.mxu0
      %v4095 = vadd.f32 %v4022, %v4094
      %v4096 = vpop.f32.mrf.mxu0
      %4097 = vdwg.mxu0
      %4098 = vmatpush.bf16.msra.mxu0 %v3840
      %4099 = vmatpush.bf16.msra.mxu0 %v3839
      %4100 = vmatpush.bf16.msra.mxu0 %v3838
      %4101 = vmatpush.bf16.msra.mxu0 %v3837
      %4102 = vmatpush.bf16.msra.mxu0 %v3836
      %4103 = vmatpush.bf16.msra.mxu0 %v3835
      %4104 = vmatpush.bf16.msra.mxu0 %v3834
      %4105 = vmatpush.bf16.msra.mxu0 %v3833
      %4106 = vmatmul.bf16.gmra.mxu0 %v531
      %v4107 = vpop.f32.mrf.mxu0
      %v4108 = vadd.f32 %v4035, %v4107
      %v4109 = vpop.f32.mrf.mxu0
      %v4110 = vadd.f32 %v4037, %v4109
      %4111 = vmatmul.bf16.gmra.mxu0 %v536
      %v4112 = vpop.f32.mrf.mxu0
      %v4113 = vadd.f32 %v4040, %v4112
      %v4114 = vpop.f32.mrf.mxu0
      %v4115 = vadd.f32 %v4042, %v4114
      %4116 = vmatmul.bf16.gmra.mxu0 %v541
      %v4117 = vpop.f32.mrf.mxu0
      %v4118 = vadd.f32 %v4045, %v4117
      %v4119 = vpop.f32.mrf.mxu0
      %v4120 = vadd.f32 %v4047, %v4119
      %4121 = vmatmul.bf16.gmra.mxu0 %v546
      %v4122 = vpop.f32.mrf.mxu0
      %v4123 = vadd.f32 %v4050, %v4122
      %v4124 = vpop.f32.mrf.mxu0
      %v4125 = vadd.f32 %v4052, %v4124
      %4126 = vmatmul.bf16.gmra.mxu0 %v551
      %v4127 = vpop.f32.mrf.mxu0
      %v4128 = vadd.f32 %v4055, %v4127
      %v4129 = vpop.f32.mrf.mxu0
      %v4130 = vadd.f32 %v4057, %v4129
      %4131 = vmatmul.bf16.gmra.mxu0 %v556
      %v4132 = vpop.f32.mrf.mxu0
      %v4133 = vadd.f32 %v4060, %v4132
      %v4134 = vpop.f32.mrf.mxu0
      %v4135 = vadd.f32 %v4062, %v4134
      %4136 = vmatmul.bf16.gmra.mxu0 %v561
      %v4137 = vpop.f32.mrf.mxu0
      %v4138 = vadd.f32 %v4065, %v4137
      %v4139 = vpop.f32.mrf.mxu0
      %v4140 = vadd.f32 %v4067, %v4139
      %4141 = vmatmul.bf16.gmra.mxu0 %v566
      %v4142 = vpop.f32.mrf.mxu0
      %v4143 = vadd.f32 %v4070, %v4142
      %v4144 = vpop.f32.mrf.mxu0
      %v4145 = vadd.f32 %v4072, %v4144
      %4146 = vmatmul.bf16.gmra.mxu0 %v571
      %v4147 = vpop.f32.mrf.mxu0
      %v4148 = vadd.f32 %v4075, %v4147
      %v4149 = vpop.f32.mrf.mxu0
      %v4150 = vadd.f32 %v4077, %v4149
      %4151 = vmatmul.bf16.gmra.mxu0 %v576
      %v4152 = vpop.f32.mrf.mxu0
      %v4153 = vadd.f32 %v4080, %v4152
      %v4154 = vpop.f32.mrf.mxu0
      %v4155 = vadd.f32 %v4082, %v4154
      %4156 = vmatmul.bf16.gmra.mxu0 %v581
      %v4157 = vpop.f32.mrf.mxu0
      %v4158 = vadd.f32 %v4085, %v4157
      %v4159 = vpop.f32.mrf.mxu0
      %v4160 = vadd.f32 %v4087, %v4159
      %4161 = vmatmul.bf16.gmra.mxu0 %v586
      %v4162 = vpop.f32.mrf.mxu0
      %v4163 = vadd.f32 %v4090, %v4162
      %v4164 = vpop.f32.mrf.mxu0
      %v4165 = vadd.f32 %v4092, %v4164
      %4166 = vmatmul.bf16.gmra.mxu0 %v591
      %v4167 = vpop.f32.mrf.mxu0
      %v4168 = vadd.f32 %v4095, %v4167
      %v4169 = vpop.f32.mrf.mxu0
      %4170 = vdwg.mxu0
      %4171 = vmatpush.bf16.msra.mxu0 0
      %4172 = vmatpush.bf16.msra.mxu0 0
      %4173 = vmatpush.bf16.msra.mxu0 0
      %4174 = vmatpush.bf16.msra.mxu0 0
      %4175 = vmatpush.bf16.msra.mxu0 0
      %4176 = vmatpush.bf16.msra.mxu0 %v3843
      %4177 = vmatpush.bf16.msra.mxu0 %v3842
      %4178 = vmatpush.bf16.msra.mxu0 %v3841
      %4179 = vmatmul.bf16.gmra.mxu0 %v857
      %v4180 = vpop.f32.mrf.mxu0
      %v4181 = vadd.f32 %v4108, %v4180
      %v4182 = vpop.f32.mrf.mxu0
      %v4183 = vadd.f32 %v4110, %v4182
      %4184 = vmatmul.bf16.gmra.mxu0 %v860
      %v4185 = vpop.f32.mrf.mxu0
      %v4186 = vadd.f32 %v4113, %v4185
      %v4187 = vpop.f32.mrf.mxu0
      %v4188 = vadd.f32 %v4115, %v4187
      %4189 = vmatmul.bf16.gmra.mxu0 %v863
      %v4190 = vpop.f32.mrf.mxu0
      %v4191 = vadd.f32 %v4118, %v4190
      %v4192 = vpop.f32.mrf.mxu0
      %v4193 = vadd.f32 %v4120, %v4192
      %4194 = vmatmul.bf16.gmra.mxu0 %v866
      %v4195 = vpop.f32.mrf.mxu0
      %v4196 = vadd.f32 %v4123, %v4195
      %v4197 = vpop.f32.mrf.mxu0
      %v4198 = vadd.f32 %v4125, %v4197
      %4199 = vmatmul.bf16.gmra.mxu0 %v869
      %v4200 = vpop.f32.mrf.mxu0
      %v4201 = vadd.f32 %v4128, %v4200
      %v4202 = vpop.f32.mrf.mxu0
      %v4203 = vadd.f32 %v4130, %v4202
      %4204 = vmatmul.bf16.gmra.mxu0 %v872
      %v4205 = vpop.f32.mrf.mxu0
      %v4206 = vadd.f32 %v4133, %v4205
      %v4207 = vpop.f32.mrf.mxu0
      %v4208 = vadd.f32 %v4135, %v4207
      %4209 = vmatmul.bf16.gmra.mxu0 %v875
      %v4210 = vpop.f32.mrf.mxu0
      %v4211 = vadd.f32 %v4138, %v4210
      %v4212 = vpop.f32.mrf.mxu0
      %v4213 = vadd.f32 %v4140, %v4212
      %4214 = vmatmul.bf16.gmra.mxu0 %v878
      %v4215 = vpop.f32.mrf.mxu0
      %v4216 = vadd.f32 %v4143, %v4215
      %v4217 = vpop.f32.mrf.mxu0
      %v4218 = vadd.f32 %v4145, %v4217
      %4219 = vmatmul.bf16.gmra.mxu0 %v881
      %v4220 = vpop.f32.mrf.mxu0
      %v4221 = vadd.f32 %v4148, %v4220
      %v4222 = vpop.f32.mrf.mxu0
      %v4223 = vadd.f32 %v4150, %v4222
      %4224 = vmatmul.bf16.gmra.mxu0 %v884
      %v4225 = vpop.f32.mrf.mxu0
      %v4226 = vadd.f32 %v4153, %v4225
      %v4227 = vpop.f32.mrf.mxu0
      %v4228 = vadd.f32 %v4155, %v4227
      %4229 = vmatmul.bf16.gmra.mxu0 %v887
      %v4230 = vpop.f32.mrf.mxu0
      %v4231 = vadd.f32 %v4158, %v4230
      %v4232 = vpop.f32.mrf.mxu0
      %v4233 = vadd.f32 %v4160, %v4232
      %4234 = vmatmul.bf16.gmra.mxu0 %v890
      %v4235 = vpop.f32.mrf.mxu0
      %v4236 = vadd.f32 %v4163, %v4235
      %v4237 = vpop.f32.mrf.mxu0
      %v4238 = vadd.f32 %v4165, %v4237
      %4239 = vmatmul.bf16.gmra.mxu0 %v893
      %v4240 = vpop.f32.mrf.mxu0
      %v4241 = vadd.f32 %v4168, %v4240
      %v4242 = vpop.f32.mrf.mxu0
      %4243 = vdwg.mxu0
      %vm4269 = vcmask 1043456
      %v4270 = vrot.slane %v4181, 4
      %v4271 = vrot.slane %v4183, 4
      %v4272 = vsel %vm4269, %v4270, %v4271
      %v4273 = vrot.slane %v4186, 4
      %v4274 = vsel %vm4269, %v4271, %v4273
      %v4275 = vrot.slane %v4188, 4
      %v4276 = vsel %vm4269, %v4273, %v4275
      %v4277 = vrot.slane %v4191, 4
      %v4278 = vsel %vm4269, %v4275, %v4277
      %v4279 = vrot.slane %v4193, 4
      %v4280 = vsel %vm4269, %v4277, %v4279
      %v4281 = vrot.slane %v4196, 4
      %v4282 = vsel %vm4269, %v4279, %v4281
      %v4283 = vrot.slane %v4198, 4
      %v4284 = vsel %vm4269, %v4281, %v4283
      %v4285 = vrot.slane %v4201, 4
      %v4286 = vsel %vm4269, %v4283, %v4285
      %v4287 = vrot.slane %v4203, 4
      %v4288 = vsel %vm4269, %v4285, %v4287
      %v4289 = vrot.slane %v4206, 4
      %v4290 = vsel %vm4269, %v4287, %v4289
      %v4291 = vrot.slane %v4208, 4
      %v4292 = vsel %vm4269, %v4289, %v4291
      %v4293 = vrot.slane %v4211, 4
      %v4294 = vsel %vm4269, %v4291, %v4293
      %v4295 = vrot.slane %v4213, 4
      %v4296 = vsel %vm4269, %v4293, %v4295
      %v4297 = vrot.slane %v4216, 4
      %v4298 = vsel %vm4269, %v4295, %v4297
      %v4299 = vrot.slane %v4218, 4
      %v4300 = vsel %vm4269, %v4297, %v4299
      %v4301 = vrot.slane %v4221, 4
      %v4302 = vsel %vm4269, %v4299, %v4301
      %v4303 = vrot.slane %v4223, 4
      %v4304 = vsel %vm4269, %v4301, %v4303
      %v4305 = vrot.slane %v4226, 4
      %v4306 = vsel %vm4269, %v4303, %v4305
      %v4307 = vrot.slane %v4228, 4
      %v4308 = vsel %vm4269, %v4305, %v4307
      %v4309 = vrot.slane %v4231, 4
      %v4310 = vsel %vm4269, %v4307, %v4309
      %v4311 = vrot.slane %v4233, 4
      %v4312 = vsel %vm4269, %v4309, %v4311
      %v4313 = vrot.slane %v4236, 4
      %v4314 = vsel %vm4269, %v4311, %v4313
      %v4315 = vrot.slane %v4238, 4
      %v4316 = vsel %vm4269, %v4313, %v4315
      %v4317 = vrot.slane %v4241, 4
      %v4318 = vsel %vm4269, %v4315, %v4317
      %v4344 = vadd.f32 %v3573, %v4272
      %v4345 = vadd.f32 %v3574, %v4274
      %v4346 = vadd.f32 %v3575, %v4276
      %v4347 = vadd.f32 %v3576, %v4278
      %v4348 = vadd.f32 %v3577, %v4280
      %v4349 = vadd.f32 %v3578, %v4282
      %v4350 = vadd.f32 %v3579, %v4284
      %v4351 = vadd.f32 %v3580, %v4286
      %v4352 = vadd.f32 %v3581, %v4288
      %v4353 = vadd.f32 %v3582, %v4290
      %v4354 = vadd.f32 %v3583, %v4292
      %v4355 = vadd.f32 %v3584, %v4294
      %v4356 = vadd.f32 %v3585, %v4296
      %v4357 = vadd.f32 %v3586, %v4298
      %v4358 = vadd.f32 %v3587, %v4300
      %v4359 = vadd.f32 %v3588, %v4302
      %v4360 = vadd.f32 %v3589, %v4304
      %v4361 = vadd.f32 %v3590, %v4306
      %v4362 = vadd.f32 %v3591, %v4308
      %v4363 = vadd.f32 %v3592, %v4310
      %v4364 = vadd.f32 %v3593, %v4312
      %v4365 = vadd.f32 %v3594, %v4314
      %v4366 = vadd.f32 %v3595, %v4316
      %v4367 = vadd.f32 %v3596, %v4318
      %v4368 = vadd.f32 %v3597, %v4317
      %s4369 = scalar_lea.vmem %s1, 1400
      %v4370 = vld [vmem:[%s4369] sm:$0xf]
      %v4371 = vld [vmem:[%s4369 + $0x4] sm:$0xf]
      %v4372 = vld [vmem:[%s4369 + $0x8] sm:$0xf]
      %v4373 = vld [vmem:[%s4369 + $0xc] sm:$0xf]
      %v4374 = vld [vmem:[%s4369 + $0x10] sm:$0xf]
      %v4375 = vld [vmem:[%s4369 + $0x14] sm:$0xf]
      %v4376 = vld [vmem:[%s4369 + $0x18] sm:$0xf]
      %v4377 = vld [vmem:[%s4369 + $0x1c] sm:$0xf]
      %v4378 = vld [vmem:[%s4369 + $0x20] sm:$0xf]
      %v4379 = vld [vmem:[%s4369 + $0x24] sm:$0xf]
      %v4380 = vld [vmem:[%s4369 + $0x28] sm:$0xf]
      %v4381 = vld [vmem:[%s4369 + $0x2c] sm:$0xf]
      %v4382 = vld [vmem:[%s4369 + $0x30] sm:$0xf]
      %v4383 = vld [vmem:[%s4369 + $0x34] sm:$0xf]
      %v4384 = vld [vmem:[%s4369 + $0x38] sm:$0xf]
      %v4385 = vld [vmem:[%s4369 + $0x3c] sm:$0xf]
      %v4386 = vld [vmem:[%s4369 + $0x40] sm:$0xf]
      %v4387 = vld [vmem:[%s4369 + $0x44] sm:$0xf]
      %v4388 = vld [vmem:[%s4369 + $0x48] sm:$0xf]
      %v4389 = vld [vmem:[%s4369 + $0x4c] sm:$0xf]
      %v4390 = vld [vmem:[%s4369 + $0x50] sm:$0xf]
      %v4391 = vld [vmem:[%s4369 + $0x54] sm:$0xf]
      %v4392 = vld [vmem:[%s4369 + $0x58] sm:$0xf]
      %v4393 = vld [vmem:[%s4369 + $0x5c] sm:$0xf]
      %v4394 = vld [vmem:[%s4369 + $0x60] sm:$0xf]
      %v4395 = vld [vmem:[%s4369 + $0x64] sm:$0xf]
      %v4396 = vld [vmem:[%s4369 + $0x68] sm:$0xf]
      %v4397 = vld [vmem:[%s4369 + $0x6c] sm:$0xf]
      %v4398 = vld [vmem:[%s4369 + $0x70] sm:$0xf]
      %v4399 = vld [vmem:[%s4369 + $0x74] sm:$0xf]
      %v4400 = vld [vmem:[%s4369 + $0x78] sm:$0xf]
      %v4401 = vld [vmem:[%s4369 + $0x7c] sm:$0xf]
      %v4402 = vld [vmem:[%s4369 + $0x80] sm:$0xf]
      %v4403 = vld [vmem:[%s4369 + $0x84] sm:$0xf]
      %v4404 = vld [vmem:[%s4369 + $0x88] sm:$0xf]
      %v4405 = vld [vmem:[%s4369 + $0x8c] sm:$0xf]
      %v4406 = vld [vmem:[%s4369 + $0x90] sm:$0xf]
      %v4407 = vld [vmem:[%s4369 + $0x94] sm:$0xf]
      %v4408 = vld [vmem:[%s4369 + $0x98] sm:$0xf]
      %v4409 = vld [vmem:[%s4369 + $0x9c] sm:$0xf]
      %v4410 = vld [vmem:[%s4369 + $0xa0] sm:$0xf]
      %v4411 = vld [vmem:[%s4369 + $0xa4] sm:$0xf]
      %v4412 = vld [vmem:[%s4369 + $0xa8] sm:$0xf]
      %v4413 = vld [vmem:[%s4369 + $0xac] sm:$0xf]
      %v4414 = vld [vmem:[%s4369 + $0xb0] sm:$0xf]
      %v4415 = vld [vmem:[%s4369 + $0xb4] sm:$0xf]
      %v4416 = vld [vmem:[%s4369 + $0xb8] sm:$0xf]
      %v4417 = vld [vmem:[%s4369 + $0xbc] sm:$0xf]
      %v4418 = vld [vmem:[%s4369 + $0xc0] sm:$0xf]
      %v4419 = vld [vmem:[%s4369 + $0xc4] sm:$0xf]
      %v4420 = vld [vmem:[%s4369 + $0xc8] sm:$0xf]
      %v4421 = vld [vmem:[%s4369 + $0xcc] sm:$0xf]
      %v4422 = vld [vmem:[%s4369 + $0xd0] sm:$0xf]
      %v4423 = vld [vmem:[%s4369 + $0xd4] sm:$0xf]
      %v4424 = vld [vmem:[%s4369 + $0xd8] sm:$0xf]
      %v4425 = vld [vmem:[%s4369 + $0xdc] sm:$0xf]
      %v4426 = vld [vmem:[%s4369 + $0xe0] sm:$0xf]
      %v4427 = vld [vmem:[%s4369 + $0xe4] sm:$0xf]
      %v4428 = vld [vmem:[%s4369 + $0xe8] sm:$0xf]
      %v4429 = vld [vmem:[%s4369 + $0xec] sm:$0xf]
      %v4430 = vld [vmem:[%s4369 + $0xf0] sm:$0xf]
      %v4431 = vld [vmem:[%s4369 + $0xf4] sm:$0xf]
      %v4432 = vld [vmem:[%s4369 + $0xf8] sm:$0xf]
      %v4433 = vld [vmem:[%s4369 + $0xfc] sm:$0xf]
      %v4434 = vld [vmem:[%s4369 + $0x100] sm:$0xf]
      %v4435 = vld [vmem:[%s4369 + $0x104] sm:$0xf]
      %v4436 = vld [vmem:[%s4369 + $0x108] sm:$0xf]
      %v4437 = vld [vmem:[%s4369 + $0x10c] sm:$0xf]
      %v4438 = vld [vmem:[%s4369 + $0x110] sm:$0xf]
      %v4439 = vld [vmem:[%s4369 + $0x114] sm:$0xf]
      %v4510 = vunpack.c.l.b16 %v4370
      %v4511 = vunpack.c.l.b16 %v4371
      %v4512 = vunpack.c.l.b16 %v4372
      %v4513 = vunpack.c.l.b16 %v4373
      %v4514 = vunpack.c.l.b16 %v4374
      %v4515 = vunpack.c.l.b16 %v4375
      %v4516 = vunpack.c.l.b16 %v4376
      %v4517 = vunpack.c.l.b16 %v4377
      %v4518 = vunpack.c.l.b16 %v4378
      %v4519 = vunpack.c.l.b16 %v4379
      %v4520 = vunpack.c.l.b16 %v4380
      %v4521 = vunpack.c.l.b16 %v4381
      %v4522 = vunpack.c.l.b16 %v4382
      %v4523 = vunpack.c.l.b16 %v4383
      %v4524 = vunpack.c.l.b16 %v4384
      %v4525 = vunpack.c.l.b16 %v4385
      %v4526 = vunpack.c.l.b16 %v4386
      %v4527 = vunpack.c.l.b16 %v4387
      %v4528 = vunpack.c.l.b16 %v4388
      %v4529 = vunpack.c.l.b16 %v4389
      %v4530 = vunpack.c.l.b16 %v4390
      %v4531 = vunpack.c.l.b16 %v4391
      %v4532 = vunpack.c.l.b16 %v4392
      %v4533 = vunpack.c.l.b16 %v4393
      %v4534 = vunpack.c.l.b16 %v4394
      %v4535 = vunpack.c.l.b16 %v4395
      %v4536 = vunpack.c.l.b16 %v4396
      %v4537 = vunpack.c.l.b16 %v4397
      %v4538 = vunpack.c.l.b16 %v4398
      %v4539 = vunpack.c.l.b16 %v4399
      %v4540 = vunpack.c.l.b16 %v4400
      %v4541 = vunpack.c.l.b16 %v4401
      %v4542 = vunpack.c.l.b16 %v4402
      %v4543 = vunpack.c.l.b16 %v4403
      %v4544 = vunpack.c.l.b16 %v4404
      %v4545 = vunpack.c.l.b16 %v4405
      %v4546 = vunpack.c.l.b16 %v4406
      %v4547 = vunpack.c.l.b16 %v4407
      %v4548 = vunpack.c.l.b16 %v4408
      %v4549 = vunpack.c.l.b16 %v4409
      %v4550 = vunpack.c.l.b16 %v4410
      %v4551 = vunpack.c.l.b16 %v4411
      %v4552 = vunpack.c.l.b16 %v4412
      %v4553 = vunpack.c.l.b16 %v4413
      %v4554 = vunpack.c.l.b16 %v4414
      %v4555 = vunpack.c.l.b16 %v4415
      %v4556 = vunpack.c.l.b16 %v4416
      %v4557 = vunpack.c.l.b16 %v4417
      %v4558 = vunpack.c.l.b16 %v4418
      %v4559 = vunpack.c.l.b16 %v4419
      %v4560 = vunpack.c.l.b16 %v4420
      %v4561 = vunpack.c.l.b16 %v4421
      %v4562 = vunpack.c.l.b16 %v4422
      %v4563 = vunpack.c.l.b16 %v4423
      %v4564 = vunpack.c.l.b16 %v4424
      %v4565 = vunpack.c.l.b16 %v4425
      %v4566 = vunpack.c.l.b16 %v4426
      %v4567 = vunpack.c.l.b16 %v4427
      %v4568 = vunpack.c.l.b16 %v4428
      %v4569 = vunpack.c.l.b16 %v4429
      %v4570 = vunpack.c.l.b16 %v4430
      %v4571 = vunpack.c.l.b16 %v4431
      %v4572 = vunpack.c.l.b16 %v4432
      %v4573 = vunpack.c.l.b16 %v4433
      %v4574 = vunpack.c.l.b16 %v4434
      %v4575 = vunpack.c.l.b16 %v4435
      %v4576 = vunpack.c.l.b16 %v4436
      %v4577 = vunpack.c.l.b16 %v4437
      %v4578 = vunpack.c.l.b16 %v4438
      %v4579 = vunpack.c.l.b16 %v4439
      %v4580 = vpack.c.b16 %v4511, %v4510
      %v4581 = vpack.c.b16 %v4513, %v4512
      %v4582 = vpack.c.b16 %v4515, %v4514
      %v4583 = vpack.c.b16 %v4517, %v4516
      %v4584 = vpack.c.b16 %v4519, %v4518
      %v4585 = vpack.c.b16 %v4521, %v4520
      %v4586 = vpack.c.b16 %v4523, %v4522
      %v4587 = vpack.c.b16 %v4525, %v4524
      %v4588 = vpack.c.b16 %v4527, %v4526
      %v4589 = vpack.c.b16 %v4529, %v4528
      %v4590 = vpack.c.b16 %v4531, %v4530
      %v4591 = vpack.c.b16 %v4533, %v4532
      %v4592 = vpack.c.b16 %v4535, %v4534
      %v4593 = vpack.c.b16 %v4537, %v4536
      %v4594 = vpack.c.b16 %v4539, %v4538
      %v4595 = vpack.c.b16 %v4541, %v4540
      %v4596 = vpack.c.b16 %v4543, %v4542
      %v4597 = vpack.c.b16 %v4545, %v4544
      %v4598 = vpack.c.b16 %v4547, %v4546
      %v4599 = vpack.c.b16 %v4549, %v4548
      %v4600 = vpack.c.b16 %v4551, %v4550
      %v4601 = vpack.c.b16 %v4553, %v4552
      %v4602 = vpack.c.b16 %v4555, %v4554
      %v4603 = vpack.c.b16 %v4557, %v4556
      %v4604 = vpack.c.b16 %v4559, %v4558
      %v4605 = vpack.c.b16 %v4561, %v4560
      %v4606 = vpack.c.b16 %v4563, %v4562
      %v4607 = vpack.c.b16 %v4565, %v4564
      %v4608 = vpack.c.b16 %v4567, %v4566
      %v4609 = vpack.c.b16 %v4569, %v4568
      %v4610 = vpack.c.b16 %v4571, %v4570
      %v4611 = vpack.c.b16 %v4573, %v4572
      %v4612 = vpack.c.b16 %v4575, %v4574
      %v4613 = vpack.c.b16 %v4577, %v4576
      %v4614 = vpack.c.b16 %v4579, %v4578
      %4650 = vmatpush.bf16.msra.mxu0 %v4587
      %4651 = vmatpush.bf16.msra.mxu0 %v4586
      %4652 = vmatpush.bf16.msra.mxu0 %v4585
      %4653 = vmatpush.bf16.msra.mxu0 %v4584
      %4654 = vmatpush.bf16.msra.mxu0 %v4583
      %4655 = vmatpush.bf16.msra.mxu0 %v4582
      %4656 = vmatpush.bf16.msra.mxu0 %v4581
      %4657 = vmatpush.bf16.msra.mxu0 %v4580
      %4658 = vmatmul.bf16.gmra.mxu0 %v528
      %v4659 = vpop.f32.mrf.mxu0
      %v4660 = vadd.f32 0.0, %v4659
      %v4661 = vpop.f32.mrf.mxu0
      %v4662 = vadd.f32 0.0, %v4661
      %4663 = vmatmul.bf16.gmra.mxu0 %v533
      %v4664 = vpop.f32.mrf.mxu0
      %v4665 = vadd.f32 0.0, %v4664
      %v4666 = vpop.f32.mrf.mxu0
      %v4667 = vadd.f32 0.0, %v4666
      %4668 = vmatmul.bf16.gmra.mxu0 %v538
      %v4669 = vpop.f32.mrf.mxu0
      %v4670 = vadd.f32 0.0, %v4669
      %v4671 = vpop.f32.mrf.mxu0
      %v4672 = vadd.f32 0.0, %v4671
      %4673 = vmatmul.bf16.gmra.mxu0 %v543
      %v4674 = vpop.f32.mrf.mxu0
      %v4675 = vadd.f32 0.0, %v4674
      %v4676 = vpop.f32.mrf.mxu0
      %v4677 = vadd.f32 0.0, %v4676
      %4678 = vmatmul.bf16.gmra.mxu0 %v548
      %v4679 = vpop.f32.mrf.mxu0
      %v4680 = vadd.f32 0.0, %v4679
      %v4681 = vpop.f32.mrf.mxu0
      %v4682 = vadd.f32 0.0, %v4681
      %4683 = vmatmul.bf16.gmra.mxu0 %v553
      %v4684 = vpop.f32.mrf.mxu0
      %v4685 = vadd.f32 0.0, %v4684
      %v4686 = vpop.f32.mrf.mxu0
      %v4687 = vadd.f32 0.0, %v4686
      %4688 = vmatmul.bf16.gmra.mxu0 %v558
      %v4689 = vpop.f32.mrf.mxu0
      %v4690 = vadd.f32 0.0, %v4689
      %v4691 = vpop.f32.mrf.mxu0
      %v4692 = vadd.f32 0.0, %v4691
      %4693 = vmatmul.bf16.gmra.mxu0 %v563
      %v4694 = vpop.f32.mrf.mxu0
      %v4695 = vadd.f32 0.0, %v4694
      %v4696 = vpop.f32.mrf.mxu0
      %v4697 = vadd.f32 0.0, %v4696
      %4698 = vmatmul.bf16.gmra.mxu0 %v568
      %v4699 = vpop.f32.mrf.mxu0
      %v4700 = vadd.f32 0.0, %v4699
      %v4701 = vpop.f32.mrf.mxu0
      %v4702 = vadd.f32 0.0, %v4701
      %4703 = vmatmul.bf16.gmra.mxu0 %v573
      %v4704 = vpop.f32.mrf.mxu0
      %v4705 = vadd.f32 0.0, %v4704
      %v4706 = vpop.f32.mrf.mxu0
      %v4707 = vadd.f32 0.0, %v4706
      %4708 = vmatmul.bf16.gmra.mxu0 %v578
      %v4709 = vpop.f32.mrf.mxu0
      %v4710 = vadd.f32 0.0, %v4709
      %v4711 = vpop.f32.mrf.mxu0
      %v4712 = vadd.f32 0.0, %v4711
      %4713 = vmatmul.bf16.gmra.mxu0 %v583
      %v4714 = vpop.f32.mrf.mxu0
      %v4715 = vadd.f32 0.0, %v4714
      %v4716 = vpop.f32.mrf.mxu0
      %v4717 = vadd.f32 0.0, %v4716
      %4718 = vmatmul.bf16.gmra.mxu0 %v588
      %v4719 = vpop.f32.mrf.mxu0
      %v4720 = vadd.f32 0.0, %v4719
      %v4721 = vpop.f32.mrf.mxu0
      %4722 = vdwg.mxu0
      %4723 = vmatpush.bf16.msra.mxu0 %v4595
      %4724 = vmatpush.bf16.msra.mxu0 %v4594
      %4725 = vmatpush.bf16.msra.mxu0 %v4593
      %4726 = vmatpush.bf16.msra.mxu0 %v4592
      %4727 = vmatpush.bf16.msra.mxu0 %v4591
      %4728 = vmatpush.bf16.msra.mxu0 %v4590
      %4729 = vmatpush.bf16.msra.mxu0 %v4589
      %4730 = vmatpush.bf16.msra.mxu0 %v4588
      %4731 = vmatmul.bf16.gmra.mxu0 %v529
      %v4732 = vpop.f32.mrf.mxu0
      %v4733 = vadd.f32 %v4660, %v4732
      %v4734 = vpop.f32.mrf.mxu0
      %v4735 = vadd.f32 %v4662, %v4734
      %4736 = vmatmul.bf16.gmra.mxu0 %v534
      %v4737 = vpop.f32.mrf.mxu0
      %v4738 = vadd.f32 %v4665, %v4737
      %v4739 = vpop.f32.mrf.mxu0
      %v4740 = vadd.f32 %v4667, %v4739
      %4741 = vmatmul.bf16.gmra.mxu0 %v539
      %v4742 = vpop.f32.mrf.mxu0
      %v4743 = vadd.f32 %v4670, %v4742
      %v4744 = vpop.f32.mrf.mxu0
      %v4745 = vadd.f32 %v4672, %v4744
      %4746 = vmatmul.bf16.gmra.mxu0 %v544
      %v4747 = vpop.f32.mrf.mxu0
      %v4748 = vadd.f32 %v4675, %v4747
      %v4749 = vpop.f32.mrf.mxu0
      %v4750 = vadd.f32 %v4677, %v4749
      %4751 = vmatmul.bf16.gmra.mxu0 %v549
      %v4752 = vpop.f32.mrf.mxu0
      %v4753 = vadd.f32 %v4680, %v4752
      %v4754 = vpop.f32.mrf.mxu0
      %v4755 = vadd.f32 %v4682, %v4754
      %4756 = vmatmul.bf16.gmra.mxu0 %v554
      %v4757 = vpop.f32.mrf.mxu0
      %v4758 = vadd.f32 %v4685, %v4757
      %v4759 = vpop.f32.mrf.mxu0
      %v4760 = vadd.f32 %v4687, %v4759
      %4761 = vmatmul.bf16.gmra.mxu0 %v559
      %v4762 = vpop.f32.mrf.mxu0
      %v4763 = vadd.f32 %v4690, %v4762
      %v4764 = vpop.f32.mrf.mxu0
      %v4765 = vadd.f32 %v4692, %v4764
      %4766 = vmatmul.bf16.gmra.mxu0 %v564
      %v4767 = vpop.f32.mrf.mxu0
      %v4768 = vadd.f32 %v4695, %v4767
      %v4769 = vpop.f32.mrf.mxu0
      %v4770 = vadd.f32 %v4697, %v4769
      %4771 = vmatmul.bf16.gmra.mxu0 %v569
      %v4772 = vpop.f32.mrf.mxu0
      %v4773 = vadd.f32 %v4700, %v4772
      %v4774 = vpop.f32.mrf.mxu0
      %v4775 = vadd.f32 %v4702, %v4774
      %4776 = vmatmul.bf16.gmra.mxu0 %v574
      %v4777 = vpop.f32.mrf.mxu0
      %v4778 = vadd.f32 %v4705, %v4777
      %v4779 = vpop.f32.mrf.mxu0
      %v4780 = vadd.f32 %v4707, %v4779
      %4781 = vmatmul.bf16.gmra.mxu0 %v579
      %v4782 = vpop.f32.mrf.mxu0
      %v4783 = vadd.f32 %v4710, %v4782
      %v4784 = vpop.f32.mrf.mxu0
      %v4785 = vadd.f32 %v4712, %v4784
      %4786 = vmatmul.bf16.gmra.mxu0 %v584
      %v4787 = vpop.f32.mrf.mxu0
      %v4788 = vadd.f32 %v4715, %v4787
      %v4789 = vpop.f32.mrf.mxu0
      %v4790 = vadd.f32 %v4717, %v4789
      %4791 = vmatmul.bf16.gmra.mxu0 %v589
      %v4792 = vpop.f32.mrf.mxu0
      %v4793 = vadd.f32 %v4720, %v4792
      %v4794 = vpop.f32.mrf.mxu0
      %4795 = vdwg.mxu0
      %4796 = vmatpush.bf16.msra.mxu0 %v4603
      %4797 = vmatpush.bf16.msra.mxu0 %v4602
      %4798 = vmatpush.bf16.msra.mxu0 %v4601
      %4799 = vmatpush.bf16.msra.mxu0 %v4600
      %4800 = vmatpush.bf16.msra.mxu0 %v4599
      %4801 = vmatpush.bf16.msra.mxu0 %v4598
      %4802 = vmatpush.bf16.msra.mxu0 %v4597
      %4803 = vmatpush.bf16.msra.mxu0 %v4596
      %4804 = vmatmul.bf16.gmra.mxu0 %v530
      %v4805 = vpop.f32.mrf.mxu0
      %v4806 = vadd.f32 %v4733, %v4805
      %v4807 = vpop.f32.mrf.mxu0
      %v4808 = vadd.f32 %v4735, %v4807
      %4809 = vmatmul.bf16.gmra.mxu0 %v535
      %v4810 = vpop.f32.mrf.mxu0
      %v4811 = vadd.f32 %v4738, %v4810
      %v4812 = vpop.f32.mrf.mxu0
      %v4813 = vadd.f32 %v4740, %v4812
      %4814 = vmatmul.bf16.gmra.mxu0 %v540
      %v4815 = vpop.f32.mrf.mxu0
      %v4816 = vadd.f32 %v4743, %v4815
      %v4817 = vpop.f32.mrf.mxu0
      %v4818 = vadd.f32 %v4745, %v4817
      %4819 = vmatmul.bf16.gmra.mxu0 %v545
      %v4820 = vpop.f32.mrf.mxu0
      %v4821 = vadd.f32 %v4748, %v4820
      %v4822 = vpop.f32.mrf.mxu0
      %v4823 = vadd.f32 %v4750, %v4822
      %4824 = vmatmul.bf16.gmra.mxu0 %v550
      %v4825 = vpop.f32.mrf.mxu0
      %v4826 = vadd.f32 %v4753, %v4825
      %v4827 = vpop.f32.mrf.mxu0
      %v4828 = vadd.f32 %v4755, %v4827
      %4829 = vmatmul.bf16.gmra.mxu0 %v555
      %v4830 = vpop.f32.mrf.mxu0
      %v4831 = vadd.f32 %v4758, %v4830
      %v4832 = vpop.f32.mrf.mxu0
      %v4833 = vadd.f32 %v4760, %v4832
      %4834 = vmatmul.bf16.gmra.mxu0 %v560
      %v4835 = vpop.f32.mrf.mxu0
      %v4836 = vadd.f32 %v4763, %v4835
      %v4837 = vpop.f32.mrf.mxu0
      %v4838 = vadd.f32 %v4765, %v4837
      %4839 = vmatmul.bf16.gmra.mxu0 %v565
      %v4840 = vpop.f32.mrf.mxu0
      %v4841 = vadd.f32 %v4768, %v4840
      %v4842 = vpop.f32.mrf.mxu0
      %v4843 = vadd.f32 %v4770, %v4842
      %4844 = vmatmul.bf16.gmra.mxu0 %v570
      %v4845 = vpop.f32.mrf.mxu0
      %v4846 = vadd.f32 %v4773, %v4845
      %v4847 = vpop.f32.mrf.mxu0
      %v4848 = vadd.f32 %v4775, %v4847
      %4849 = vmatmul.bf16.gmra.mxu0 %v575
      %v4850 = vpop.f32.mrf.mxu0
      %v4851 = vadd.f32 %v4778, %v4850
      %v4852 = vpop.f32.mrf.mxu0
      %v4853 = vadd.f32 %v4780, %v4852
      %4854 = vmatmul.bf16.gmra.mxu0 %v580
      %v4855 = vpop.f32.mrf.mxu0
      %v4856 = vadd.f32 %v4783, %v4855
      %v4857 = vpop.f32.mrf.mxu0
      %v4858 = vadd.f32 %v4785, %v4857
      %4859 = vmatmul.bf16.gmra.mxu0 %v585
      %v4860 = vpop.f32.mrf.mxu0
      %v4861 = vadd.f32 %v4788, %v4860
      %v4862 = vpop.f32.mrf.mxu0
      %v4863 = vadd.f32 %v4790, %v4862
      %4864 = vmatmul.bf16.gmra.mxu0 %v590
      %v4865 = vpop.f32.mrf.mxu0
      %v4866 = vadd.f32 %v4793, %v4865
      %v4867 = vpop.f32.mrf.mxu0
      %4868 = vdwg.mxu0
      %4869 = vmatpush.bf16.msra.mxu0 %v4611
      %4870 = vmatpush.bf16.msra.mxu0 %v4610
      %4871 = vmatpush.bf16.msra.mxu0 %v4609
      %4872 = vmatpush.bf16.msra.mxu0 %v4608
      %4873 = vmatpush.bf16.msra.mxu0 %v4607
      %4874 = vmatpush.bf16.msra.mxu0 %v4606
      %4875 = vmatpush.bf16.msra.mxu0 %v4605
      %4876 = vmatpush.bf16.msra.mxu0 %v4604
      %4877 = vmatmul.bf16.gmra.mxu0 %v531
      %v4878 = vpop.f32.mrf.mxu0
      %v4879 = vadd.f32 %v4806, %v4878
      %v4880 = vpop.f32.mrf.mxu0
      %v4881 = vadd.f32 %v4808, %v4880
      %4882 = vmatmul.bf16.gmra.mxu0 %v536
      %v4883 = vpop.f32.mrf.mxu0
      %v4884 = vadd.f32 %v4811, %v4883
      %v4885 = vpop.f32.mrf.mxu0
      %v4886 = vadd.f32 %v4813, %v4885
      %4887 = vmatmul.bf16.gmra.mxu0 %v541
      %v4888 = vpop.f32.mrf.mxu0
      %v4889 = vadd.f32 %v4816, %v4888
      %v4890 = vpop.f32.mrf.mxu0
      %v4891 = vadd.f32 %v4818, %v4890
      %4892 = vmatmul.bf16.gmra.mxu0 %v546
      %v4893 = vpop.f32.mrf.mxu0
      %v4894 = vadd.f32 %v4821, %v4893
      %v4895 = vpop.f32.mrf.mxu0
      %v4896 = vadd.f32 %v4823, %v4895
      %4897 = vmatmul.bf16.gmra.mxu0 %v551
      %v4898 = vpop.f32.mrf.mxu0
      %v4899 = vadd.f32 %v4826, %v4898
      %v4900 = vpop.f32.mrf.mxu0
      %v4901 = vadd.f32 %v4828, %v4900
      %4902 = vmatmul.bf16.gmra.mxu0 %v556
      %v4903 = vpop.f32.mrf.mxu0
      %v4904 = vadd.f32 %v4831, %v4903
      %v4905 = vpop.f32.mrf.mxu0
      %v4906 = vadd.f32 %v4833, %v4905
      %4907 = vmatmul.bf16.gmra.mxu0 %v561
      %v4908 = vpop.f32.mrf.mxu0
      %v4909 = vadd.f32 %v4836, %v4908
      %v4910 = vpop.f32.mrf.mxu0
      %v4911 = vadd.f32 %v4838, %v4910
      %4912 = vmatmul.bf16.gmra.mxu0 %v566
      %v4913 = vpop.f32.mrf.mxu0
      %v4914 = vadd.f32 %v4841, %v4913
      %v4915 = vpop.f32.mrf.mxu0
      %v4916 = vadd.f32 %v4843, %v4915
      %4917 = vmatmul.bf16.gmra.mxu0 %v571
      %v4918 = vpop.f32.mrf.mxu0
      %v4919 = vadd.f32 %v4846, %v4918
      %v4920 = vpop.f32.mrf.mxu0
      %v4921 = vadd.f32 %v4848, %v4920
      %4922 = vmatmul.bf16.gmra.mxu0 %v576
      %v4923 = vpop.f32.mrf.mxu0
      %v4924 = vadd.f32 %v4851, %v4923
      %v4925 = vpop.f32.mrf.mxu0
      %v4926 = vadd.f32 %v4853, %v4925
      %4927 = vmatmul.bf16.gmra.mxu0 %v581
      %v4928 = vpop.f32.mrf.mxu0
      %v4929 = vadd.f32 %v4856, %v4928
      %v4930 = vpop.f32.mrf.mxu0
      %v4931 = vadd.f32 %v4858, %v4930
      %4932 = vmatmul.bf16.gmra.mxu0 %v586
      %v4933 = vpop.f32.mrf.mxu0
      %v4934 = vadd.f32 %v4861, %v4933
      %v4935 = vpop.f32.mrf.mxu0
      %v4936 = vadd.f32 %v4863, %v4935
      %4937 = vmatmul.bf16.gmra.mxu0 %v591
      %v4938 = vpop.f32.mrf.mxu0
      %v4939 = vadd.f32 %v4866, %v4938
      %v4940 = vpop.f32.mrf.mxu0
      %4941 = vdwg.mxu0
      %4942 = vmatpush.bf16.msra.mxu0 0
      %4943 = vmatpush.bf16.msra.mxu0 0
      %4944 = vmatpush.bf16.msra.mxu0 0
      %4945 = vmatpush.bf16.msra.mxu0 0
      %4946 = vmatpush.bf16.msra.mxu0 0
      %4947 = vmatpush.bf16.msra.mxu0 %v4614
      %4948 = vmatpush.bf16.msra.mxu0 %v4613
      %4949 = vmatpush.bf16.msra.mxu0 %v4612
      %4950 = vmatmul.bf16.gmra.mxu0 %v857
      %v4951 = vpop.f32.mrf.mxu0
      %v4952 = vadd.f32 %v4879, %v4951
      %v4953 = vpop.f32.mrf.mxu0
      %v4954 = vadd.f32 %v4881, %v4953
      %4955 = vmatmul.bf16.gmra.mxu0 %v860
      %v4956 = vpop.f32.mrf.mxu0
      %v4957 = vadd.f32 %v4884, %v4956
      %v4958 = vpop.f32.mrf.mxu0
      %v4959 = vadd.f32 %v4886, %v4958
      %4960 = vmatmul.bf16.gmra.mxu0 %v863
      %v4961 = vpop.f32.mrf.mxu0
      %v4962 = vadd.f32 %v4889, %v4961
      %v4963 = vpop.f32.mrf.mxu0
      %v4964 = vadd.f32 %v4891, %v4963
      %4965 = vmatmul.bf16.gmra.mxu0 %v866
      %v4966 = vpop.f32.mrf.mxu0
      %v4967 = vadd.f32 %v4894, %v4966
      %v4968 = vpop.f32.mrf.mxu0
      %v4969 = vadd.f32 %v4896, %v4968
      %4970 = vmatmul.bf16.gmra.mxu0 %v869
      %v4971 = vpop.f32.mrf.mxu0
      %v4972 = vadd.f32 %v4899, %v4971
      %v4973 = vpop.f32.mrf.mxu0
      %v4974 = vadd.f32 %v4901, %v4973
      %4975 = vmatmul.bf16.gmra.mxu0 %v872
      %v4976 = vpop.f32.mrf.mxu0
      %v4977 = vadd.f32 %v4904, %v4976
      %v4978 = vpop.f32.mrf.mxu0
      %v4979 = vadd.f32 %v4906, %v4978
      %4980 = vmatmul.bf16.gmra.mxu0 %v875
      %v4981 = vpop.f32.mrf.mxu0
      %v4982 = vadd.f32 %v4909, %v4981
      %v4983 = vpop.f32.mrf.mxu0
      %v4984 = vadd.f32 %v4911, %v4983
      %4985 = vmatmul.bf16.gmra.mxu0 %v878
      %v4986 = vpop.f32.mrf.mxu0
      %v4987 = vadd.f32 %v4914, %v4986
      %v4988 = vpop.f32.mrf.mxu0
      %v4989 = vadd.f32 %v4916, %v4988
      %4990 = vmatmul.bf16.gmra.mxu0 %v881
      %v4991 = vpop.f32.mrf.mxu0
      %v4992 = vadd.f32 %v4919, %v4991
      %v4993 = vpop.f32.mrf.mxu0
      %v4994 = vadd.f32 %v4921, %v4993
      %4995 = vmatmul.bf16.gmra.mxu0 %v884
      %v4996 = vpop.f32.mrf.mxu0
      %v4997 = vadd.f32 %v4924, %v4996
      %v4998 = vpop.f32.mrf.mxu0
      %v4999 = vadd.f32 %v4926, %v4998
      %5000 = vmatmul.bf16.gmra.mxu0 %v887
      %v5001 = vpop.f32.mrf.mxu0
      %v5002 = vadd.f32 %v4929, %v5001
      %v5003 = vpop.f32.mrf.mxu0
      %v5004 = vadd.f32 %v4931, %v5003
      %5005 = vmatmul.bf16.gmra.mxu0 %v890
      %v5006 = vpop.f32.mrf.mxu0
      %v5007 = vadd.f32 %v4934, %v5006
      %v5008 = vpop.f32.mrf.mxu0
      %v5009 = vadd.f32 %v4936, %v5008
      %5010 = vmatmul.bf16.gmra.mxu0 %v893
      %v5011 = vpop.f32.mrf.mxu0
      %v5012 = vadd.f32 %v4939, %v5011
      %v5013 = vpop.f32.mrf.mxu0
      %5014 = vdwg.mxu0
      %vm5040 = vcmask 1042432
      %v5041 = vrot.slane %v4952, 5
      %v5042 = vrot.slane %v4954, 5
      %v5043 = vsel %vm5040, %v5041, %v5042
      %v5044 = vrot.slane %v4957, 5
      %v5045 = vsel %vm5040, %v5042, %v5044
      %v5046 = vrot.slane %v4959, 5
      %v5047 = vsel %vm5040, %v5044, %v5046
      %v5048 = vrot.slane %v4962, 5
      %v5049 = vsel %vm5040, %v5046, %v5048
      %v5050 = vrot.slane %v4964, 5
      %v5051 = vsel %vm5040, %v5048, %v5050
      %v5052 = vrot.slane %v4967, 5
      %v5053 = vsel %vm5040, %v5050, %v5052
      %v5054 = vrot.slane %v4969, 5
      %v5055 = vsel %vm5040, %v5052, %v5054
      %v5056 = vrot.slane %v4972, 5
      %v5057 = vsel %vm5040, %v5054, %v5056
      %v5058 = vrot.slane %v4974, 5
      %v5059 = vsel %vm5040, %v5056, %v5058
      %v5060 = vrot.slane %v4977, 5
      %v5061 = vsel %vm5040, %v5058, %v5060
      %v5062 = vrot.slane %v4979, 5
      %v5063 = vsel %vm5040, %v5060, %v5062
      %v5064 = vrot.slane %v4982, 5
      %v5065 = vsel %vm5040, %v5062, %v5064
      %v5066 = vrot.slane %v4984, 5
      %v5067 = vsel %vm5040, %v5064, %v5066
      %v5068 = vrot.slane %v4987, 5
      %v5069 = vsel %vm5040, %v5066, %v5068
      %v5070 = vrot.slane %v4989, 5
      %v5071 = vsel %vm5040, %v5068, %v5070
      %v5072 = vrot.slane %v4992, 5
      %v5073 = vsel %vm5040, %v5070, %v5072
      %v5074 = vrot.slane %v4994, 5
      %v5075 = vsel %vm5040, %v5072, %v5074
      %v5076 = vrot.slane %v4997, 5
      %v5077 = vsel %vm5040, %v5074, %v5076
      %v5078 = vrot.slane %v4999, 5
      %v5079 = vsel %vm5040, %v5076, %v5078
      %v5080 = vrot.slane %v5002, 5
      %v5081 = vsel %vm5040, %v5078, %v5080
      %v5082 = vrot.slane %v5004, 5
      %v5083 = vsel %vm5040, %v5080, %v5082
      %v5084 = vrot.slane %v5007, 5
      %v5085 = vsel %vm5040, %v5082, %v5084
      %v5086 = vrot.slane %v5009, 5
      %v5087 = vsel %vm5040, %v5084, %v5086
      %v5088 = vrot.slane %v5012, 5
      %v5089 = vsel %vm5040, %v5086, %v5088
      %v5115 = vadd.f32 %v4344, %v5043
      %v5116 = vadd.f32 %v4345, %v5045
      %v5117 = vadd.f32 %v4346, %v5047
      %v5118 = vadd.f32 %v4347, %v5049
      %v5119 = vadd.f32 %v4348, %v5051
      %v5120 = vadd.f32 %v4349, %v5053
      %v5121 = vadd.f32 %v4350, %v5055
      %v5122 = vadd.f32 %v4351, %v5057
      %v5123 = vadd.f32 %v4352, %v5059
      %v5124 = vadd.f32 %v4353, %v5061
      %v5125 = vadd.f32 %v4354, %v5063
      %v5126 = vadd.f32 %v4355, %v5065
      %v5127 = vadd.f32 %v4356, %v5067
      %v5128 = vadd.f32 %v4357, %v5069
      %v5129 = vadd.f32 %v4358, %v5071
      %v5130 = vadd.f32 %v4359, %v5073
      %v5131 = vadd.f32 %v4360, %v5075
      %v5132 = vadd.f32 %v4361, %v5077
      %v5133 = vadd.f32 %v4362, %v5079
      %v5134 = vadd.f32 %v4363, %v5081
      %v5135 = vadd.f32 %v4364, %v5083
      %v5136 = vadd.f32 %v4365, %v5085
      %v5137 = vadd.f32 %v4366, %v5087
      %v5138 = vadd.f32 %v4367, %v5089
      %v5139 = vadd.f32 %v4368, %v5088
      %v5140 = vld [vmem:[%s2] sm:$0x1]
      %v5142 = vperm.slane %v5140, 0
      %v5144 = vadd.f32 %v5115, %v5142
      %v5145 = vadd.f32 %v5116, %v5142
      %v5146 = vadd.f32 %v5117, %v5142
      %v5147 = vadd.f32 %v5118, %v5142
      %v5148 = vadd.f32 %v5119, %v5142
      %v5149 = vadd.f32 %v5120, %v5142
      %v5150 = vadd.f32 %v5121, %v5142
      %v5151 = vadd.f32 %v5122, %v5142
      %v5152 = vadd.f32 %v5123, %v5142
      %v5153 = vadd.f32 %v5124, %v5142
      %v5154 = vadd.f32 %v5125, %v5142
      %v5155 = vadd.f32 %v5126, %v5142
      %v5156 = vadd.f32 %v5127, %v5142
      %v5157 = vadd.f32 %v5128, %v5142
      %v5158 = vadd.f32 %v5129, %v5142
      %v5159 = vadd.f32 %v5130, %v5142
      %v5160 = vadd.f32 %v5131, %v5142
      %v5161 = vadd.f32 %v5132, %v5142
      %v5162 = vadd.f32 %v5133, %v5142
      %v5163 = vadd.f32 %v5134, %v5142
      %v5164 = vadd.f32 %v5135, %v5142
      %v5165 = vadd.f32 %v5136, %v5142
      %v5166 = vadd.f32 %v5137, %v5142
      %v5167 = vadd.f32 %v5138, %v5142
      %v5168 = vadd.f32 %v5139, %v5142
      %v5169 = vmax.f32 %v5144, 0.0
      %v5170 = vmax.f32 %v5145, 0.0
      %v5171 = vmax.f32 %v5146, 0.0
      %v5172 = vmax.f32 %v5147, 0.0
      %v5173 = vmax.f32 %v5148, 0.0
      %v5174 = vmax.f32 %v5149, 0.0
      %v5175 = vmax.f32 %v5150, 0.0
      %v5176 = vmax.f32 %v5151, 0.0
      %v5177 = vmax.f32 %v5152, 0.0
      %v5178 = vmax.f32 %v5153, 0.0
      %v5179 = vmax.f32 %v5154, 0.0
      %v5180 = vmax.f32 %v5155, 0.0
      %v5181 = vmax.f32 %v5156, 0.0
      %v5182 = vmax.f32 %v5157, 0.0
      %v5183 = vmax.f32 %v5158, 0.0
      %v5184 = vmax.f32 %v5159, 0.0
      %v5185 = vmax.f32 %v5160, 0.0
      %v5186 = vmax.f32 %v5161, 0.0
      %v5187 = vmax.f32 %v5162, 0.0
      %v5188 = vmax.f32 %v5163, 0.0
      %v5189 = vmax.f32 %v5164, 0.0
      %v5190 = vmax.f32 %v5165, 0.0
      %v5191 = vmax.f32 %v5166, 0.0
      %v5192 = vmax.f32 %v5167, 0.0
      %v5193 = vmax.f32 %v5168, 0.0
      %vm5194 = vcmask 490496
      %5195 = vst.msk [vmem:[%s170] sm:$0xff] %vm5194, %v5169
      %5196 = vst.msk [vmem:[%s170 + $0x8] sm:$0xff] %vm5194, %v5170
      %5197 = vst.msk [vmem:[%s170 + $0x10] sm:$0xff] %vm5194, %v5171
      %5198 = vst.msk [vmem:[%s170 + $0x18] sm:$0xff] %vm5194, %v5172
      %5199 = vst.msk [vmem:[%s170 + $0x20] sm:$0xff] %vm5194, %v5173
      %5200 = vst.msk [vmem:[%s170 + $0x28] sm:$0xff] %vm5194, %v5174
      %5201 = vst.msk [vmem:[%s170 + $0x30] sm:$0xff] %vm5194, %v5175
      %5202 = vst.msk [vmem:[%s170 + $0x38] sm:$0xff] %vm5194, %v5176
      %5203 = vst.msk [vmem:[%s170 + $0x40] sm:$0xff] %vm5194, %v5177
      %5204 = vst.msk [vmem:[%s170 + $0x48] sm:$0xff] %vm5194, %v5178
      %5205 = vst.msk [vmem:[%s170 + $0x50] sm:$0xff] %vm5194, %v5179
      %5206 = vst.msk [vmem:[%s170 + $0x58] sm:$0xff] %vm5194, %v5180
      %5207 = vst.msk [vmem:[%s170 + $0x60] sm:$0xff] %vm5194, %v5181
      %5208 = vst.msk [vmem:[%s170 + $0x68] sm:$0xff] %vm5194, %v5182
      %5209 = vst.msk [vmem:[%s170 + $0x70] sm:$0xff] %vm5194, %v5183
      %5210 = vst.msk [vmem:[%s170 + $0x78] sm:$0xff] %vm5194, %v5184
      %5211 = vst.msk [vmem:[%s170 + $0x80] sm:$0xff] %vm5194, %v5185
      %5212 = vst.msk [vmem:[%s170 + $0x88] sm:$0xff] %vm5194, %v5186
      %5213 = vst.msk [vmem:[%s170 + $0x90] sm:$0xff] %vm5194, %v5187
      %5214 = vst.msk [vmem:[%s170 + $0x98] sm:$0xff] %vm5194, %v5188
      %5215 = vst.msk [vmem:[%s170 + $0xa0] sm:$0xff] %vm5194, %v5189
      %5216 = vst.msk [vmem:[%s170 + $0xa8] sm:$0xff] %vm5194, %v5190
      %5217 = vst.msk [vmem:[%s170 + $0xb0] sm:$0xff] %vm5194, %v5191
      %5218 = vst.msk [vmem:[%s170 + $0xb8] sm:$0xff] %vm5194, %v5192
      %vm5219 = vcmask 485376
      %5220 = vst.msk [vmem:[%s170 + $0xc0] sm:$0x7] %vm5219, %v5193
      %p5221 = scmp.lt.s32.totalorder %s14, 1
      %s5222 = scalar_select %p5221, %s14, 1
      %s5223 = smul.addr %s5222, 25
      %s5224 = smul.addr %s5223, 8
      %s5225 = scalar_lea.vmem %s3, %s5224
      // Predicated region
      $region33: #{cnn_forward.2} parent=31 // pred_check
        %p5226 = pneg %p100
      $region34: #{cnn_forward.2} parent=31 // pred_check_branch
        %5228 = sbr.rel (%p5226) target = $region36
      $region35: #{cnn_forward.2} parent=31 // pred_region
        _
      $region36: #{cnn_forward.2} parent=31 // pred_fallthru
        _
    $region32: #{cnn_forward.2} parent=5 // pred_fallthru
      _
    %p5229 = scmp.le.s32.totalorder 2, %s9
    // Predicated region
    $region37: #{cnn_forward.2} parent=5 // pred_check
      %p5230 = pneg %p5229
    $region38: #{cnn_forward.2} parent=5 // pred_check_branch
      %5232 = sbr.rel (%p5230) target = $region40
    $region39: #{cnn_forward.2} parent=5 // pred_region
      %s5233 = ssub.s32 %s9, 2
      // Predicated region
      $region41: #{cnn_forward.2} parent=39 // pred_check
        %p5234 = pneg %p106
      $region42: #{cnn_forward.2} parent=39 // pred_check_branch
        %5236 = sbr.rel (%p5234) target = $region44
      $region43: #{cnn_forward.2} parent=39 // pred_region
        %p5237 = scmp.lt.s32.totalorder %s15, 1
        %s5238 = scalar_select %p5237, %s15, 1
        %s5239 = smul.addr %s5238, 25
        %s5240 = smul.addr %s5239, 8
        %s5241 = scalar_lea.vmem %s3, %s5240
      $region44: #{cnn_forward.2} parent=39 // pred_fallthru
        _
    $region40: #{cnn_forward.2} parent=5 // pred_fallthru
      _
  $region6: #{cnn_forward.2} parent=0 // loop_footer
    %s13 = sadd.s32 1, %s9
  $region7: #{cnn_forward.2} parent=0 // loop_footer_branch
    %8 = sbr.rel target = $region3
  $region8: #{cnn_forward.2} parent=0 // loop_exit
    _

// kernel: cnn_forward.3
$region0: #{cnn_forward.3}
  #allocation0 [shape = 'u32[]', space=smem, size = 0x4, offset = 0x4, fixed_abs, tag = 'smem constant byte address 0x4 - core index']
  #allocation1 [shape = 'u32[72,128]{1,0:T(1,128)}', space=vmem, size = 0x9000, scoped, tag = 'internal scratch']
  %s0 = inlined_call_operand.vmem [shape: bf16[2,25,180], index: 0, kind: input, shape index: {}]
  %s1 = inlined_call_operand.vmem [shape: bf16[5,180,80], index: 1, kind: input, shape index: {}]
  %s2 = inlined_call_operand.vmem [shape: f32[1,80], index: 2, kind: input, shape index: {}]
  %s3 = inlined_call_operand.vmem [shape: f32[2,21,80], index: 3, kind: output, shape index: {}]
  %s4 = sld [smem:[#allocation0]]
  $region45: #{cnn_forward.3} parent=0
    _
  %s6 = ssub.s32 1, %s4
  %s7 = scalar_select 0, %s6, %s4
  loop: start=0, step=1, limit=4
  $region2: #{cnn_forward.3} parent=0 // loop_pre_header
    _
  $region3: #{cnn_forward.3} parent=0 // loop_header
    %s9 = sphi 0, %s13
    %p10 = scmp.ge.s32.totalorder %s9, 4
    %s19 = sphi 0, %s21
    %s22 = sphi 0, %s19
    %s23 = sphi 0, %s22
    %s39 = sphi 0, %s23
    %s43 = sphi 0, %s43
    %s45 = sphi 0, %s43
    %s46 = sphi 0, %s45
    %s60 = sphi 0, %s46
    %s64 = sphi 0, %s64
    %s66 = sphi 0, %s64
    %s67 = sphi 0, %s66
    %s81 = sphi 0, %s67
    %s87 = sphi 0, %s89
    %s90 = sphi 0, %s87
    %s91 = sphi 0, %s90
    %s107 = sphi 0, %s91
  $region4: #{cnn_forward.3} parent=0 // loop_header_branch
    %12 = sbr.rel (%p10) target = $region8
  $region5: #{cnn_forward.3} parent=0 // loop_body
    %s14 = ssub.s32 %s9, 1
    %s15 = ssub.s32 %s9, 2
    %s16 = sadd.s32 %s9, 1
    %s17 = ssub.s32 %s9, %s16
    %p18 = scmp.eq.s32.totalorder %s17, 0
    %s20 = sadd.s32 %s19, 1
    %s21 = scalar_select %p18, %s19, %s20
    %p24 = pneg %p18
    %p25 = scmp.eq.s32.totalorder %s9, 1
    %p26 = por %p24, %p25
    %p27 = scmp.ne.s32.totalorder %s19, %s22
    %p28 = scmp.eq.s32.totalorder %s9, 0
    %p29 = por %p27, %p28
    %p30 = scmp.ne.s32.totalorder %s19, %s22
    %p31 = scmp.eq.s32.totalorder %s14, 1
    %p32 = por %p30, %p31
    %p33 = scmp.ne.s32.totalorder %s22, %s23
    %p34 = scmp.eq.s32.totalorder %s14, 0
    %p35 = por %p33, %p34
    %p36 = scmp.ne.s32.totalorder %s22, %s23
    %p37 = scmp.eq.s32.totalorder %s15, 1
    %p38 = por %p36, %p37
    %p40 = scmp.ne.s32.totalorder %s23, %s39
    %p41 = scmp.eq.s32.totalorder %s15, 0
    %p42 = por %p40, %p41
    %s44 = sadd.s32 %s43, 1
    %p47 = scmp.eq.s32.totalorder %s9, 1
    %p48 = scmp.ne.s32.totalorder %s43, %s45
    %p49 = scmp.eq.s32.totalorder %s9, 0
    %p50 = por %p48, %p49
    %p51 = scmp.ne.s32.totalorder %s43, %s45
    %p52 = scmp.eq.s32.totalorder %s14, 1
    %p53 = por %p51, %p52
    %p54 = scmp.ne.s32.totalorder %s45, %s46
    %p55 = scmp.eq.s32.totalorder %s14, 0
    %p56 = por %p54, %p55
    %p57 = scmp.ne.s32.totalorder %s45, %s46
    %p58 = scmp.eq.s32.totalorder %s15, 1
    %p59 = por %p57, %p58
    %p61 = scmp.ne.s32.totalorder %s46, %s60
    %p62 = scmp.eq.s32.totalorder %s15, 0
    %p63 = por %p61, %p62
    %s65 = sadd.s32 %s64, 1
    %p68 = scmp.eq.s32.totalorder %s9, 1
    %p69 = scmp.ne.s32.totalorder %s64, %s66
    %p70 = scmp.eq.s32.totalorder %s9, 0
    %p71 = por %p69, %p70
    %p72 = scmp.ne.s32.totalorder %s64, %s66
    %p73 = scmp.eq.s32.totalorder %s14, 1
    %p74 = por %p72, %p73
    %p75 = scmp.ne.s32.totalorder %s66, %s67
    %p76 = scmp.eq.s32.totalorder %s14, 0
    %p77 = por %p75, %p76
    %p78 = scmp.ne.s32.totalorder %s66, %s67
    %p79 = scmp.eq.s32.totalorder %s15, 1
    %p80 = por %p78, %p79
    %p82 = scmp.ne.s32.totalorder %s67, %s81
    %p83 = scmp.eq.s32.totalorder %s15, 0
    %p84 = por %p82, %p83
    %s85 = ssub.s32 %s9, %s16
    %p86 = scmp.eq.s32.totalorder %s85, 0
    %s88 = sadd.s32 %s87, 1
    %s89 = scalar_select %p86, %s87, %s88
    %p92 = pneg %p86
    %p93 = scmp.eq.s32.totalorder %s9, 1
    %p94 = por %p92, %p93
    %p95 = scmp.ne.s32.totalorder %s87, %s90
    %p96 = scmp.eq.s32.totalorder %s9, 0
    %p97 = por %p95, %p96
    %p98 = scmp.ne.s32.totalorder %s87, %s90
    %p99 = scmp.eq.s32.totalorder %s14, 1
    %p100 = por %p98, %p99
    %p101 = scmp.ne.s32.totalorder %s90, %s91
    %p102 = scmp.eq.s32.totalorder %s14, 0
    %p103 = por %p101, %p102
    %p104 = scmp.ne.s32.totalorder %s90, %s91
    %p105 = scmp.eq.s32.totalorder %s15, 1
    %p106 = por %p104, %p105
    %p108 = scmp.ne.s32.totalorder %s91, %s107
    %p109 = scmp.eq.s32.totalorder %s15, 0
    %p110 = por %p108, %p109
    %p111 = scmp.le.s32.totalorder 1, %s9
    %p112 = scmp.lt.s32.totalorder %s9, 3
    %p113 = pnand %p111, %p112
    %p114 = pneg %p113
    // Predicated region
    $region9: #{cnn_forward.3} parent=5 // pred_check
      _
    $region10: #{cnn_forward.3} parent=5 // pred_check_branch
      %116 = sbr.rel (%p113) target = $region12
    $region11: #{cnn_forward.3} parent=5 // pred_region
      %s117 = ssub.s32 %s9, 1
      // Predicated region
      $region13: #{cnn_forward.3} parent=11 // pred_check
        %p118 = pneg %p56
      $region14: #{cnn_forward.3} parent=11 // pred_check_branch
        %120 = sbr.rel (%p118) target = $region16
      $region15: #{cnn_forward.3} parent=11 // pred_region
        _
      $region16: #{cnn_forward.3} parent=11 // pred_fallthru
        _
      // Predicated region
      $region17: #{cnn_forward.3} parent=11 // pred_check
        %p121 = pneg %p77
      $region18: #{cnn_forward.3} parent=11 // pred_check_branch
        %123 = sbr.rel (%p121) target = $region20
      $region19: #{cnn_forward.3} parent=11 // pred_region
        _
      $region20: #{cnn_forward.3} parent=11 // pred_fallthru
        _
    $region12: #{cnn_forward.3} parent=5 // pred_fallthru
      _
    %p124 = scmp.lt.s32.totalorder %s9, 2
    // Predicated region
    $region21: #{cnn_forward.3} parent=5 // pred_check
      %p125 = pneg %p124
    $region22: #{cnn_forward.3} parent=5 // pred_check_branch
      %127 = sbr.rel (%p125) target = $region24
    $region23: #{cnn_forward.3} parent=5 // pred_region
      // Predicated region
      $region25: #{cnn_forward.3} parent=23 // pred_check
        %p128 = pneg %p29
      $region26: #{cnn_forward.3} parent=23 // pred_check_branch
        %130 = sbr.rel (%p128) target = $region28
      $region27: #{cnn_forward.3} parent=23 // pred_region
        %p131 = scmp.lt.s32.totalorder %s9, 1
        %s132 = scalar_select %p131, %s9, 1
        %s133 = smul.addr %s132, 8
        %s134 = smul.addr %s133, 4
        %s135 = scalar_lea.vmem %s0, %s134
      $region28: #{cnn_forward.3} parent=23 // pred_fallthru
        _
    $region24: #{cnn_forward.3} parent=5 // pred_fallthru
      _
    %p136 = scmp.le.s32.totalorder 1, %s9
    %p137 = scmp.lt.s32.totalorder %s9, 3
    %p138 = pnand %p136, %p137
    %p139 = pneg %p138
    // Predicated region
    $region29: #{cnn_forward.3} parent=5 // pred_check
      _
    $region30: #{cnn_forward.3} parent=5 // pred_check_branch
      %141 = sbr.rel (%p138) target = $region32
    $region31: #{cnn_forward.3} parent=5 // pred_region
      %s142 = ssub.s32 %s9, 1
      %p143 = scmp.lt.s32.totalorder %s14, 1
      %s144 = scalar_select %p143, %s14, 1
      %s145 = smul.addr %s144, 8
      %s146 = smul.addr %s145, 4
      %s147 = scalar_lea.vmem %s0, %s146
      %p148 = pneg %p35
      %p149 = pneg %p32
      %p150 = pneg %p56
      %p151 = pneg %p53
      %p152 = pneg %p77
      %p153 = pneg %p74
      %p154 = pneg %p103
      %p155 = pneg %p100
      %p156 = scmp.lt.s32.totalorder %s14, 1
      %s157 = scalar_select %p156, %s14, 1
      %s158 = smul.addr %s157, 3
      %s159 = smul.addr %s158, 8
      %s160 = scalar_lea.vmem %s3, %s159
      %p161 = scmp.lt.s32.totalorder %s14, 1
      %s162 = scalar_select %p161, %s14, 1
      %s163 = smul.addr %s162, 8
      %s164 = smul.addr %s163, 4
      %s165 = scalar_lea.vmem %s0, %s164
      %p166 = scmp.lt.s32.totalorder %s14, 1
      %s167 = scalar_select %p166, %s14, 1
      %s168 = smul.addr %s167, 3
      %s169 = smul.addr %s168, 8
      %s170 = scalar_lea.vmem %s3, %s169
      %v172 = vld [vmem:[%s165] sm:$0xff]
      %v173 = vld [vmem:[%s165 + $0x8] sm:$0xff]
      %v174 = vld [vmem:[%s165 + $0x10] sm:$0xff]
      %v175 = vld [vmem:[%s165 + $0x18] sm:$0x11]
      %v176 = vld [vmem:[%s1] sm:$0xf]
      %v177 = vld [vmem:[%s1 + $0x4] sm:$0xf]
      %v178 = vld [vmem:[%s1 + $0x8] sm:$0xf]
      %v179 = vld [vmem:[%s1 + $0xc] sm:$0xf]
      %v180 = vld [vmem:[%s1 + $0x10] sm:$0xf]
      %v181 = vld [vmem:[%s1 + $0x14] sm:$0xf]
      %v182 = vld [vmem:[%s1 + $0x18] sm:$0xf]
      %v183 = vld [vmem:[%s1 + $0x1c] sm:$0xf]
      %v184 = vld [vmem:[%s1 + $0x20] sm:$0xf]
      %v185 = vld [vmem:[%s1 + $0x24] sm:$0xf]
      %v186 = vld [vmem:[%s1 + $0x28] sm:$0xf]
      %v187 = vld [vmem:[%s1 + $0x2c] sm:$0xf]
      %v188 = vld [vmem:[%s1 + $0x30] sm:$0xf]
      %v189 = vld [vmem:[%s1 + $0x34] sm:$0xf]
      %v190 = vld [vmem:[%s1 + $0x38] sm:$0xf]
      %v191 = vld [vmem:[%s1 + $0x3c] sm:$0xf]
      %v192 = vld [vmem:[%s1 + $0x40] sm:$0xf]
      %v193 = vld [vmem:[%s1 + $0x44] sm:$0xf]
      %v194 = vld [vmem:[%s1 + $0x48] sm:$0xf]
      %v195 = vld [vmem:[%s1 + $0x4c] sm:$0xf]
      %v196 = vld [vmem:[%s1 + $0x50] sm:$0xf]
      %v197 = vld [vmem:[%s1 + $0x54] sm:$0xf]
      %v198 = vld [vmem:[%s1 + $0x58] sm:$0x3]
      %v203 = vunpack.c.l.b16 %v172
      %v204 = vunpack.c.h.b16 %v172
      %v205 = vunpack.c.l.b16 %v173
      %v206 = vunpack.c.h.b16 %v173
      %v207 = vunpack.c.l.b16 %v174
      %v208 = vunpack.c.h.b16 %v174
      %v209 = vunpack.c.l.b16 %v175
      %v210 = vunpack.c.h.b16 %v175
      %v211 = vpack.c.b16 %v205, %v203
      %v212 = vpack.c.b16 %v206, %v204
      %v213 = vpack.c.b16 %v209, %v207
      %v214 = vpack.c.b16 %v210, %v208
      %v240 = vunpack.c.l.b16 %v176
      %v241 = vunpack.c.l.b16 %v177
      %v242 = vunpack.c.l.b16 %v178
      %v243 = vunpack.c.l.b16 %v179
      %v244 = vunpack.c.l.b16 %v180
      %v245 = vunpack.c.l.b16 %v181
      %v246 = vunpack.c.l.b16 %v182
      %v247 = vunpack.c.l.b16 %v183
      %v248 = vunpack.c.l.b16 %v184
      %v249 = vunpack.c.l.b16 %v185
      %v250 = vunpack.c.l.b16 %v186
      %v251 = vunpack.c.l.b16 %v187
      %v252 = vunpack.c.l.b16 %v188
      %v253 = vunpack.c.l.b16 %v189
      %v254 = vunpack.c.l.b16 %v190
      %v255 = vunpack.c.l.b16 %v191
      %v256 = vunpack.c.l.b16 %v192
      %v257 = vunpack.c.l.b16 %v193
      %v258 = vunpack.c.l.b16 %v194
      %v259 = vunpack.c.l.b16 %v195
      %v260 = vunpack.c.l.b16 %v196
      %v261 = vunpack.c.l.b16 %v197
      %v262 = vunpack.c.l.b16 %v198
      %v263 = vpack.c.b16 %v241, %v240
      %v264 = vpack.c.b16 %v243, %v242
      %v265 = vpack.c.b16 %v245, %v244
      %v266 = vpack.c.b16 %v247, %v246
      %v267 = vpack.c.b16 %v249, %v248
      %v268 = vpack.c.b16 %v251, %v250
      %v269 = vpack.c.b16 %v253, %v252
      %v270 = vpack.c.b16 %v255, %v254
      %v271 = vpack.c.b16 %v257, %v256
      %v272 = vpack.c.b16 %v259, %v258
      %v273 = vpack.c.b16 %v261, %v260
      %v274 = vpack.c.b16 %v262, %v262
      %vm286 = vcmask 424960
      %v288 = vsel %vm286, %v212, 0
      %v291 = vsel %vm286, %v214, 0
      %vm293 = vcmask 1041408
      %v295 = vsel %vm293, %v274, 0
      %297 = vmatpush.bf16.msra.mxu0 %v270
      %298 = vmatpush.bf16.msra.mxu0 %v269
      %299 = vmatpush.bf16.msra.mxu0 %v268
      %300 = vmatpush.bf16.msra.mxu0 %v267
      %301 = vmatpush.bf16.msra.mxu0 %v266
      %302 = vmatpush.bf16.msra.mxu0 %v265
      %303 = vmatpush.bf16.msra.mxu0 %v264
      %304 = vmatpush.bf16.msra.mxu0 %v263
      %305 = vmatmul.bf16.gmra.mxu0 %v211
      %v306 = vpop.f32.mrf.mxu0
      %v307 = vadd.f32 0.0, %v306
      %v308 = vpop.f32.mrf.mxu0
      %v309 = vadd.f32 0.0, %v308
      %310 = vmatmul.bf16.gmra.mxu0 %v213
      %v311 = vpop.f32.mrf.mxu0
      %v312 = vadd.f32 0.0, %v311
      %v313 = vpop.f32.mrf.mxu0
      %314 = vdwg.mxu0
      %315 = vmatpush.bf16.msra.mxu0 0
      %316 = vmatpush.bf16.msra.mxu0 0
      %317 = vmatpush.bf16.msra.mxu0 0
      %318 = vmatpush.bf16.msra.mxu0 0
      %319 = vmatpush.bf16.msra.mxu0 %v295
      %320 = vmatpush.bf16.msra.mxu0 %v273
      %321 = vmatpush.bf16.msra.mxu0 %v272
      %322 = vmatpush.bf16.msra.mxu0 %v271
      %323 = vmatmul.bf16.gmra.mxu0 %v288
      %v324 = vpop.f32.mrf.mxu0
      %v325 = vadd.f32 %v307, %v324
      %v326 = vpop.f32.mrf.mxu0
      %v327 = vadd.f32 %v309, %v326
      %328 = vmatmul.bf16.gmra.mxu0 %v291
      %v329 = vpop.f32.mrf.mxu0
      %v330 = vadd.f32 %v312, %v329
      %v331 = vpop.f32.mrf.mxu0
      %332 = vdwg.mxu0
      %v333 = vadd.f32 %v325, 0.0
      %v334 = vadd.f32 %v327, 0.0
      %v335 = vadd.f32 %v330, 0.0
      %s336 = scalar_lea.vmem %s1, 92
      %v337 = vld [vmem:[%s336] sm:$0xf]
      %v338 = vld [vmem:[%s336 + $0x4] sm:$0xf]
      %v339 = vld [vmem:[%s336 + $0x8] sm:$0xf]
      %v340 = vld [vmem:[%s336 + $0xc] sm:$0xf]
      %v341 = vld [vmem:[%s336 + $0x10] sm:$0xf]
      %v342 = vld [vmem:[%s336 + $0x14] sm:$0xf]
      %v343 = vld [vmem:[%s336 + $0x18] sm:$0xf]
      %v344 = vld [vmem:[%s336 + $0x1c] sm:$0xf]
      %v345 = vld [vmem:[%s336 + $0x20] sm:$0xf]
      %v346 = vld [vmem:[%s336 + $0x24] sm:$0xf]
      %v347 = vld [vmem:[%s336 + $0x28] sm:$0xf]
      %v348 = vld [vmem:[%s336 + $0x2c] sm:$0xf]
      %v349 = vld [vmem:[%s336 + $0x30] sm:$0xf]
      %v350 = vld [vmem:[%s336 + $0x34] sm:$0xf]
      %v351 = vld [vmem:[%s336 + $0x38] sm:$0xf]
      %v352 = vld [vmem:[%s336 + $0x3c] sm:$0xf]
      %v353 = vld [vmem:[%s336 + $0x40] sm:$0xf]
      %v354 = vld [vmem:[%s336 + $0x44] sm:$0xf]
      %v355 = vld [vmem:[%s336 + $0x48] sm:$0xf]
      %v356 = vld [vmem:[%s336 + $0x4c] sm:$0xf]
      %v357 = vld [vmem:[%s336 + $0x50] sm:$0xf]
      %v358 = vld [vmem:[%s336 + $0x54] sm:$0xf]
      %v359 = vld [vmem:[%s336 + $0x58] sm:$0x3]
      %v383 = vunpack.c.l.b16 %v337
      %v384 = vunpack.c.l.b16 %v338
      %v385 = vunpack.c.l.b16 %v339
      %v386 = vunpack.c.l.b16 %v340
      %v387 = vunpack.c.l.b16 %v341
      %v388 = vunpack.c.l.b16 %v342
      %v389 = vunpack.c.l.b16 %v343
      %v390 = vunpack.c.l.b16 %v344
      %v391 = vunpack.c.l.b16 %v345
      %v392 = vunpack.c.l.b16 %v346
      %v393 = vunpack.c.l.b16 %v347
      %v394 = vunpack.c.l.b16 %v348
      %v395 = vunpack.c.l.b16 %v349
      %v396 = vunpack.c.l.b16 %v350
      %v397 = vunpack.c.l.b16 %v351
      %v398 = vunpack.c.l.b16 %v352
      %v399 = vunpack.c.l.b16 %v353
      %v400 = vunpack.c.l.b16 %v354
      %v401 = vunpack.c.l.b16 %v355
      %v402 = vunpack.c.l.b16 %v356
      %v403 = vunpack.c.l.b16 %v357
      %v404 = vunpack.c.l.b16 %v358
      %v405 = vunpack.c.l.b16 %v359
      %v406 = vpack.c.b16 %v384, %v383
      %v407 = vpack.c.b16 %v386, %v385
      %v408 = vpack.c.b16 %v388, %v387
      %v409 = vpack.c.b16 %v390, %v389
      %v410 = vpack.c.b16 %v392, %v391
      %v411 = vpack.c.b16 %v394, %v393
      %v412 = vpack.c.b16 %v396, %v395
      %v413 = vpack.c.b16 %v398, %v397
      %v414 = vpack.c.b16 %v400, %v399
      %v415 = vpack.c.b16 %v402, %v401
      %v416 = vpack.c.b16 %v404, %v403
      %v417 = vpack.c.b16 %v405, %v405
      %v430 = vsel %vm293, %v417, 0
      %432 = vmatpush.bf16.msra.mxu0 %v413
      %433 = vmatpush.bf16.msra.mxu0 %v412
      %434 = vmatpush.bf16.msra.mxu0 %v411
      %435 = vmatpush.bf16.msra.mxu0 %v410
      %436 = vmatpush.bf16.msra.mxu0 %v409
      %437 = vmatpush.bf16.msra.mxu0 %v408
      %438 = vmatpush.bf16.msra.mxu0 %v407
      %439 = vmatpush.bf16.msra.mxu0 %v406
      %440 = vmatmul.bf16.gmra.mxu0 %v211
      %v441 = vpop.f32.mrf.mxu0
      %v442 = vadd.f32 0.0, %v441
      %v443 = vpop.f32.mrf.mxu0
      %v444 = vadd.f32 0.0, %v443
      %445 = vmatmul.bf16.gmra.mxu0 %v213
      %v446 = vpop.f32.mrf.mxu0
      %v447 = vadd.f32 0.0, %v446
      %v448 = vpop.f32.mrf.mxu0
      %449 = vdwg.mxu0
      %450 = vmatpush.bf16.msra.mxu0 0
      %451 = vmatpush.bf16.msra.mxu0 0
      %452 = vmatpush.bf16.msra.mxu0 0
      %453 = vmatpush.bf16.msra.mxu0 0
      %454 = vmatpush.bf16.msra.mxu0 %v430
      %455 = vmatpush.bf16.msra.mxu0 %v416
      %456 = vmatpush.bf16.msra.mxu0 %v415
      %457 = vmatpush.bf16.msra.mxu0 %v414
      %458 = vmatmul.bf16.gmra.mxu0 %v288
      %v459 = vpop.f32.mrf.mxu0
      %v460 = vadd.f32 %v442, %v459
      %v461 = vpop.f32.mrf.mxu0
      %v462 = vadd.f32 %v444, %v461
      %463 = vmatmul.bf16.gmra.mxu0 %v291
      %v464 = vpop.f32.mrf.mxu0
      %v465 = vadd.f32 %v447, %v464
      %v466 = vpop.f32.mrf.mxu0
      %467 = vdwg.mxu0
      %vm471 = vcmask 1046528
      %v472 = vrot.slane %v460, 1
      %v473 = vrot.slane %v462, 1
      %v474 = vsel %vm471, %v472, %v473
      %v475 = vrot.slane %v465, 1
      %v476 = vsel %vm471, %v473, %v475
      %v480 = vadd.f32 %v333, %v474
      %v481 = vadd.f32 %v334, %v476
      %v482 = vadd.f32 %v335, %v475
      %s483 = scalar_lea.vmem %s1, 184
      %v484 = vld [vmem:[%s483] sm:$0xf]
      %v485 = vld [vmem:[%s483 + $0x4] sm:$0xf]
      %v486 = vld [vmem:[%s483 + $0x8] sm:$0xf]
      %v487 = vld [vmem:[%s483 + $0xc] sm:$0xf]
      %v488 = vld [vmem:[%s483 + $0x10] sm:$0xf]
      %v489 = vld [vmem:[%s483 + $0x14] sm:$0xf]
      %v490 = vld [vmem:[%s483 + $0x18] sm:$0xf]
      %v491 = vld [vmem:[%s483 + $0x1c] sm:$0xf]
      %v492 = vld [vmem:[%s483 + $0x20] sm:$0xf]
      %v493 = vld [vmem:[%s483 + $0x24] sm:$0xf]
      %v494 = vld [vmem:[%s483 + $0x28] sm:$0xf]
      %v495 = vld [vmem:[%s483 + $0x2c] sm:$0xf]
      %v496 = vld [vmem:[%s483 + $0x30] sm:$0xf]
      %v497 = vld [vmem:[%s483 + $0x34] sm:$0xf]
      %v498 = vld [vmem:[%s483 + $0x38] sm:$0xf]
      %v499 = vld [vmem:[%s483 + $0x3c] sm:$0xf]
      %v500 = vld [vmem:[%s483 + $0x40] sm:$0xf]
      %v501 = vld [vmem:[%s483 + $0x44] sm:$0xf]
      %v502 = vld [vmem:[%s483 + $0x48] sm:$0xf]
      %v503 = vld [vmem:[%s483 + $0x4c] sm:$0xf]
      %v504 = vld [vmem:[%s483 + $0x50] sm:$0xf]
      %v505 = vld [vmem:[%s483 + $0x54] sm:$0xf]
      %v506 = vld [vmem:[%s483 + $0x58] sm:$0x3]
      %v530 = vunpack.c.l.b16 %v484
      %v531 = vunpack.c.l.b16 %v485
      %v532 = vunpack.c.l.b16 %v486
      %v533 = vunpack.c.l.b16 %v487
      %v534 = vunpack.c.l.b16 %v488
      %v535 = vunpack.c.l.b16 %v489
      %v536 = vunpack.c.l.b16 %v490
      %v537 = vunpack.c.l.b16 %v491
      %v538 = vunpack.c.l.b16 %v492
      %v539 = vunpack.c.l.b16 %v493
      %v540 = vunpack.c.l.b16 %v494
      %v541 = vunpack.c.l.b16 %v495
      %v542 = vunpack.c.l.b16 %v496
      %v543 = vunpack.c.l.b16 %v497
      %v544 = vunpack.c.l.b16 %v498
      %v545 = vunpack.c.l.b16 %v499
      %v546 = vunpack.c.l.b16 %v500
      %v547 = vunpack.c.l.b16 %v501
      %v548 = vunpack.c.l.b16 %v502
      %v549 = vunpack.c.l.b16 %v503
      %v550 = vunpack.c.l.b16 %v504
      %v551 = vunpack.c.l.b16 %v505
      %v552 = vunpack.c.l.b16 %v506
      %v553 = vpack.c.b16 %v531, %v530
      %v554 = vpack.c.b16 %v533, %v532
      %v555 = vpack.c.b16 %v535, %v534
      %v556 = vpack.c.b16 %v537, %v536
      %v557 = vpack.c.b16 %v539, %v538
      %v558 = vpack.c.b16 %v541, %v540
      %v559 = vpack.c.b16 %v543, %v542
      %v560 = vpack.c.b16 %v545, %v544
      %v561 = vpack.c.b16 %v547, %v546
      %v562 = vpack.c.b16 %v549, %v548
      %v563 = vpack.c.b16 %v551, %v550
      %v564 = vpack.c.b16 %v552, %v552
      %v577 = vsel %vm293, %v564, 0
      %579 = vmatpush.bf16.msra.mxu0 %v560
      %580 = vmatpush.bf16.msra.mxu0 %v559
      %581 = vmatpush.bf16.msra.mxu0 %v558
      %582 = vmatpush.bf16.msra.mxu0 %v557
      %583 = vmatpush.bf16.msra.mxu0 %v556
      %584 = vmatpush.bf16.msra.mxu0 %v555
      %585 = vmatpush.bf16.msra.mxu0 %v554
      %586 = vmatpush.bf16.msra.mxu0 %v553
      %587 = vmatmul.bf16.gmra.mxu0 %v211
      %v588 = vpop.f32.mrf.mxu0
      %v589 = vadd.f32 0.0, %v588
      %v590 = vpop.f32.mrf.mxu0
      %v591 = vadd.f32 0.0, %v590
      %592 = vmatmul.bf16.gmra.mxu0 %v213
      %v593 = vpop.f32.mrf.mxu0
      %v594 = vadd.f32 0.0, %v593
      %v595 = vpop.f32.mrf.mxu0
      %596 = vdwg.mxu0
      %597 = vmatpush.bf16.msra.mxu0 0
      %598 = vmatpush.bf16.msra.mxu0 0
      %599 = vmatpush.bf16.msra.mxu0 0
      %600 = vmatpush.bf16.msra.mxu0 0
      %601 = vmatpush.bf16.msra.mxu0 %v577
      %602 = vmatpush.bf16.msra.mxu0 %v563
      %603 = vmatpush.bf16.msra.mxu0 %v562
      %604 = vmatpush.bf16.msra.mxu0 %v561
      %605 = vmatmul.bf16.gmra.mxu0 %v288
      %v606 = vpop.f32.mrf.mxu0
      %v607 = vadd.f32 %v589, %v606
      %v608 = vpop.f32.mrf.mxu0
      %v609 = vadd.f32 %v591, %v608
      %610 = vmatmul.bf16.gmra.mxu0 %v291
      %v611 = vpop.f32.mrf.mxu0
      %v612 = vadd.f32 %v594, %v611
      %v613 = vpop.f32.mrf.mxu0
      %614 = vdwg.mxu0
      %vm618 = vcmask 1045504
      %v619 = vrot.slane %v607, 2
      %v620 = vrot.slane %v609, 2
      %v621 = vsel %vm618, %v619, %v620
      %v622 = vrot.slane %v612, 2
      %v623 = vsel %vm618, %v620, %v622
      %v627 = vadd.f32 %v480, %v621
      %v628 = vadd.f32 %v481, %v623
      %v629 = vadd.f32 %v482, %v622
      %s630 = scalar_lea.vmem %s1, 276
      %v631 = vld [vmem:[%s630] sm:$0xf]
      %v632 = vld [vmem:[%s630 + $0x4] sm:$0xf]
      %v633 = vld [vmem:[%s630 + $0x8] sm:$0xf]
      %v634 = vld [vmem:[%s630 + $0xc] sm:$0xf]
      %v635 = vld [vmem:[%s630 + $0x10] sm:$0xf]
      %v636 = vld [vmem:[%s630 + $0x14] sm:$0xf]
      %v637 = vld [vmem:[%s630 + $0x18] sm:$0xf]
      %v638 = vld [vmem:[%s630 + $0x1c] sm:$0xf]
      %v639 = vld [vmem:[%s630 + $0x20] sm:$0xf]
      %v640 = vld [vmem:[%s630 + $0x24] sm:$0xf]
      %v641 = vld [vmem:[%s630 + $0x28] sm:$0xf]
      %v642 = vld [vmem:[%s630 + $0x2c] sm:$0xf]
      %v643 = vld [vmem:[%s630 + $0x30] sm:$0xf]
      %v644 = vld [vmem:[%s630 + $0x34] sm:$0xf]
      %v645 = vld [vmem:[%s630 + $0x38] sm:$0xf]
      %v646 = vld [vmem:[%s630 + $0x3c] sm:$0xf]
      %v647 = vld [vmem:[%s630 + $0x40] sm:$0xf]
      %v648 = vld [vmem:[%s630 + $0x44] sm:$0xf]
      %v649 = vld [vmem:[%s630 + $0x48] sm:$0xf]
      %v650 = vld [vmem:[%s630 + $0x4c] sm:$0xf]
      %v651 = vld [vmem:[%s630 + $0x50] sm:$0xf]
      %v652 = vld [vmem:[%s630 + $0x54] sm:$0xf]
      %v653 = vld [vmem:[%s630 + $0x58] sm:$0x3]
      %v677 = vunpack.c.l.b16 %v631
      %v678 = vunpack.c.l.b16 %v632
      %v679 = vunpack.c.l.b16 %v633
      %v680 = vunpack.c.l.b16 %v634
      %v681 = vunpack.c.l.b16 %v635
      %v682 = vunpack.c.l.b16 %v636
      %v683 = vunpack.c.l.b16 %v637
      %v684 = vunpack.c.l.b16 %v638
      %v685 = vunpack.c.l.b16 %v639
      %v686 = vunpack.c.l.b16 %v640
      %v687 = vunpack.c.l.b16 %v641
      %v688 = vunpack.c.l.b16 %v642
      %v689 = vunpack.c.l.b16 %v643
      %v690 = vunpack.c.l.b16 %v644
      %v691 = vunpack.c.l.b16 %v645
      %v692 = vunpack.c.l.b16 %v646
      %v693 = vunpack.c.l.b16 %v647
      %v694 = vunpack.c.l.b16 %v648
      %v695 = vunpack.c.l.b16 %v649
      %v696 = vunpack.c.l.b16 %v650
      %v697 = vunpack.c.l.b16 %v651
      %v698 = vunpack.c.l.b16 %v652
      %v699 = vunpack.c.l.b16 %v653
      %v700 = vpack.c.b16 %v678, %v677
      %v701 = vpack.c.b16 %v680, %v679
      %v702 = vpack.c.b16 %v682, %v681
      %v703 = vpack.c.b16 %v684, %v683
      %v704 = vpack.c.b16 %v686, %v685
      %v705 = vpack.c.b16 %v688, %v687
      %v706 = vpack.c.b16 %v690, %v689
      %v707 = vpack.c.b16 %v692, %v691
      %v708 = vpack.c.b16 %v694, %v693
      %v709 = vpack.c.b16 %v696, %v695
      %v710 = vpack.c.b16 %v698, %v697
      %v711 = vpack.c.b16 %v699, %v699
      %v724 = vsel %vm293, %v711, 0
      %726 = vmatpush.bf16.msra.mxu0 %v707
      %727 = vmatpush.bf16.msra.mxu0 %v706
      %728 = vmatpush.bf16.msra.mxu0 %v705
      %729 = vmatpush.bf16.msra.mxu0 %v704
      %730 = vmatpush.bf16.msra.mxu0 %v703
      %731 = vmatpush.bf16.msra.mxu0 %v702
      %732 = vmatpush.bf16.msra.mxu0 %v701
      %733 = vmatpush.bf16.msra.mxu0 %v700
      %734 = vmatmul.bf16.gmra.mxu0 %v211
      %v735 = vpop.f32.mrf.mxu0
      %v736 = vadd.f32 0.0, %v735
      %v737 = vpop.f32.mrf.mxu0
      %v738 = vadd.f32 0.0, %v737
      %739 = vmatmul.bf16.gmra.mxu0 %v213
      %v740 = vpop.f32.mrf.mxu0
      %v741 = vadd.f32 0.0, %v740
      %v742 = vpop.f32.mrf.mxu0
      %743 = vdwg.mxu0
      %744 = vmatpush.bf16.msra.mxu0 0
      %745 = vmatpush.bf16.msra.mxu0 0
      %746 = vmatpush.bf16.msra.mxu0 0
      %747 = vmatpush.bf16.msra.mxu0 0
      %748 = vmatpush.bf16.msra.mxu0 %v724
      %749 = vmatpush.bf16.msra.mxu0 %v710
      %750 = vmatpush.bf16.msra.mxu0 %v709
      %751 = vmatpush.bf16.msra.mxu0 %v708
      %752 = vmatmul.bf16.gmra.mxu0 %v288
      %v753 = vpop.f32.mrf.mxu0
      %v754 = vadd.f32 %v736, %v753
      %v755 = vpop.f32.mrf.mxu0
      %v756 = vadd.f32 %v738, %v755
      %757 = vmatmul.bf16.gmra.mxu0 %v291
      %v758 = vpop.f32.mrf.mxu0
      %v759 = vadd.f32 %v741, %v758
      %v760 = vpop.f32.mrf.mxu0
      %761 = vdwg.mxu0
      %vm765 = vcmask 1044480
      %v766 = vrot.slane %v754, 3
      %v767 = vrot.slane %v756, 3
      %v768 = vsel %vm765, %v766, %v767
      %v769 = vrot.slane %v759, 3
      %v770 = vsel %vm765, %v767, %v769
      %v774 = vadd.f32 %v627, %v768
      %v775 = vadd.f32 %v628, %v770
      %v776 = vadd.f32 %v629, %v769
      %s777 = scalar_lea.vmem %s1, 368
      %v778 = vld [vmem:[%s777] sm:$0xf]
      %v779 = vld [vmem:[%s777 + $0x4] sm:$0xf]
      %v780 = vld [vmem:[%s777 + $0x8] sm:$0xf]
      %v781 = vld [vmem:[%s777 + $0xc] sm:$0xf]
      %v782 = vld [vmem:[%s777 + $0x10] sm:$0xf]
      %v783 = vld [vmem:[%s777 + $0x14] sm:$0xf]
      %v784 = vld [vmem:[%s777 + $0x18] sm:$0xf]
      %v785 = vld [vmem:[%s777 + $0x1c] sm:$0xf]
      %v786 = vld [vmem:[%s777 + $0x20] sm:$0xf]
      %v787 = vld [vmem:[%s777 + $0x24] sm:$0xf]
      %v788 = vld [vmem:[%s777 + $0x28] sm:$0xf]
      %v789 = vld [vmem:[%s777 + $0x2c] sm:$0xf]
      %v790 = vld [vmem:[%s777 + $0x30] sm:$0xf]
      %v791 = vld [vmem:[%s777 + $0x34] sm:$0xf]
      %v792 = vld [vmem:[%s777 + $0x38] sm:$0xf]
      %v793 = vld [vmem:[%s777 + $0x3c] sm:$0xf]
      %v794 = vld [vmem:[%s777 + $0x40] sm:$0xf]
      %v795 = vld [vmem:[%s777 + $0x44] sm:$0xf]
      %v796 = vld [vmem:[%s777 + $0x48] sm:$0xf]
      %v797 = vld [vmem:[%s777 + $0x4c] sm:$0xf]
      %v798 = vld [vmem:[%s777 + $0x50] sm:$0xf]
      %v799 = vld [vmem:[%s777 + $0x54] sm:$0xf]
      %v800 = vld [vmem:[%s777 + $0x58] sm:$0x3]
      %v824 = vunpack.c.l.b16 %v778
      %v825 = vunpack.c.l.b16 %v779
      %v826 = vunpack.c.l.b16 %v780
      %v827 = vunpack.c.l.b16 %v781
      %v828 = vunpack.c.l.b16 %v782
      %v829 = vunpack.c.l.b16 %v783
      %v830 = vunpack.c.l.b16 %v784
      %v831 = vunpack.c.l.b16 %v785
      %v832 = vunpack.c.l.b16 %v786
      %v833 = vunpack.c.l.b16 %v787
      %v834 = vunpack.c.l.b16 %v788
      %v835 = vunpack.c.l.b16 %v789
      %v836 = vunpack.c.l.b16 %v790
      %v837 = vunpack.c.l.b16 %v791
      %v838 = vunpack.c.l.b16 %v792
      %v839 = vunpack.c.l.b16 %v793
      %v840 = vunpack.c.l.b16 %v794
      %v841 = vunpack.c.l.b16 %v795
      %v842 = vunpack.c.l.b16 %v796
      %v843 = vunpack.c.l.b16 %v797
      %v844 = vunpack.c.l.b16 %v798
      %v845 = vunpack.c.l.b16 %v799
      %v846 = vunpack.c.l.b16 %v800
      %v847 = vpack.c.b16 %v825, %v824
      %v848 = vpack.c.b16 %v827, %v826
      %v849 = vpack.c.b16 %v829, %v828
      %v850 = vpack.c.b16 %v831, %v830
      %v851 = vpack.c.b16 %v833, %v832
      %v852 = vpack.c.b16 %v835, %v834
      %v853 = vpack.c.b16 %v837, %v836
      %v854 = vpack.c.b16 %v839, %v838
      %v855 = vpack.c.b16 %v841, %v840
      %v856 = vpack.c.b16 %v843, %v842
      %v857 = vpack.c.b16 %v845, %v844
      %v858 = vpack.c.b16 %v846, %v846
      %v871 = vsel %vm293, %v858, 0
      %873 = vmatpush.bf16.msra.mxu0 %v854
      %874 = vmatpush.bf16.msra.mxu0 %v853
      %875 = vmatpush.bf16.msra.mxu0 %v852
      %876 = vmatpush.bf16.msra.mxu0 %v851
      %877 = vmatpush.bf16.msra.mxu0 %v850
      %878 = vmatpush.bf16.msra.mxu0 %v849
      %879 = vmatpush.bf16.msra.mxu0 %v848
      %880 = vmatpush.bf16.msra.mxu0 %v847
      %881 = vmatmul.bf16.gmra.mxu0 %v211
      %v882 = vpop.f32.mrf.mxu0
      %v883 = vadd.f32 0.0, %v882
      %v884 = vpop.f32.mrf.mxu0
      %v885 = vadd.f32 0.0, %v884
      %886 = vmatmul.bf16.gmra.mxu0 %v213
      %v887 = vpop.f32.mrf.mxu0
      %v888 = vadd.f32 0.0, %v887
      %v889 = vpop.f32.mrf.mxu0
      %v890 = vadd.f32 0.0, %v889
      %891 = vdwg.mxu0
      %892 = vmatpush.bf16.msra.mxu0 0
      %893 = vmatpush.bf16.msra.mxu0 0
      %894 = vmatpush.bf16.msra.mxu0 0
      %895 = vmatpush.bf16.msra.mxu0 0
      %896 = vmatpush.bf16.msra.mxu0 %v871
      %897 = vmatpush.bf16.msra.mxu0 %v857
      %898 = vmatpush.bf16.msra.mxu0 %v856
      %899 = vmatpush.bf16.msra.mxu0 %v855
      %900 = vmatmul.bf16.gmra.mxu0 %v288
      %v901 = vpop.f32.mrf.mxu0
      %v902 = vadd.f32 %v883, %v901
      %v903 = vpop.f32.mrf.mxu0
      %v904 = vadd.f32 %v885, %v903
      %905 = vmatmul.bf16.gmra.mxu0 %v291
      %v906 = vpop.f32.mrf.mxu0
      %v907 = vadd.f32 %v888, %v906
      %v908 = vpop.f32.mrf.mxu0
      %v909 = vadd.f32 %v890, %v908
      %910 = vdwg.mxu0
      %vm915 = vcmask 1043456
      %v916 = vrot.slane %v902, 4
      %v917 = vrot.slane %v904, 4
      %v918 = vsel %vm915, %v916, %v917
      %v919 = vrot.slane %v907, 4
      %v920 = vsel %vm915, %v917, %v919
      %v921 = vrot.slane %v909, 4
      %v922 = vsel %vm915, %v919, %v921
      %v926 = vadd.f32 %v774, %v918
      %v927 = vadd.f32 %v775, %v920
      %v928 = vadd.f32 %v776, %v922
      %v929 = vld [vmem:[%s2] sm:$0x1]
      %v931 = vperm.slane %v929, 0
      %v933 = vadd.f32 %v926, %v931
      %v934 = vadd.f32 %v927, %v931
      %v935 = vadd.f32 %v928, %v931
      %v936 = vmax.f32 %v933, 0.0
      %v937 = vmax.f32 %v934, 0.0
      %v938 = vmax.f32 %v935, 0.0
      %vm939 = vcmask 654336
      %940 = vst.msk [vmem:[%s170] sm:$0xff] %vm939, %v936
      %941 = vst.msk [vmem:[%s170 + $0x8] sm:$0xff] %vm939, %v937
      %vm942 = vcmask 651264
      %943 = vst.msk [vmem:[%s170 + $0x10] sm:$0x1f] %vm942, %v938
      %p944 = scmp.lt.s32.totalorder %s14, 1
      %s945 = scalar_select %p944, %s14, 1
      %s946 = smul.addr %s945, 3
      %s947 = smul.addr %s946, 8
      %s948 = scalar_lea.vmem %s3, %s947
      // Predicated region
      $region33: #{cnn_forward.3} parent=31 // pred_check
        %p949 = pneg %p100
      $region34: #{cnn_forward.3} parent=31 // pred_check_branch
        %951 = sbr.rel (%p949) target = $region36
      $region35: #{cnn_forward.3} parent=31 // pred_region
        _
      $region36: #{cnn_forward.3} parent=31 // pred_fallthru
        _
    $region32: #{cnn_forward.3} parent=5 // pred_fallthru
      _
    %p952 = scmp.le.s32.totalorder 2, %s9
    // Predicated region
    $region37: #{cnn_forward.3} parent=5 // pred_check
      %p953 = pneg %p952
    $region38: #{cnn_forward.3} parent=5 // pred_check_branch
      %955 = sbr.rel (%p953) target = $region40
    $region39: #{cnn_forward.3} parent=5 // pred_region
      %s956 = ssub.s32 %s9, 2
      // Predicated region
      $region41: #{cnn_forward.3} parent=39 // pred_check
        %p957 = pneg %p106
      $region42: #{cnn_forward.3} parent=39 // pred_check_branch
        %959 = sbr.rel (%p957) target = $region44
      $region43: #{cnn_forward.3} parent=39 // pred_region
        %p960 = scmp.lt.s32.totalorder %s15, 1
        %s961 = scalar_select %p960, %s15, 1
        %s962 = smul.addr %s961, 3
        %s963 = smul.addr %s962, 8
        %s964 = scalar_lea.vmem %s3, %s963
      $region44: #{cnn_forward.3} parent=39 // pred_fallthru
        _
    $region40: #{cnn_forward.3} parent=5 // pred_fallthru
      _
  $region6: #{cnn_forward.3} parent=0 // loop_footer
    %s13 = sadd.s32 1, %s9
  $region7: #{cnn_forward.3} parent=0 // loop_footer_branch
    %8 = sbr.rel target = $region3
  $region8: #{cnn_forward.3} parent=0 // loop_exit
    _

</llo_original>
